<compile_context>
chip_gen: v6e
topology: v6e:2x2x1
jax: 0.10.0
libtpu: 0.0.40
codegen_flags: <defaults>
</compile_context>

<pallas_src>
import functools

import jax
import jax.numpy as jnp
from jax.experimental import pallas as pl
from jax.experimental.pallas import tpu as pltpu

BN_EPS = 1e-5


def _clsa_kernel(x_ref, w_ref, b_ref, gamma_ref, beta_ref, o_ref):
    """Fused Linear (full-K dot) + BatchNorm1d (batch stats) + ReLU.

    grid = (OUT // tn,)   one "parallel" axis over output-feature blocks.
    x_ref:     (N, F)    bf16  (resident: same block for every j)
    w_ref:     (F, tn)   bf16  (contiguous per-block weight slab; leading dim squeezed)
    b_ref:     (1, tn)   f32
    gamma_ref: (1, tn)   f32
    beta_ref:  (1, tn)   f32
    o_ref:     (N, tn)   f32
    """
    # bf16 x bf16 -> f32 on the MXU, whole reduction in one shot.
    z = jnp.dot(x_ref[...], w_ref[...], preferred_element_type=jnp.float32)
    z = z + b_ref[...]
    # BatchNorm1d (training mode): per-feature batch mean / biased variance.
    # Stats are per-feature, so splitting the OUT axis across blocks is exact.
    mean = jnp.mean(z, axis=0, keepdims=True)
    var = jnp.mean((z - mean) ** 2, axis=0, keepdims=True)
    y = (z - mean) * jax.lax.rsqrt(var + BN_EPS) * gamma_ref[...] + beta_ref[...]
    o_ref[...] = jnp.maximum(y, 0.0).astype(o_ref.dtype)


def _default_tn(out_dim):
    """256 (single contiguous step) on 1-TC chips; 128 (2-way OUT split) on v7x."""
    try:
        kind = jax.devices()[0].device_kind.lower()
    except Exception:  # pragma: no cover - defensive
        kind = ""
    if ("v7" in kind or "tpu7" in kind) and out_dim % 128 == 0 and out_dim >= 256:
        return 128
    return out_dim


@functools.partial(jax.jit, static_argnames=("tn",))
def _clsa_forward_impl(x, w, b, gamma, beta, *, tn):
    n, c, h, wd = x.shape
    # AvgPool2d(kernel_size=2, stride=2) — exact semantics, done in f32.
    pooled = x.reshape(n, c, h // 2, 2, wd // 2, 2).mean(axis=(3, 5))
    # Flatten (PyTorch order: C, H/2, W/2), then cast to bf16 for streaming.
    x_flat = pooled.reshape(n, c * (h // 2) * (wd // 2)).astype(jnp.bfloat16)

    f = x_flat.shape[1]
    out_dim = w.shape[1]
    assert out_dim % tn == 0, (out_dim, tn)
    num_blocks = out_dim // tn

    # Lay each output block's weight slab out contiguously in HBM so every
    # TensorCore streams one dense bf16 stripe (no strided column-slice DMA).
    # For num_blocks == 1 this is a pure reshape (no data movement).
    w_blocks = w.astype(jnp.bfloat16).reshape(f, num_blocks, tn).transpose(1, 0, 2)

    b2 = b.reshape(1, out_dim).astype(jnp.float32)
    g2 = gamma.reshape(1, out_dim).astype(jnp.float32)
    bt2 = beta.reshape(1, out_dim).astype(jnp.float32)

    return pl.pallas_call(
        _clsa_kernel,
        out_shape=jax.ShapeDtypeStruct((n, out_dim), jnp.float32),
        grid_spec=pltpu.PrefetchScalarGridSpec(
            num_scalar_prefetch=0,
            grid=(num_blocks,),
            in_specs=[
                pl.BlockSpec((n, f), lambda j: (0, 0)),          # x_flat (resident)
                pl.BlockSpec((None, f, tn), lambda j: (j, 0, 0)),  # weight slab j
                pl.BlockSpec((1, tn), lambda j: (0, j)),         # bias
                pl.BlockSpec((1, tn), lambda j: (0, j)),         # gamma
                pl.BlockSpec((1, tn), lambda j: (0, j)),         # beta
            ],
            out_specs=pl.BlockSpec((n, tn), lambda j: (0, j)),
        ),
        compiler_params=pltpu.CompilerParams(
            dimension_semantics=("parallel",),
            vmem_limit_bytes=32 * 1024 * 1024,
        ),
    )(x_flat, w_blocks, b2, g2, bt2)


def clsa_block_forward(x, w, b, gamma, beta, *, tn=None):
    """x: (N, C, H, W) float32. w: (F, 256). Returns (N, 256) float32."""
    if tn is None:
        tn = _default_tn(w.shape[1])
    return _clsa_forward_impl(x, w, b, gamma, beta, tn=tn)


def _reference(x, w, b, gamma, beta):
    # Reference uses the same bf16-quantized operands (upcast to f32) so the
    # comparison isolates kernel correctness from the intended bf16 streaming.
    n, c, h, wd = x.shape
    pooled = x.reshape(n, c, h // 2, 2, wd // 2, 2).mean(axis=(3, 5))
    xf = pooled.reshape(n, -1).astype(jnp.bfloat16).astype(jnp.float32)
    wf = w.astype(jnp.bfloat16).astype(jnp.float32)
    z = xf @ wf + b
    mean = z.mean(axis=0, keepdims=True)
    var = ((z - mean) ** 2).mean(axis=0, keepdims=True)
    y = (z - mean) / jnp.sqrt(var + BN_EPS) * gamma + beta
    return jnp.maximum(y, 0.0)


if __name__ == "__main__":
    # block_expansion = 1  =>  fc_features_in = 8192
    block_expansion = 1
    fc_in = block_expansion * 8192
    out_dim = 256

    # Input NCHW such that C * (H/2) * (W/2) == fc_in
    N, C, H, W = 2, 128, 16, 16
    assert C * (H // 2) * (W // 2) == fc_in

    key = jax.random.PRNGKey(0)
    kx, kw, kb = jax.random.split(key, 3)

    x = jax.random.normal(kx, (N, C, H, W), dtype=jnp.float32)

    # Deterministic Linear init (PyTorch-style uniform(-1/sqrt(fan_in), 1/sqrt(fan_in)))
    bound = 1.0 / (fc_in ** 0.5)
    w = jax.random.uniform(kw, (fc_in, out_dim), jnp.float32, -bound, bound)
    b = jax.random.uniform(kb, (out_dim,), jnp.float32, -bound, bound)
    # BatchNorm1d default affine params
    gamma = jnp.ones((out_dim,), jnp.float32)
    beta = jnp.zeros((out_dim,), jnp.float32)

    out = clsa_block_forward(x, w, b, gamma, beta)
    out = jax.block_until_ready(out)

    ref = _reference(x, w, b, gamma, beta)
    assert out.shape == (N, out_dim)
    # Tolerance reflects f32 accumulation-order differences amplified by BN over a
    # batch of only 2 samples.
    assert jnp.allclose(out, ref, atol=1e-2, rtol=1e-2), float(
        jnp.max(jnp.abs(out - ref))
    )
    print("KERNEL_OK")
</pallas_src>

<mosaic_0001>
module attributes {stable_mosaic.version = 11 : i64} {
  func.func @_clsa_kernel(%arg0: i32, %arg1: memref<2x8192xbf16, #tpu.memory_space<vmem>>, %arg2: memref<1x8192x256xbf16, #tpu.memory_space<vmem>>, %arg3: memref<1x256xf32, #tpu.memory_space<vmem>>, %arg4: memref<1x256xf32, #tpu.memory_space<vmem>>, %arg5: memref<1x256xf32, #tpu.memory_space<vmem>>, %arg6: memref<2x256xf32, #tpu.memory_space<vmem>>) attributes {dimension_semantics = [#tpu.dimension_semantics<parallel>], iteration_bounds = array<i64: 1>, scalar_prefetch = 0 : i64, scratch_operands = 0 : i64, tpu.core_type = #tpu.core_type<tc>, window_params = [{pipeline_mode = #tpu.pipeline_mode<synchronous>, transform_indices = @transform_0, window_bounds = array<i64: 2, 8192>}, {transform_indices = @transform_1, window_bounds = array<i64: 1, 8192, 256>}, {transform_indices = @transform_2, window_bounds = array<i64: 1, 256>}, {transform_indices = @transform_3, window_bounds = array<i64: 1, 256>}, {transform_indices = @transform_4, window_bounds = array<i64: 1, 256>}, {transform_indices = @transform_5, window_bounds = array<i64: 2, 256>}]} {
    %c0 = arith.constant 0 : index
    %c0_0 = arith.constant 0 : index
    %0 = vector.load %arg1[%c0, %c0_0] : memref<2x8192xbf16, #tpu.memory_space<vmem>>, vector<2x8192xbf16>
    %c0_1 = arith.constant 0 : index
    %c0_2 = arith.constant 0 : index
    %c0_3 = arith.constant 0 : index
    %1 = vector.load %arg2[%c0_1, %c0_2, %c0_3] : memref<1x8192x256xbf16, #tpu.memory_space<vmem>>, vector<1x8192x256xbf16>
    %2 = vector.shape_cast %1 : vector<1x8192x256xbf16> to vector<8192x256xbf16>
    %cst = arith.constant dense<0.000000e+00> : vector<2x256xf32>
    %3 = tpu.matmul %0, %2, %cst {dimension_numbers = #tpu.dot_dimension_numbers<[1], [0], [0], [1], [0, 0, 1, 1], [], []>} : vector<2x8192xbf16>, vector<8192x256xbf16>, vector<2x256xf32> -> vector<2x256xf32>
    %c0_4 = arith.constant 0 : index
    %c0_5 = arith.constant 0 : index
    %4 = vector.load %arg3[%c0_4, %c0_5] : memref<1x256xf32, #tpu.memory_space<vmem>>, vector<1x256xf32>
    %5 = vector.broadcast %4 : vector<1x256xf32> to vector<2x256xf32>
    %6 = arith.addf %3, %5 : vector<2x256xf32>
    %cst_6 = arith.constant dense<0.000000e+00> : vector<256xf32>
    %7 = vector.multi_reduction <add>, %6, %cst_6 [0] : vector<2x256xf32> to vector<256xf32>
    %8 = vector.shape_cast %7 : vector<256xf32> to vector<1x256xf32>
    %cst_7 = arith.constant 2.000000e+00 : f32
    %9 = vector.broadcast %cst_7 : f32 to vector<1x256xf32>
    %10 = arith.divf %8, %9 : vector<1x256xf32>
    %11 = vector.broadcast %10 : vector<1x256xf32> to vector<2x256xf32>
    %12 = arith.subf %6, %11 : vector<2x256xf32>
    %13 = arith.mulf %12, %12 : vector<2x256xf32>
    %cst_8 = arith.constant dense<0.000000e+00> : vector<256xf32>
    %14 = vector.multi_reduction <add>, %13, %cst_8 [0] : vector<2x256xf32> to vector<256xf32>
    %15 = vector.shape_cast %14 : vector<256xf32> to vector<1x256xf32>
    %cst_9 = arith.constant 2.000000e+00 : f32
    %16 = vector.broadcast %cst_9 : f32 to vector<1x256xf32>
    %17 = arith.divf %15, %16 : vector<1x256xf32>
    %18 = vector.broadcast %10 : vector<1x256xf32> to vector<2x256xf32>
    %19 = arith.subf %6, %18 : vector<2x256xf32>
    %cst_10 = arith.constant 9.99999974E-6 : f32
    %20 = vector.broadcast %cst_10 : f32 to vector<1x256xf32>
    %21 = arith.addf %17, %20 : vector<1x256xf32>
    %22 = math.rsqrt %21 : vector<1x256xf32>
    %23 = vector.broadcast %22 : vector<1x256xf32> to vector<2x256xf32>
    %24 = arith.mulf %19, %23 : vector<2x256xf32>
    %c0_11 = arith.constant 0 : index
    %c0_12 = arith.constant 0 : index
    %25 = vector.load %arg4[%c0_11, %c0_12] : memref<1x256xf32, #tpu.memory_space<vmem>>, vector<1x256xf32>
    %26 = vector.broadcast %25 : vector<1x256xf32> to vector<2x256xf32>
    %27 = arith.mulf %24, %26 : vector<2x256xf32>
    %c0_13 = arith.constant 0 : index
    %c0_14 = arith.constant 0 : index
    %28 = vector.load %arg5[%c0_13, %c0_14] : memref<1x256xf32, #tpu.memory_space<vmem>>, vector<1x256xf32>
    %29 = vector.broadcast %28 : vector<1x256xf32> to vector<2x256xf32>
    %30 = arith.addf %27, %29 : vector<2x256xf32>
    %cst_15 = arith.constant 0.000000e+00 : f32
    %31 = vector.broadcast %cst_15 : f32 to vector<2x256xf32>
    %32 = arith.maximumf %30, %31 : vector<2x256xf32>
    %c0_16 = arith.constant 0 : index
    %c0_17 = arith.constant 0 : index
    %33 = vector.load %arg6[%c0_16, %c0_17] : memref<2x256xf32, #tpu.memory_space<vmem>>, vector<2x256xf32>
    tpu.vector_store %arg6[%c0_16, %c0_17], %32 {strides = array<i32>} : memref<2x256xf32, #tpu.memory_space<vmem>>, vector<2x256xf32>,
    return
  }
  func.func @transform_0(%arg0: i32) -> (i32, i32) {
    %c0_i32 = arith.constant 0 : i32
    %c0_i32_0 = arith.constant 0 : i32
    %c0_i32_1 = arith.constant 0 : i32
    return %c0_i32, %c0_i32_0 : i32, i32
  }
  func.func @transform_1(%arg0: i32) -> (i32, i32, i32) {
    %c0_i32 = arith.constant 0 : i32
    %c0_i32_0 = arith.constant 0 : i32
    %c0_i32_1 = arith.constant 0 : i32
    return %arg0, %c0_i32, %c0_i32_0 : i32, i32, i32
  }
  func.func @transform_2(%arg0: i32) -> (i32, i32) {
    %c0_i32 = arith.constant 0 : i32
    %c0_i32_0 = arith.constant 0 : i32
    return %c0_i32, %arg0 : i32, i32
  }
  func.func @transform_3(%arg0: i32) -> (i32, i32) {
    %c0_i32 = arith.constant 0 : i32
    %c0_i32_0 = arith.constant 0 : i32
    return %c0_i32, %arg0 : i32, i32
  }
  func.func @transform_4(%arg0: i32) -> (i32, i32) {
    %c0_i32 = arith.constant 0 : i32
    %c0_i32_0 = arith.constant 0 : i32
    return %c0_i32, %arg0 : i32, i32
  }
  func.func @transform_5(%arg0: i32) -> (i32, i32) {
    %c0_i32 = arith.constant 0 : i32
    %c0_i32_0 = arith.constant 0 : i32
    return %c0_i32, %arg0 : i32, i32
  }
}

</mosaic_0001>

<llo_original>
// kernel: _clsa_forward_impl.1
$region0: #{_clsa_forward_impl.1}
  #allocation0 [shape = 'u32[]', space=smem, size = 0x4, offset = 0x4, fixed_abs, tag = 'smem constant byte address 0x4 - core index']
  #allocation1 [shape = 'u32[144,128]{1,0:T(1,128)}', space=vmem, size = 0x12000, scoped, tag = 'internal scratch']
  %s0 = inlined_call_operand.vmem [shape: bf16[2,8192], index: 0, kind: input, shape index: {}]
  %s1 = inlined_call_operand.vmem [shape: bf16[1,8192,256], index: 1, kind: input, shape index: {}]
  %s2 = inlined_call_operand.vmem [shape: f32[1,256], index: 2, kind: input, shape index: {}]
  %s3 = inlined_call_operand.vmem [shape: f32[1,256], index: 3, kind: input, shape index: {}]
  %s4 = inlined_call_operand.vmem [shape: f32[1,256], index: 4, kind: input, shape index: {}]
  %s5 = inlined_call_operand.hbm [shape: f32[2,256], index: 5, kind: output, shape index: {}]
  %s6 = sld [smem:[#allocation0]]
  $region30: #{_clsa_forward_impl.1} parent=0
    _
  %s8 = ssub.s32 1, %s6
  %s9 = scalar_select 0, %s8, %s6
  $region1: #{_clsa_forward_impl.1} parent=0
    #allocation2 [shape = 'u8[2048]{0}', space=vmem, size = 0x800, scoped, tag = 'output window, operand 0, single buffered']
    #allocation3 [shape = 's32[1]{0}', space=sflag, size = 0x4, scoped, tag = 'scoped memory for _clsa_forward_impl.1']
    %10 = vsyncpa [#allocation3], 0
    // Predicated region
    $region2: #{_clsa_forward_impl.1} parent=1 // pred_check
      _
    $region3: #{_clsa_forward_impl.1} parent=1 // pred_check_branch
      %12 = sbr.rel (0) target = $region5
    $region4: #{_clsa_forward_impl.1} parent=1 // pred_region
      _
    $region5: #{_clsa_forward_impl.1} parent=1 // pred_fallthru
      _
    // Predicated region
    $region6: #{_clsa_forward_impl.1} parent=1 // pred_check
      _
    $region7: #{_clsa_forward_impl.1} parent=1 // pred_check_branch
      %14 = sbr.rel (0) target = $region9
    $region8: #{_clsa_forward_impl.1} parent=1 // pred_region
      _
    $region9: #{_clsa_forward_impl.1} parent=1 // pred_fallthru
      _
    // Predicated region
    $region10: #{_clsa_forward_impl.1} parent=1 // pred_check
      _
    $region11: #{_clsa_forward_impl.1} parent=1 // pred_check_branch
      %16 = sbr.rel (0) target = $region13
    $region12: #{_clsa_forward_impl.1} parent=1 // pred_region
      _
    $region13: #{_clsa_forward_impl.1} parent=1 // pred_fallthru
      _
    // Predicated region
    $region14: #{_clsa_forward_impl.1} parent=1 // pred_check
      _
    $region15: #{_clsa_forward_impl.1} parent=1 // pred_check_branch
      %18 = sbr.rel (0) target = $region17
    $region16: #{_clsa_forward_impl.1} parent=1 // pred_region
      _
    $region17: #{_clsa_forward_impl.1} parent=1 // pred_fallthru
      _
    // Predicated region
    $region18: #{_clsa_forward_impl.1} parent=1 // pred_check
      _
    $region19: #{_clsa_forward_impl.1} parent=1 // pred_check_branch
      %20 = sbr.rel (0) target = $region21
    $region20: #{_clsa_forward_impl.1} parent=1 // pred_region
      _
    $region21: #{_clsa_forward_impl.1} parent=1 // pred_fallthru
      _
    %v21 = vld [vmem:[%s0] sm:$0xff]
    %v22 = vld [vmem:[%s0 + $0x8] sm:$0xff]
    %v23 = vld [vmem:[%s0 + $0x10] sm:$0xff]
    %v24 = vld [vmem:[%s0 + $0x18] sm:$0xff]
    %v25 = vld [vmem:[%s0 + $0x20] sm:$0xff]
    %v26 = vld [vmem:[%s0 + $0x28] sm:$0xff]
    %v27 = vld [vmem:[%s0 + $0x30] sm:$0xff]
    %v28 = vld [vmem:[%s0 + $0x38] sm:$0xff]
    %v29 = vld [vmem:[%s1] sm:$0xff]
    %v30 = vld [vmem:[%s1 + $0x8] sm:$0xff]
    %v31 = vld [vmem:[%s1 + $0x10] sm:$0xff]
    %v32 = vld [vmem:[%s1 + $0x18] sm:$0xff]
    %v33 = vld [vmem:[%s1 + $0x20] sm:$0xff]
    %v34 = vld [vmem:[%s1 + $0x28] sm:$0xff]
    %v35 = vld [vmem:[%s1 + $0x30] sm:$0xff]
    %v36 = vld [vmem:[%s1 + $0x38] sm:$0xff]
    %v37 = vld [vmem:[%s1 + $0x40] sm:$0xff]
    %v38 = vld [vmem:[%s1 + $0x48] sm:$0xff]
    %v39 = vld [vmem:[%s1 + $0x50] sm:$0xff]
    %v40 = vld [vmem:[%s1 + $0x58] sm:$0xff]
    %v41 = vld [vmem:[%s1 + $0x60] sm:$0xff]
    %v42 = vld [vmem:[%s1 + $0x68] sm:$0xff]
    %v43 = vld [vmem:[%s1 + $0x70] sm:$0xff]
    %v44 = vld [vmem:[%s1 + $0x78] sm:$0xff]
    %v45 = vld [vmem:[%s1 + $0x80] sm:$0xff]
    %v46 = vld [vmem:[%s1 + $0x88] sm:$0xff]
    %v47 = vld [vmem:[%s1 + $0x90] sm:$0xff]
    %v48 = vld [vmem:[%s1 + $0x98] sm:$0xff]
    %v49 = vld [vmem:[%s1 + $0xa0] sm:$0xff]
    %v50 = vld [vmem:[%s1 + $0xa8] sm:$0xff]
    %v51 = vld [vmem:[%s1 + $0xb0] sm:$0xff]
    %v52 = vld [vmem:[%s1 + $0xb8] sm:$0xff]
    %v53 = vld [vmem:[%s1 + $0xc0] sm:$0xff]
    %v54 = vld [vmem:[%s1 + $0xc8] sm:$0xff]
    %v55 = vld [vmem:[%s1 + $0xd0] sm:$0xff]
    %v56 = vld [vmem:[%s1 + $0xd8] sm:$0xff]
    %v57 = vld [vmem:[%s1 + $0xe0] sm:$0xff]
    %v58 = vld [vmem:[%s1 + $0xe8] sm:$0xff]
    %v59 = vld [vmem:[%s1 + $0xf0] sm:$0xff]
    %v60 = vld [vmem:[%s1 + $0xf8] sm:$0xff]
    %v61 = vld [vmem:[%s1 + $0x100] sm:$0xff]
    %v62 = vld [vmem:[%s1 + $0x108] sm:$0xff]
    %v63 = vld [vmem:[%s1 + $0x110] sm:$0xff]
    %v64 = vld [vmem:[%s1 + $0x118] sm:$0xff]
    %v65 = vld [vmem:[%s1 + $0x120] sm:$0xff]
    %v66 = vld [vmem:[%s1 + $0x128] sm:$0xff]
    %v67 = vld [vmem:[%s1 + $0x130] sm:$0xff]
    %v68 = vld [vmem:[%s1 + $0x138] sm:$0xff]
    %v69 = vld [vmem:[%s1 + $0x140] sm:$0xff]
    %v70 = vld [vmem:[%s1 + $0x148] sm:$0xff]
    %v71 = vld [vmem:[%s1 + $0x150] sm:$0xff]
    %v72 = vld [vmem:[%s1 + $0x158] sm:$0xff]
    %v73 = vld [vmem:[%s1 + $0x160] sm:$0xff]
    %v74 = vld [vmem:[%s1 + $0x168] sm:$0xff]
    %v75 = vld [vmem:[%s1 + $0x170] sm:$0xff]
    %v76 = vld [vmem:[%s1 + $0x178] sm:$0xff]
    %v77 = vld [vmem:[%s1 + $0x180] sm:$0xff]
    %v78 = vld [vmem:[%s1 + $0x188] sm:$0xff]
    %v79 = vld [vmem:[%s1 + $0x190] sm:$0xff]
    %v80 = vld [vmem:[%s1 + $0x198] sm:$0xff]
    %v81 = vld [vmem:[%s1 + $0x1a0] sm:$0xff]
    %v82 = vld [vmem:[%s1 + $0x1a8] sm:$0xff]
    %v83 = vld [vmem:[%s1 + $0x1b0] sm:$0xff]
    %v84 = vld [vmem:[%s1 + $0x1b8] sm:$0xff]
    %v85 = vld [vmem:[%s1 + $0x1c0] sm:$0xff]
    %v86 = vld [vmem:[%s1 + $0x1c8] sm:$0xff]
    %v87 = vld [vmem:[%s1 + $0x1d0] sm:$0xff]
    %v88 = vld [vmem:[%s1 + $0x1d8] sm:$0xff]
    %v89 = vld [vmem:[%s1 + $0x1e0] sm:$0xff]
    %v90 = vld [vmem:[%s1 + $0x1e8] sm:$0xff]
    %v91 = vld [vmem:[%s1 + $0x1f0] sm:$0xff]
    %v92 = vld [vmem:[%s1 + $0x1f8] sm:$0xff]
    %v93 = vld [vmem:[%s1 + $0x200] sm:$0xff]
    %v94 = vld [vmem:[%s1 + $0x208] sm:$0xff]
    %v95 = vld [vmem:[%s1 + $0x210] sm:$0xff]
    %v96 = vld [vmem:[%s1 + $0x218] sm:$0xff]
    %v97 = vld [vmem:[%s1 + $0x220] sm:$0xff]
    %v98 = vld [vmem:[%s1 + $0x228] sm:$0xff]
    %v99 = vld [vmem:[%s1 + $0x230] sm:$0xff]
    %v100 = vld [vmem:[%s1 + $0x238] sm:$0xff]
    %v101 = vld [vmem:[%s1 + $0x240] sm:$0xff]
    %v102 = vld [vmem:[%s1 + $0x248] sm:$0xff]
    %v103 = vld [vmem:[%s1 + $0x250] sm:$0xff]
    %v104 = vld [vmem:[%s1 + $0x258] sm:$0xff]
    %v105 = vld [vmem:[%s1 + $0x260] sm:$0xff]
    %v106 = vld [vmem:[%s1 + $0x268] sm:$0xff]
    %v107 = vld [vmem:[%s1 + $0x270] sm:$0xff]
    %v108 = vld [vmem:[%s1 + $0x278] sm:$0xff]
    %v109 = vld [vmem:[%s1 + $0x280] sm:$0xff]
    %v110 = vld [vmem:[%s1 + $0x288] sm:$0xff]
    %v111 = vld [vmem:[%s1 + $0x290] sm:$0xff]
    %v112 = vld [vmem:[%s1 + $0x298] sm:$0xff]
    %v113 = vld [vmem:[%s1 + $0x2a0] sm:$0xff]
    %v114 = vld [vmem:[%s1 + $0x2a8] sm:$0xff]
    %v115 = vld [vmem:[%s1 + $0x2b0] sm:$0xff]
    %v116 = vld [vmem:[%s1 + $0x2b8] sm:$0xff]
    %v117 = vld [vmem:[%s1 + $0x2c0] sm:$0xff]
    %v118 = vld [vmem:[%s1 + $0x2c8] sm:$0xff]
    %v119 = vld [vmem:[%s1 + $0x2d0] sm:$0xff]
    %v120 = vld [vmem:[%s1 + $0x2d8] sm:$0xff]
    %v121 = vld [vmem:[%s1 + $0x2e0] sm:$0xff]
    %v122 = vld [vmem:[%s1 + $0x2e8] sm:$0xff]
    %v123 = vld [vmem:[%s1 + $0x2f0] sm:$0xff]
    %v124 = vld [vmem:[%s1 + $0x2f8] sm:$0xff]
    %v125 = vld [vmem:[%s1 + $0x300] sm:$0xff]
    %v126 = vld [vmem:[%s1 + $0x308] sm:$0xff]
    %v127 = vld [vmem:[%s1 + $0x310] sm:$0xff]
    %v128 = vld [vmem:[%s1 + $0x318] sm:$0xff]
    %v129 = vld [vmem:[%s1 + $0x320] sm:$0xff]
    %v130 = vld [vmem:[%s1 + $0x328] sm:$0xff]
    %v131 = vld [vmem:[%s1 + $0x330] sm:$0xff]
    %v132 = vld [vmem:[%s1 + $0x338] sm:$0xff]
    %v133 = vld [vmem:[%s1 + $0x340] sm:$0xff]
    %v134 = vld [vmem:[%s1 + $0x348] sm:$0xff]
    %v135 = vld [vmem:[%s1 + $0x350] sm:$0xff]
    %v136 = vld [vmem:[%s1 + $0x358] sm:$0xff]
    %v137 = vld [vmem:[%s1 + $0x360] sm:$0xff]
    %v138 = vld [vmem:[%s1 + $0x368] sm:$0xff]
    %v139 = vld [vmem:[%s1 + $0x370] sm:$0xff]
    %v140 = vld [vmem:[%s1 + $0x378] sm:$0xff]
    %v141 = vld [vmem:[%s1 + $0x380] sm:$0xff]
    %v142 = vld [vmem:[%s1 + $0x388] sm:$0xff]
    %v143 = vld [vmem:[%s1 + $0x390] sm:$0xff]
    %v144 = vld [vmem:[%s1 + $0x398] sm:$0xff]
    %v145 = vld [vmem:[%s1 + $0x3a0] sm:$0xff]
    %v146 = vld [vmem:[%s1 + $0x3a8] sm:$0xff]
    %v147 = vld [vmem:[%s1 + $0x3b0] sm:$0xff]
    %v148 = vld [vmem:[%s1 + $0x3b8] sm:$0xff]
    %v149 = vld [vmem:[%s1 + $0x3c0] sm:$0xff]
    %v150 = vld [vmem:[%s1 + $0x3c8] sm:$0xff]
    %v151 = vld [vmem:[%s1 + $0x3d0] sm:$0xff]
    %v152 = vld [vmem:[%s1 + $0x3d8] sm:$0xff]
    %v153 = vld [vmem:[%s1 + $0x3e0] sm:$0xff]
    %v154 = vld [vmem:[%s1 + $0x3e8] sm:$0xff]
    %v155 = vld [vmem:[%s1 + $0x3f0] sm:$0xff]
    %v156 = vld [vmem:[%s1 + $0x3f8] sm:$0xff]
    %v157 = vld [vmem:[%s1 + $0x400] sm:$0xff]
    %v158 = vld [vmem:[%s1 + $0x408] sm:$0xff]
    %v159 = vld [vmem:[%s1 + $0x410] sm:$0xff]
    %v160 = vld [vmem:[%s1 + $0x418] sm:$0xff]
    %v161 = vld [vmem:[%s1 + $0x420] sm:$0xff]
    %v162 = vld [vmem:[%s1 + $0x428] sm:$0xff]
    %v163 = vld [vmem:[%s1 + $0x430] sm:$0xff]
    %v164 = vld [vmem:[%s1 + $0x438] sm:$0xff]
    %v165 = vld [vmem:[%s1 + $0x440] sm:$0xff]
    %v166 = vld [vmem:[%s1 + $0x448] sm:$0xff]
    %v167 = vld [vmem:[%s1 + $0x450] sm:$0xff]
    %v168 = vld [vmem:[%s1 + $0x458] sm:$0xff]
    %v169 = vld [vmem:[%s1 + $0x460] sm:$0xff]
    %v170 = vld [vmem:[%s1 + $0x468] sm:$0xff]
    %v171 = vld [vmem:[%s1 + $0x470] sm:$0xff]
    %v172 = vld [vmem:[%s1 + $0x478] sm:$0xff]
    %v173 = vld [vmem:[%s1 + $0x480] sm:$0xff]
    %v174 = vld [vmem:[%s1 + $0x488] sm:$0xff]
    %v175 = vld [vmem:[%s1 + $0x490] sm:$0xff]
    %v176 = vld [vmem:[%s1 + $0x498] sm:$0xff]
    %v177 = vld [vmem:[%s1 + $0x4a0] sm:$0xff]
    %v178 = vld [vmem:[%s1 + $0x4a8] sm:$0xff]
    %v179 = vld [vmem:[%s1 + $0x4b0] sm:$0xff]
    %v180 = vld [vmem:[%s1 + $0x4b8] sm:$0xff]
    %v181 = vld [vmem:[%s1 + $0x4c0] sm:$0xff]
    %v182 = vld [vmem:[%s1 + $0x4c8] sm:$0xff]
    %v183 = vld [vmem:[%s1 + $0x4d0] sm:$0xff]
    %v184 = vld [vmem:[%s1 + $0x4d8] sm:$0xff]
    %v185 = vld [vmem:[%s1 + $0x4e0] sm:$0xff]
    %v186 = vld [vmem:[%s1 + $0x4e8] sm:$0xff]
    %v187 = vld [vmem:[%s1 + $0x4f0] sm:$0xff]
    %v188 = vld [vmem:[%s1 + $0x4f8] sm:$0xff]
    %v189 = vld [vmem:[%s1 + $0x500] sm:$0xff]
    %v190 = vld [vmem:[%s1 + $0x508] sm:$0xff]
    %v191 = vld [vmem:[%s1 + $0x510] sm:$0xff]
    %v192 = vld [vmem:[%s1 + $0x518] sm:$0xff]
    %v193 = vld [vmem:[%s1 + $0x520] sm:$0xff]
    %v194 = vld [vmem:[%s1 + $0x528] sm:$0xff]
    %v195 = vld [vmem:[%s1 + $0x530] sm:$0xff]
    %v196 = vld [vmem:[%s1 + $0x538] sm:$0xff]
    %v197 = vld [vmem:[%s1 + $0x540] sm:$0xff]
    %v198 = vld [vmem:[%s1 + $0x548] sm:$0xff]
    %v199 = vld [vmem:[%s1 + $0x550] sm:$0xff]
    %v200 = vld [vmem:[%s1 + $0x558] sm:$0xff]
    %v201 = vld [vmem:[%s1 + $0x560] sm:$0xff]
    %v202 = vld [vmem:[%s1 + $0x568] sm:$0xff]
    %v203 = vld [vmem:[%s1 + $0x570] sm:$0xff]
    %v204 = vld [vmem:[%s1 + $0x578] sm:$0xff]
    %v205 = vld [vmem:[%s1 + $0x580] sm:$0xff]
    %v206 = vld [vmem:[%s1 + $0x588] sm:$0xff]
    %v207 = vld [vmem:[%s1 + $0x590] sm:$0xff]
    %v208 = vld [vmem:[%s1 + $0x598] sm:$0xff]
    %v209 = vld [vmem:[%s1 + $0x5a0] sm:$0xff]
    %v210 = vld [vmem:[%s1 + $0x5a8] sm:$0xff]
    %v211 = vld [vmem:[%s1 + $0x5b0] sm:$0xff]
    %v212 = vld [vmem:[%s1 + $0x5b8] sm:$0xff]
    %v213 = vld [vmem:[%s1 + $0x5c0] sm:$0xff]
    %v214 = vld [vmem:[%s1 + $0x5c8] sm:$0xff]
    %v215 = vld [vmem:[%s1 + $0x5d0] sm:$0xff]
    %v216 = vld [vmem:[%s1 + $0x5d8] sm:$0xff]
    %v217 = vld [vmem:[%s1 + $0x5e0] sm:$0xff]
    %v218 = vld [vmem:[%s1 + $0x5e8] sm:$0xff]
    %v219 = vld [vmem:[%s1 + $0x5f0] sm:$0xff]
    %v220 = vld [vmem:[%s1 + $0x5f8] sm:$0xff]
    %v221 = vld [vmem:[%s1 + $0x600] sm:$0xff]
    %v222 = vld [vmem:[%s1 + $0x608] sm:$0xff]
    %v223 = vld [vmem:[%s1 + $0x610] sm:$0xff]
    %v224 = vld [vmem:[%s1 + $0x618] sm:$0xff]
    %v225 = vld [vmem:[%s1 + $0x620] sm:$0xff]
    %v226 = vld [vmem:[%s1 + $0x628] sm:$0xff]
    %v227 = vld [vmem:[%s1 + $0x630] sm:$0xff]
    %v228 = vld [vmem:[%s1 + $0x638] sm:$0xff]
    %v229 = vld [vmem:[%s1 + $0x640] sm:$0xff]
    %v230 = vld [vmem:[%s1 + $0x648] sm:$0xff]
    %v231 = vld [vmem:[%s1 + $0x650] sm:$0xff]
    %v232 = vld [vmem:[%s1 + $0x658] sm:$0xff]
    %v233 = vld [vmem:[%s1 + $0x660] sm:$0xff]
    %v234 = vld [vmem:[%s1 + $0x668] sm:$0xff]
    %v235 = vld [vmem:[%s1 + $0x670] sm:$0xff]
    %v236 = vld [vmem:[%s1 + $0x678] sm:$0xff]
    %v237 = vld [vmem:[%s1 + $0x680] sm:$0xff]
    %v238 = vld [vmem:[%s1 + $0x688] sm:$0xff]
    %v239 = vld [vmem:[%s1 + $0x690] sm:$0xff]
    %v240 = vld [vmem:[%s1 + $0x698] sm:$0xff]
    %v241 = vld [vmem:[%s1 + $0x6a0] sm:$0xff]
    %v242 = vld [vmem:[%s1 + $0x6a8] sm:$0xff]
    %v243 = vld [vmem:[%s1 + $0x6b0] sm:$0xff]
    %v244 = vld [vmem:[%s1 + $0x6b8] sm:$0xff]
    %v245 = vld [vmem:[%s1 + $0x6c0] sm:$0xff]
    %v246 = vld [vmem:[%s1 + $0x6c8] sm:$0xff]
    %v247 = vld [vmem:[%s1 + $0x6d0] sm:$0xff]
    %v248 = vld [vmem:[%s1 + $0x6d8] sm:$0xff]
    %v249 = vld [vmem:[%s1 + $0x6e0] sm:$0xff]
    %v250 = vld [vmem:[%s1 + $0x6e8] sm:$0xff]
    %v251 = vld [vmem:[%s1 + $0x6f0] sm:$0xff]
    %v252 = vld [vmem:[%s1 + $0x6f8] sm:$0xff]
    %v253 = vld [vmem:[%s1 + $0x700] sm:$0xff]
    %v254 = vld [vmem:[%s1 + $0x708] sm:$0xff]
    %v255 = vld [vmem:[%s1 + $0x710] sm:$0xff]
    %v256 = vld [vmem:[%s1 + $0x718] sm:$0xff]
    %v257 = vld [vmem:[%s1 + $0x720] sm:$0xff]
    %v258 = vld [vmem:[%s1 + $0x728] sm:$0xff]
    %v259 = vld [vmem:[%s1 + $0x730] sm:$0xff]
    %v260 = vld [vmem:[%s1 + $0x738] sm:$0xff]
    %v261 = vld [vmem:[%s1 + $0x740] sm:$0xff]
    %v262 = vld [vmem:[%s1 + $0x748] sm:$0xff]
    %v263 = vld [vmem:[%s1 + $0x750] sm:$0xff]
    %v264 = vld [vmem:[%s1 + $0x758] sm:$0xff]
    %v265 = vld [vmem:[%s1 + $0x760] sm:$0xff]
    %v266 = vld [vmem:[%s1 + $0x768] sm:$0xff]
    %v267 = vld [vmem:[%s1 + $0x770] sm:$0xff]
    %v268 = vld [vmem:[%s1 + $0x778] sm:$0xff]
    %v269 = vld [vmem:[%s1 + $0x780] sm:$0xff]
    %v270 = vld [vmem:[%s1 + $0x788] sm:$0xff]
    %v271 = vld [vmem:[%s1 + $0x790] sm:$0xff]
    %v272 = vld [vmem:[%s1 + $0x798] sm:$0xff]
    %v273 = vld [vmem:[%s1 + $0x7a0] sm:$0xff]
    %v274 = vld [vmem:[%s1 + $0x7a8] sm:$0xff]
    %v275 = vld [vmem:[%s1 + $0x7b0] sm:$0xff]
    %v276 = vld [vmem:[%s1 + $0x7b8] sm:$0xff]
    %v277 = vld [vmem:[%s1 + $0x7c0] sm:$0xff]
    %v278 = vld [vmem:[%s1 + $0x7c8] sm:$0xff]
    %v279 = vld [vmem:[%s1 + $0x7d0] sm:$0xff]
    %v280 = vld [vmem:[%s1 + $0x7d8] sm:$0xff]
    %v281 = vld [vmem:[%s1 + $0x7e0] sm:$0xff]
    %v282 = vld [vmem:[%s1 + $0x7e8] sm:$0xff]
    %v283 = vld [vmem:[%s1 + $0x7f0] sm:$0xff]
    %v284 = vld [vmem:[%s1 + $0x7f8] sm:$0xff]
    %v285 = vld [vmem:[%s1 + $0x800] sm:$0xff]
    %v286 = vld [vmem:[%s1 + $0x808] sm:$0xff]
    %v287 = vld [vmem:[%s1 + $0x810] sm:$0xff]
    %v288 = vld [vmem:[%s1 + $0x818] sm:$0xff]
    %v289 = vld [vmem:[%s1 + $0x820] sm:$0xff]
    %v290 = vld [vmem:[%s1 + $0x828] sm:$0xff]
    %v291 = vld [vmem:[%s1 + $0x830] sm:$0xff]
    %v292 = vld [vmem:[%s1 + $0x838] sm:$0xff]
    %v293 = vld [vmem:[%s1 + $0x840] sm:$0xff]
    %v294 = vld [vmem:[%s1 + $0x848] sm:$0xff]
    %v295 = vld [vmem:[%s1 + $0x850] sm:$0xff]
    %v296 = vld [vmem:[%s1 + $0x858] sm:$0xff]
    %v297 = vld [vmem:[%s1 + $0x860] sm:$0xff]
    %v298 = vld [vmem:[%s1 + $0x868] sm:$0xff]
    %v299 = vld [vmem:[%s1 + $0x870] sm:$0xff]
    %v300 = vld [vmem:[%s1 + $0x878] sm:$0xff]
    %v301 = vld [vmem:[%s1 + $0x880] sm:$0xff]
    %v302 = vld [vmem:[%s1 + $0x888] sm:$0xff]
    %v303 = vld [vmem:[%s1 + $0x890] sm:$0xff]
    %v304 = vld [vmem:[%s1 + $0x898] sm:$0xff]
    %v305 = vld [vmem:[%s1 + $0x8a0] sm:$0xff]
    %v306 = vld [vmem:[%s1 + $0x8a8] sm:$0xff]
    %v307 = vld [vmem:[%s1 + $0x8b0] sm:$0xff]
    %v308 = vld [vmem:[%s1 + $0x8b8] sm:$0xff]
    %v309 = vld [vmem:[%s1 + $0x8c0] sm:$0xff]
    %v310 = vld [vmem:[%s1 + $0x8c8] sm:$0xff]
    %v311 = vld [vmem:[%s1 + $0x8d0] sm:$0xff]
    %v312 = vld [vmem:[%s1 + $0x8d8] sm:$0xff]
    %v313 = vld [vmem:[%s1 + $0x8e0] sm:$0xff]
    %v314 = vld [vmem:[%s1 + $0x8e8] sm:$0xff]
    %v315 = vld [vmem:[%s1 + $0x8f0] sm:$0xff]
    %v316 = vld [vmem:[%s1 + $0x8f8] sm:$0xff]
    %v317 = vld [vmem:[%s1 + $0x900] sm:$0xff]
    %v318 = vld [vmem:[%s1 + $0x908] sm:$0xff]
    %v319 = vld [vmem:[%s1 + $0x910] sm:$0xff]
    %v320 = vld [vmem:[%s1 + $0x918] sm:$0xff]
    %v321 = vld [vmem:[%s1 + $0x920] sm:$0xff]
    %v322 = vld [vmem:[%s1 + $0x928] sm:$0xff]
    %v323 = vld [vmem:[%s1 + $0x930] sm:$0xff]
    %v324 = vld [vmem:[%s1 + $0x938] sm:$0xff]
    %v325 = vld [vmem:[%s1 + $0x940] sm:$0xff]
    %v326 = vld [vmem:[%s1 + $0x948] sm:$0xff]
    %v327 = vld [vmem:[%s1 + $0x950] sm:$0xff]
    %v328 = vld [vmem:[%s1 + $0x958] sm:$0xff]
    %v329 = vld [vmem:[%s1 + $0x960] sm:$0xff]
    %v330 = vld [vmem:[%s1 + $0x968] sm:$0xff]
    %v331 = vld [vmem:[%s1 + $0x970] sm:$0xff]
    %v332 = vld [vmem:[%s1 + $0x978] sm:$0xff]
    %v333 = vld [vmem:[%s1 + $0x980] sm:$0xff]
    %v334 = vld [vmem:[%s1 + $0x988] sm:$0xff]
    %v335 = vld [vmem:[%s1 + $0x990] sm:$0xff]
    %v336 = vld [vmem:[%s1 + $0x998] sm:$0xff]
    %v337 = vld [vmem:[%s1 + $0x9a0] sm:$0xff]
    %v338 = vld [vmem:[%s1 + $0x9a8] sm:$0xff]
    %v339 = vld [vmem:[%s1 + $0x9b0] sm:$0xff]
    %v340 = vld [vmem:[%s1 + $0x9b8] sm:$0xff]
    %v341 = vld [vmem:[%s1 + $0x9c0] sm:$0xff]
    %v342 = vld [vmem:[%s1 + $0x9c8] sm:$0xff]
    %v343 = vld [vmem:[%s1 + $0x9d0] sm:$0xff]
    %v344 = vld [vmem:[%s1 + $0x9d8] sm:$0xff]
    %v345 = vld [vmem:[%s1 + $0x9e0] sm:$0xff]
    %v346 = vld [vmem:[%s1 + $0x9e8] sm:$0xff]
    %v347 = vld [vmem:[%s1 + $0x9f0] sm:$0xff]
    %v348 = vld [vmem:[%s1 + $0x9f8] sm:$0xff]
    %v349 = vld [vmem:[%s1 + $0xa00] sm:$0xff]
    %v350 = vld [vmem:[%s1 + $0xa08] sm:$0xff]
    %v351 = vld [vmem:[%s1 + $0xa10] sm:$0xff]
    %v352 = vld [vmem:[%s1 + $0xa18] sm:$0xff]
    %v353 = vld [vmem:[%s1 + $0xa20] sm:$0xff]
    %v354 = vld [vmem:[%s1 + $0xa28] sm:$0xff]
    %v355 = vld [vmem:[%s1 + $0xa30] sm:$0xff]
    %v356 = vld [vmem:[%s1 + $0xa38] sm:$0xff]
    %v357 = vld [vmem:[%s1 + $0xa40] sm:$0xff]
    %v358 = vld [vmem:[%s1 + $0xa48] sm:$0xff]
    %v359 = vld [vmem:[%s1 + $0xa50] sm:$0xff]
    %v360 = vld [vmem:[%s1 + $0xa58] sm:$0xff]
    %v361 = vld [vmem:[%s1 + $0xa60] sm:$0xff]
    %v362 = vld [vmem:[%s1 + $0xa68] sm:$0xff]
    %v363 = vld [vmem:[%s1 + $0xa70] sm:$0xff]
    %v364 = vld [vmem:[%s1 + $0xa78] sm:$0xff]
    %v365 = vld [vmem:[%s1 + $0xa80] sm:$0xff]
    %v366 = vld [vmem:[%s1 + $0xa88] sm:$0xff]
    %v367 = vld [vmem:[%s1 + $0xa90] sm:$0xff]
    %v368 = vld [vmem:[%s1 + $0xa98] sm:$0xff]
    %v369 = vld [vmem:[%s1 + $0xaa0] sm:$0xff]
    %v370 = vld [vmem:[%s1 + $0xaa8] sm:$0xff]
    %v371 = vld [vmem:[%s1 + $0xab0] sm:$0xff]
    %v372 = vld [vmem:[%s1 + $0xab8] sm:$0xff]
    %v373 = vld [vmem:[%s1 + $0xac0] sm:$0xff]
    %v374 = vld [vmem:[%s1 + $0xac8] sm:$0xff]
    %v375 = vld [vmem:[%s1 + $0xad0] sm:$0xff]
    %v376 = vld [vmem:[%s1 + $0xad8] sm:$0xff]
    %v377 = vld [vmem:[%s1 + $0xae0] sm:$0xff]
    %v378 = vld [vmem:[%s1 + $0xae8] sm:$0xff]
    %v379 = vld [vmem:[%s1 + $0xaf0] sm:$0xff]
    %v380 = vld [vmem:[%s1 + $0xaf8] sm:$0xff]
    %v381 = vld [vmem:[%s1 + $0xb00] sm:$0xff]
    %v382 = vld [vmem:[%s1 + $0xb08] sm:$0xff]
    %v383 = vld [vmem:[%s1 + $0xb10] sm:$0xff]
    %v384 = vld [vmem:[%s1 + $0xb18] sm:$0xff]
    %v385 = vld [vmem:[%s1 + $0xb20] sm:$0xff]
    %v386 = vld [vmem:[%s1 + $0xb28] sm:$0xff]
    %v387 = vld [vmem:[%s1 + $0xb30] sm:$0xff]
    %v388 = vld [vmem:[%s1 + $0xb38] sm:$0xff]
    %v389 = vld [vmem:[%s1 + $0xb40] sm:$0xff]
    %v390 = vld [vmem:[%s1 + $0xb48] sm:$0xff]
    %v391 = vld [vmem:[%s1 + $0xb50] sm:$0xff]
    %v392 = vld [vmem:[%s1 + $0xb58] sm:$0xff]
    %v393 = vld [vmem:[%s1 + $0xb60] sm:$0xff]
    %v394 = vld [vmem:[%s1 + $0xb68] sm:$0xff]
    %v395 = vld [vmem:[%s1 + $0xb70] sm:$0xff]
    %v396 = vld [vmem:[%s1 + $0xb78] sm:$0xff]
    %v397 = vld [vmem:[%s1 + $0xb80] sm:$0xff]
    %v398 = vld [vmem:[%s1 + $0xb88] sm:$0xff]
    %v399 = vld [vmem:[%s1 + $0xb90] sm:$0xff]
    %v400 = vld [vmem:[%s1 + $0xb98] sm:$0xff]
    %v401 = vld [vmem:[%s1 + $0xba0] sm:$0xff]
    %v402 = vld [vmem:[%s1 + $0xba8] sm:$0xff]
    %v403 = vld [vmem:[%s1 + $0xbb0] sm:$0xff]
    %v404 = vld [vmem:[%s1 + $0xbb8] sm:$0xff]
    %v405 = vld [vmem:[%s1 + $0xbc0] sm:$0xff]
    %v406 = vld [vmem:[%s1 + $0xbc8] sm:$0xff]
    %v407 = vld [vmem:[%s1 + $0xbd0] sm:$0xff]
    %v408 = vld [vmem:[%s1 + $0xbd8] sm:$0xff]
    %v409 = vld [vmem:[%s1 + $0xbe0] sm:$0xff]
    %v410 = vld [vmem:[%s1 + $0xbe8] sm:$0xff]
    %v411 = vld [vmem:[%s1 + $0xbf0] sm:$0xff]
    %v412 = vld [vmem:[%s1 + $0xbf8] sm:$0xff]
    %v413 = vld [vmem:[%s1 + $0xc00] sm:$0xff]
    %v414 = vld [vmem:[%s1 + $0xc08] sm:$0xff]
    %v415 = vld [vmem:[%s1 + $0xc10] sm:$0xff]
    %v416 = vld [vmem:[%s1 + $0xc18] sm:$0xff]
    %v417 = vld [vmem:[%s1 + $0xc20] sm:$0xff]
    %v418 = vld [vmem:[%s1 + $0xc28] sm:$0xff]
    %v419 = vld [vmem:[%s1 + $0xc30] sm:$0xff]
    %v420 = vld [vmem:[%s1 + $0xc38] sm:$0xff]
    %v421 = vld [vmem:[%s1 + $0xc40] sm:$0xff]
    %v422 = vld [vmem:[%s1 + $0xc48] sm:$0xff]
    %v423 = vld [vmem:[%s1 + $0xc50] sm:$0xff]
    %v424 = vld [vmem:[%s1 + $0xc58] sm:$0xff]
    %v425 = vld [vmem:[%s1 + $0xc60] sm:$0xff]
    %v426 = vld [vmem:[%s1 + $0xc68] sm:$0xff]
    %v427 = vld [vmem:[%s1 + $0xc70] sm:$0xff]
    %v428 = vld [vmem:[%s1 + $0xc78] sm:$0xff]
    %v429 = vld [vmem:[%s1 + $0xc80] sm:$0xff]
    %v430 = vld [vmem:[%s1 + $0xc88] sm:$0xff]
    %v431 = vld [vmem:[%s1 + $0xc90] sm:$0xff]
    %v432 = vld [vmem:[%s1 + $0xc98] sm:$0xff]
    %v433 = vld [vmem:[%s1 + $0xca0] sm:$0xff]
    %v434 = vld [vmem:[%s1 + $0xca8] sm:$0xff]
    %v435 = vld [vmem:[%s1 + $0xcb0] sm:$0xff]
    %v436 = vld [vmem:[%s1 + $0xcb8] sm:$0xff]
    %v437 = vld [vmem:[%s1 + $0xcc0] sm:$0xff]
    %v438 = vld [vmem:[%s1 + $0xcc8] sm:$0xff]
    %v439 = vld [vmem:[%s1 + $0xcd0] sm:$0xff]
    %v440 = vld [vmem:[%s1 + $0xcd8] sm:$0xff]
    %v441 = vld [vmem:[%s1 + $0xce0] sm:$0xff]
    %v442 = vld [vmem:[%s1 + $0xce8] sm:$0xff]
    %v443 = vld [vmem:[%s1 + $0xcf0] sm:$0xff]
    %v444 = vld [vmem:[%s1 + $0xcf8] sm:$0xff]
    %v445 = vld [vmem:[%s1 + $0xd00] sm:$0xff]
    %v446 = vld [vmem:[%s1 + $0xd08] sm:$0xff]
    %v447 = vld [vmem:[%s1 + $0xd10] sm:$0xff]
    %v448 = vld [vmem:[%s1 + $0xd18] sm:$0xff]
    %v449 = vld [vmem:[%s1 + $0xd20] sm:$0xff]
    %v450 = vld [vmem:[%s1 + $0xd28] sm:$0xff]
    %v451 = vld [vmem:[%s1 + $0xd30] sm:$0xff]
    %v452 = vld [vmem:[%s1 + $0xd38] sm:$0xff]
    %v453 = vld [vmem:[%s1 + $0xd40] sm:$0xff]
    %v454 = vld [vmem:[%s1 + $0xd48] sm:$0xff]
    %v455 = vld [vmem:[%s1 + $0xd50] sm:$0xff]
    %v456 = vld [vmem:[%s1 + $0xd58] sm:$0xff]
    %v457 = vld [vmem:[%s1 + $0xd60] sm:$0xff]
    %v458 = vld [vmem:[%s1 + $0xd68] sm:$0xff]
    %v459 = vld [vmem:[%s1 + $0xd70] sm:$0xff]
    %v460 = vld [vmem:[%s1 + $0xd78] sm:$0xff]
    %v461 = vld [vmem:[%s1 + $0xd80] sm:$0xff]
    %v462 = vld [vmem:[%s1 + $0xd88] sm:$0xff]
    %v463 = vld [vmem:[%s1 + $0xd90] sm:$0xff]
    %v464 = vld [vmem:[%s1 + $0xd98] sm:$0xff]
    %v465 = vld [vmem:[%s1 + $0xda0] sm:$0xff]
    %v466 = vld [vmem:[%s1 + $0xda8] sm:$0xff]
    %v467 = vld [vmem:[%s1 + $0xdb0] sm:$0xff]
    %v468 = vld [vmem:[%s1 + $0xdb8] sm:$0xff]
    %v469 = vld [vmem:[%s1 + $0xdc0] sm:$0xff]
    %v470 = vld [vmem:[%s1 + $0xdc8] sm:$0xff]
    %v471 = vld [vmem:[%s1 + $0xdd0] sm:$0xff]
    %v472 = vld [vmem:[%s1 + $0xdd8] sm:$0xff]
    %v473 = vld [vmem:[%s1 + $0xde0] sm:$0xff]
    %v474 = vld [vmem:[%s1 + $0xde8] sm:$0xff]
    %v475 = vld [vmem:[%s1 + $0xdf0] sm:$0xff]
    %v476 = vld [vmem:[%s1 + $0xdf8] sm:$0xff]
    %v477 = vld [vmem:[%s1 + $0xe00] sm:$0xff]
    %v478 = vld [vmem:[%s1 + $0xe08] sm:$0xff]
    %v479 = vld [vmem:[%s1 + $0xe10] sm:$0xff]
    %v480 = vld [vmem:[%s1 + $0xe18] sm:$0xff]
    %v481 = vld [vmem:[%s1 + $0xe20] sm:$0xff]
    %v482 = vld [vmem:[%s1 + $0xe28] sm:$0xff]
    %v483 = vld [vmem:[%s1 + $0xe30] sm:$0xff]
    %v484 = vld [vmem:[%s1 + $0xe38] sm:$0xff]
    %v485 = vld [vmem:[%s1 + $0xe40] sm:$0xff]
    %v486 = vld [vmem:[%s1 + $0xe48] sm:$0xff]
    %v487 = vld [vmem:[%s1 + $0xe50] sm:$0xff]
    %v488 = vld [vmem:[%s1 + $0xe58] sm:$0xff]
    %v489 = vld [vmem:[%s1 + $0xe60] sm:$0xff]
    %v490 = vld [vmem:[%s1 + $0xe68] sm:$0xff]
    %v491 = vld [vmem:[%s1 + $0xe70] sm:$0xff]
    %v492 = vld [vmem:[%s1 + $0xe78] sm:$0xff]
    %v493 = vld [vmem:[%s1 + $0xe80] sm:$0xff]
    %v494 = vld [vmem:[%s1 + $0xe88] sm:$0xff]
    %v495 = vld [vmem:[%s1 + $0xe90] sm:$0xff]
    %v496 = vld [vmem:[%s1 + $0xe98] sm:$0xff]
    %v497 = vld [vmem:[%s1 + $0xea0] sm:$0xff]
    %v498 = vld [vmem:[%s1 + $0xea8] sm:$0xff]
    %v499 = vld [vmem:[%s1 + $0xeb0] sm:$0xff]
    %v500 = vld [vmem:[%s1 + $0xeb8] sm:$0xff]
    %v501 = vld [vmem:[%s1 + $0xec0] sm:$0xff]
    %v502 = vld [vmem:[%s1 + $0xec8] sm:$0xff]
    %v503 = vld [vmem:[%s1 + $0xed0] sm:$0xff]
    %v504 = vld [vmem:[%s1 + $0xed8] sm:$0xff]
    %v505 = vld [vmem:[%s1 + $0xee0] sm:$0xff]
    %v506 = vld [vmem:[%s1 + $0xee8] sm:$0xff]
    %v507 = vld [vmem:[%s1 + $0xef0] sm:$0xff]
    %v508 = vld [vmem:[%s1 + $0xef8] sm:$0xff]
    %v509 = vld [vmem:[%s1 + $0xf00] sm:$0xff]
    %v510 = vld [vmem:[%s1 + $0xf08] sm:$0xff]
    %v511 = vld [vmem:[%s1 + $0xf10] sm:$0xff]
    %v512 = vld [vmem:[%s1 + $0xf18] sm:$0xff]
    %v513 = vld [vmem:[%s1 + $0xf20] sm:$0xff]
    %v514 = vld [vmem:[%s1 + $0xf28] sm:$0xff]
    %v515 = vld [vmem:[%s1 + $0xf30] sm:$0xff]
    %v516 = vld [vmem:[%s1 + $0xf38] sm:$0xff]
    %v517 = vld [vmem:[%s1 + $0xf40] sm:$0xff]
    %v518 = vld [vmem:[%s1 + $0xf48] sm:$0xff]
    %v519 = vld [vmem:[%s1 + $0xf50] sm:$0xff]
    %v520 = vld [vmem:[%s1 + $0xf58] sm:$0xff]
    %v521 = vld [vmem:[%s1 + $0xf60] sm:$0xff]
    %v522 = vld [vmem:[%s1 + $0xf68] sm:$0xff]
    %v523 = vld [vmem:[%s1 + $0xf70] sm:$0xff]
    %v524 = vld [vmem:[%s1 + $0xf78] sm:$0xff]
    %v525 = vld [vmem:[%s1 + $0xf80] sm:$0xff]
    %v526 = vld [vmem:[%s1 + $0xf88] sm:$0xff]
    %v527 = vld [vmem:[%s1 + $0xf90] sm:$0xff]
    %v528 = vld [vmem:[%s1 + $0xf98] sm:$0xff]
    %v529 = vld [vmem:[%s1 + $0xfa0] sm:$0xff]
    %v530 = vld [vmem:[%s1 + $0xfa8] sm:$0xff]
    %v531 = vld [vmem:[%s1 + $0xfb0] sm:$0xff]
    %v532 = vld [vmem:[%s1 + $0xfb8] sm:$0xff]
    %v533 = vld [vmem:[%s1 + $0xfc0] sm:$0xff]
    %v534 = vld [vmem:[%s1 + $0xfc8] sm:$0xff]
    %v535 = vld [vmem:[%s1 + $0xfd0] sm:$0xff]
    %v536 = vld [vmem:[%s1 + $0xfd8] sm:$0xff]
    %v537 = vld [vmem:[%s1 + $0xfe0] sm:$0xff]
    %v538 = vld [vmem:[%s1 + $0xfe8] sm:$0xff]
    %v539 = vld [vmem:[%s1 + $0xff0] sm:$0xff]
    %v540 = vld [vmem:[%s1 + $0xff8] sm:$0xff]
    %v541 = vld [vmem:[%s1 + $0x1000] sm:$0xff]
    %v542 = vld [vmem:[%s1 + $0x1008] sm:$0xff]
    %v543 = vld [vmem:[%s1 + $0x1010] sm:$0xff]
    %v544 = vld [vmem:[%s1 + $0x1018] sm:$0xff]
    %v545 = vld [vmem:[%s1 + $0x1020] sm:$0xff]
    %v546 = vld [vmem:[%s1 + $0x1028] sm:$0xff]
    %v547 = vld [vmem:[%s1 + $0x1030] sm:$0xff]
    %v548 = vld [vmem:[%s1 + $0x1038] sm:$0xff]
    %v549 = vld [vmem:[%s1 + $0x1040] sm:$0xff]
    %v550 = vld [vmem:[%s1 + $0x1048] sm:$0xff]
    %v551 = vld [vmem:[%s1 + $0x1050] sm:$0xff]
    %v552 = vld [vmem:[%s1 + $0x1058] sm:$0xff]
    %v553 = vld [vmem:[%s1 + $0x1060] sm:$0xff]
    %v554 = vld [vmem:[%s1 + $0x1068] sm:$0xff]
    %v555 = vld [vmem:[%s1 + $0x1070] sm:$0xff]
    %v556 = vld [vmem:[%s1 + $0x1078] sm:$0xff]
    %v557 = vld [vmem:[%s1 + $0x1080] sm:$0xff]
    %v558 = vld [vmem:[%s1 + $0x1088] sm:$0xff]
    %v559 = vld [vmem:[%s1 + $0x1090] sm:$0xff]
    %v560 = vld [vmem:[%s1 + $0x1098] sm:$0xff]
    %v561 = vld [vmem:[%s1 + $0x10a0] sm:$0xff]
    %v562 = vld [vmem:[%s1 + $0x10a8] sm:$0xff]
    %v563 = vld [vmem:[%s1 + $0x10b0] sm:$0xff]
    %v564 = vld [vmem:[%s1 + $0x10b8] sm:$0xff]
    %v565 = vld [vmem:[%s1 + $0x10c0] sm:$0xff]
    %v566 = vld [vmem:[%s1 + $0x10c8] sm:$0xff]
    %v567 = vld [vmem:[%s1 + $0x10d0] sm:$0xff]
    %v568 = vld [vmem:[%s1 + $0x10d8] sm:$0xff]
    %v569 = vld [vmem:[%s1 + $0x10e0] sm:$0xff]
    %v570 = vld [vmem:[%s1 + $0x10e8] sm:$0xff]
    %v571 = vld [vmem:[%s1 + $0x10f0] sm:$0xff]
    %v572 = vld [vmem:[%s1 + $0x10f8] sm:$0xff]
    %v573 = vld [vmem:[%s1 + $0x1100] sm:$0xff]
    %v574 = vld [vmem:[%s1 + $0x1108] sm:$0xff]
    %v575 = vld [vmem:[%s1 + $0x1110] sm:$0xff]
    %v576 = vld [vmem:[%s1 + $0x1118] sm:$0xff]
    %v577 = vld [vmem:[%s1 + $0x1120] sm:$0xff]
    %v578 = vld [vmem:[%s1 + $0x1128] sm:$0xff]
    %v579 = vld [vmem:[%s1 + $0x1130] sm:$0xff]
    %v580 = vld [vmem:[%s1 + $0x1138] sm:$0xff]
    %v581 = vld [vmem:[%s1 + $0x1140] sm:$0xff]
    %v582 = vld [vmem:[%s1 + $0x1148] sm:$0xff]
    %v583 = vld [vmem:[%s1 + $0x1150] sm:$0xff]
    %v584 = vld [vmem:[%s1 + $0x1158] sm:$0xff]
    %v585 = vld [vmem:[%s1 + $0x1160] sm:$0xff]
    %v586 = vld [vmem:[%s1 + $0x1168] sm:$0xff]
    %v587 = vld [vmem:[%s1 + $0x1170] sm:$0xff]
    %v588 = vld [vmem:[%s1 + $0x1178] sm:$0xff]
    %v589 = vld [vmem:[%s1 + $0x1180] sm:$0xff]
    %v590 = vld [vmem:[%s1 + $0x1188] sm:$0xff]
    %v591 = vld [vmem:[%s1 + $0x1190] sm:$0xff]
    %v592 = vld [vmem:[%s1 + $0x1198] sm:$0xff]
    %v593 = vld [vmem:[%s1 + $0x11a0] sm:$0xff]
    %v594 = vld [vmem:[%s1 + $0x11a8] sm:$0xff]
    %v595 = vld [vmem:[%s1 + $0x11b0] sm:$0xff]
    %v596 = vld [vmem:[%s1 + $0x11b8] sm:$0xff]
    %v597 = vld [vmem:[%s1 + $0x11c0] sm:$0xff]
    %v598 = vld [vmem:[%s1 + $0x11c8] sm:$0xff]
    %v599 = vld [vmem:[%s1 + $0x11d0] sm:$0xff]
    %v600 = vld [vmem:[%s1 + $0x11d8] sm:$0xff]
    %v601 = vld [vmem:[%s1 + $0x11e0] sm:$0xff]
    %v602 = vld [vmem:[%s1 + $0x11e8] sm:$0xff]
    %v603 = vld [vmem:[%s1 + $0x11f0] sm:$0xff]
    %v604 = vld [vmem:[%s1 + $0x11f8] sm:$0xff]
    %v605 = vld [vmem:[%s1 + $0x1200] sm:$0xff]
    %v606 = vld [vmem:[%s1 + $0x1208] sm:$0xff]
    %v607 = vld [vmem:[%s1 + $0x1210] sm:$0xff]
    %v608 = vld [vmem:[%s1 + $0x1218] sm:$0xff]
    %v609 = vld [vmem:[%s1 + $0x1220] sm:$0xff]
    %v610 = vld [vmem:[%s1 + $0x1228] sm:$0xff]
    %v611 = vld [vmem:[%s1 + $0x1230] sm:$0xff]
    %v612 = vld [vmem:[%s1 + $0x1238] sm:$0xff]
    %v613 = vld [vmem:[%s1 + $0x1240] sm:$0xff]
    %v614 = vld [vmem:[%s1 + $0x1248] sm:$0xff]
    %v615 = vld [vmem:[%s1 + $0x1250] sm:$0xff]
    %v616 = vld [vmem:[%s1 + $0x1258] sm:$0xff]
    %v617 = vld [vmem:[%s1 + $0x1260] sm:$0xff]
    %v618 = vld [vmem:[%s1 + $0x1268] sm:$0xff]
    %v619 = vld [vmem:[%s1 + $0x1270] sm:$0xff]
    %v620 = vld [vmem:[%s1 + $0x1278] sm:$0xff]
    %v621 = vld [vmem:[%s1 + $0x1280] sm:$0xff]
    %v622 = vld [vmem:[%s1 + $0x1288] sm:$0xff]
    %v623 = vld [vmem:[%s1 + $0x1290] sm:$0xff]
    %v624 = vld [vmem:[%s1 + $0x1298] sm:$0xff]
    %v625 = vld [vmem:[%s1 + $0x12a0] sm:$0xff]
    %v626 = vld [vmem:[%s1 + $0x12a8] sm:$0xff]
    %v627 = vld [vmem:[%s1 + $0x12b0] sm:$0xff]
    %v628 = vld [vmem:[%s1 + $0x12b8] sm:$0xff]
    %v629 = vld [vmem:[%s1 + $0x12c0] sm:$0xff]
    %v630 = vld [vmem:[%s1 + $0x12c8] sm:$0xff]
    %v631 = vld [vmem:[%s1 + $0x12d0] sm:$0xff]
    %v632 = vld [vmem:[%s1 + $0x12d8] sm:$0xff]
    %v633 = vld [vmem:[%s1 + $0x12e0] sm:$0xff]
    %v634 = vld [vmem:[%s1 + $0x12e8] sm:$0xff]
    %v635 = vld [vmem:[%s1 + $0x12f0] sm:$0xff]
    %v636 = vld [vmem:[%s1 + $0x12f8] sm:$0xff]
    %v637 = vld [vmem:[%s1 + $0x1300] sm:$0xff]
    %v638 = vld [vmem:[%s1 + $0x1308] sm:$0xff]
    %v639 = vld [vmem:[%s1 + $0x1310] sm:$0xff]
    %v640 = vld [vmem:[%s1 + $0x1318] sm:$0xff]
    %v641 = vld [vmem:[%s1 + $0x1320] sm:$0xff]
    %v642 = vld [vmem:[%s1 + $0x1328] sm:$0xff]
    %v643 = vld [vmem:[%s1 + $0x1330] sm:$0xff]
    %v644 = vld [vmem:[%s1 + $0x1338] sm:$0xff]
    %v645 = vld [vmem:[%s1 + $0x1340] sm:$0xff]
    %v646 = vld [vmem:[%s1 + $0x1348] sm:$0xff]
    %v647 = vld [vmem:[%s1 + $0x1350] sm:$0xff]
    %v648 = vld [vmem:[%s1 + $0x1358] sm:$0xff]
    %v649 = vld [vmem:[%s1 + $0x1360] sm:$0xff]
    %v650 = vld [vmem:[%s1 + $0x1368] sm:$0xff]
    %v651 = vld [vmem:[%s1 + $0x1370] sm:$0xff]
    %v652 = vld [vmem:[%s1 + $0x1378] sm:$0xff]
    %v653 = vld [vmem:[%s1 + $0x1380] sm:$0xff]
    %v654 = vld [vmem:[%s1 + $0x1388] sm:$0xff]
    %v655 = vld [vmem:[%s1 + $0x1390] sm:$0xff]
    %v656 = vld [vmem:[%s1 + $0x1398] sm:$0xff]
    %v657 = vld [vmem:[%s1 + $0x13a0] sm:$0xff]
    %v658 = vld [vmem:[%s1 + $0x13a8] sm:$0xff]
    %v659 = vld [vmem:[%s1 + $0x13b0] sm:$0xff]
    %v660 = vld [vmem:[%s1 + $0x13b8] sm:$0xff]
    %v661 = vld [vmem:[%s1 + $0x13c0] sm:$0xff]
    %v662 = vld [vmem:[%s1 + $0x13c8] sm:$0xff]
    %v663 = vld [vmem:[%s1 + $0x13d0] sm:$0xff]
    %v664 = vld [vmem:[%s1 + $0x13d8] sm:$0xff]
    %v665 = vld [vmem:[%s1 + $0x13e0] sm:$0xff]
    %v666 = vld [vmem:[%s1 + $0x13e8] sm:$0xff]
    %v667 = vld [vmem:[%s1 + $0x13f0] sm:$0xff]
    %v668 = vld [vmem:[%s1 + $0x13f8] sm:$0xff]
    %v669 = vld [vmem:[%s1 + $0x1400] sm:$0xff]
    %v670 = vld [vmem:[%s1 + $0x1408] sm:$0xff]
    %v671 = vld [vmem:[%s1 + $0x1410] sm:$0xff]
    %v672 = vld [vmem:[%s1 + $0x1418] sm:$0xff]
    %v673 = vld [vmem:[%s1 + $0x1420] sm:$0xff]
    %v674 = vld [vmem:[%s1 + $0x1428] sm:$0xff]
    %v675 = vld [vmem:[%s1 + $0x1430] sm:$0xff]
    %v676 = vld [vmem:[%s1 + $0x1438] sm:$0xff]
    %v677 = vld [vmem:[%s1 + $0x1440] sm:$0xff]
    %v678 = vld [vmem:[%s1 + $0x1448] sm:$0xff]
    %v679 = vld [vmem:[%s1 + $0x1450] sm:$0xff]
    %v680 = vld [vmem:[%s1 + $0x1458] sm:$0xff]
    %v681 = vld [vmem:[%s1 + $0x1460] sm:$0xff]
    %v682 = vld [vmem:[%s1 + $0x1468] sm:$0xff]
    %v683 = vld [vmem:[%s1 + $0x1470] sm:$0xff]
    %v684 = vld [vmem:[%s1 + $0x1478] sm:$0xff]
    %v685 = vld [vmem:[%s1 + $0x1480] sm:$0xff]
    %v686 = vld [vmem:[%s1 + $0x1488] sm:$0xff]
    %v687 = vld [vmem:[%s1 + $0x1490] sm:$0xff]
    %v688 = vld [vmem:[%s1 + $0x1498] sm:$0xff]
    %v689 = vld [vmem:[%s1 + $0x14a0] sm:$0xff]
    %v690 = vld [vmem:[%s1 + $0x14a8] sm:$0xff]
    %v691 = vld [vmem:[%s1 + $0x14b0] sm:$0xff]
    %v692 = vld [vmem:[%s1 + $0x14b8] sm:$0xff]
    %v693 = vld [vmem:[%s1 + $0x14c0] sm:$0xff]
    %v694 = vld [vmem:[%s1 + $0x14c8] sm:$0xff]
    %v695 = vld [vmem:[%s1 + $0x14d0] sm:$0xff]
    %v696 = vld [vmem:[%s1 + $0x14d8] sm:$0xff]
    %v697 = vld [vmem:[%s1 + $0x14e0] sm:$0xff]
    %v698 = vld [vmem:[%s1 + $0x14e8] sm:$0xff]
    %v699 = vld [vmem:[%s1 + $0x14f0] sm:$0xff]
    %v700 = vld [vmem:[%s1 + $0x14f8] sm:$0xff]
    %v701 = vld [vmem:[%s1 + $0x1500] sm:$0xff]
    %v702 = vld [vmem:[%s1 + $0x1508] sm:$0xff]
    %v703 = vld [vmem:[%s1 + $0x1510] sm:$0xff]
    %v704 = vld [vmem:[%s1 + $0x1518] sm:$0xff]
    %v705 = vld [vmem:[%s1 + $0x1520] sm:$0xff]
    %v706 = vld [vmem:[%s1 + $0x1528] sm:$0xff]
    %v707 = vld [vmem:[%s1 + $0x1530] sm:$0xff]
    %v708 = vld [vmem:[%s1 + $0x1538] sm:$0xff]
    %v709 = vld [vmem:[%s1 + $0x1540] sm:$0xff]
    %v710 = vld [vmem:[%s1 + $0x1548] sm:$0xff]
    %v711 = vld [vmem:[%s1 + $0x1550] sm:$0xff]
    %v712 = vld [vmem:[%s1 + $0x1558] sm:$0xff]
    %v713 = vld [vmem:[%s1 + $0x1560] sm:$0xff]
    %v714 = vld [vmem:[%s1 + $0x1568] sm:$0xff]
    %v715 = vld [vmem:[%s1 + $0x1570] sm:$0xff]
    %v716 = vld [vmem:[%s1 + $0x1578] sm:$0xff]
    %v717 = vld [vmem:[%s1 + $0x1580] sm:$0xff]
    %v718 = vld [vmem:[%s1 + $0x1588] sm:$0xff]
    %v719 = vld [vmem:[%s1 + $0x1590] sm:$0xff]
    %v720 = vld [vmem:[%s1 + $0x1598] sm:$0xff]
    %v721 = vld [vmem:[%s1 + $0x15a0] sm:$0xff]
    %v722 = vld [vmem:[%s1 + $0x15a8] sm:$0xff]
    %v723 = vld [vmem:[%s1 + $0x15b0] sm:$0xff]
    %v724 = vld [vmem:[%s1 + $0x15b8] sm:$0xff]
    %v725 = vld [vmem:[%s1 + $0x15c0] sm:$0xff]
    %v726 = vld [vmem:[%s1 + $0x15c8] sm:$0xff]
    %v727 = vld [vmem:[%s1 + $0x15d0] sm:$0xff]
    %v728 = vld [vmem:[%s1 + $0x15d8] sm:$0xff]
    %v729 = vld [vmem:[%s1 + $0x15e0] sm:$0xff]
    %v730 = vld [vmem:[%s1 + $0x15e8] sm:$0xff]
    %v731 = vld [vmem:[%s1 + $0x15f0] sm:$0xff]
    %v732 = vld [vmem:[%s1 + $0x15f8] sm:$0xff]
    %v733 = vld [vmem:[%s1 + $0x1600] sm:$0xff]
    %v734 = vld [vmem:[%s1 + $0x1608] sm:$0xff]
    %v735 = vld [vmem:[%s1 + $0x1610] sm:$0xff]
    %v736 = vld [vmem:[%s1 + $0x1618] sm:$0xff]
    %v737 = vld [vmem:[%s1 + $0x1620] sm:$0xff]
    %v738 = vld [vmem:[%s1 + $0x1628] sm:$0xff]
    %v739 = vld [vmem:[%s1 + $0x1630] sm:$0xff]
    %v740 = vld [vmem:[%s1 + $0x1638] sm:$0xff]
    %v741 = vld [vmem:[%s1 + $0x1640] sm:$0xff]
    %v742 = vld [vmem:[%s1 + $0x1648] sm:$0xff]
    %v743 = vld [vmem:[%s1 + $0x1650] sm:$0xff]
    %v744 = vld [vmem:[%s1 + $0x1658] sm:$0xff]
    %v745 = vld [vmem:[%s1 + $0x1660] sm:$0xff]
    %v746 = vld [vmem:[%s1 + $0x1668] sm:$0xff]
    %v747 = vld [vmem:[%s1 + $0x1670] sm:$0xff]
    %v748 = vld [vmem:[%s1 + $0x1678] sm:$0xff]
    %v749 = vld [vmem:[%s1 + $0x1680] sm:$0xff]
    %v750 = vld [vmem:[%s1 + $0x1688] sm:$0xff]
    %v751 = vld [vmem:[%s1 + $0x1690] sm:$0xff]
    %v752 = vld [vmem:[%s1 + $0x1698] sm:$0xff]
    %v753 = vld [vmem:[%s1 + $0x16a0] sm:$0xff]
    %v754 = vld [vmem:[%s1 + $0x16a8] sm:$0xff]
    %v755 = vld [vmem:[%s1 + $0x16b0] sm:$0xff]
    %v756 = vld [vmem:[%s1 + $0x16b8] sm:$0xff]
    %v757 = vld [vmem:[%s1 + $0x16c0] sm:$0xff]
    %v758 = vld [vmem:[%s1 + $0x16c8] sm:$0xff]
    %v759 = vld [vmem:[%s1 + $0x16d0] sm:$0xff]
    %v760 = vld [vmem:[%s1 + $0x16d8] sm:$0xff]
    %v761 = vld [vmem:[%s1 + $0x16e0] sm:$0xff]
    %v762 = vld [vmem:[%s1 + $0x16e8] sm:$0xff]
    %v763 = vld [vmem:[%s1 + $0x16f0] sm:$0xff]
    %v764 = vld [vmem:[%s1 + $0x16f8] sm:$0xff]
    %v765 = vld [vmem:[%s1 + $0x1700] sm:$0xff]
    %v766 = vld [vmem:[%s1 + $0x1708] sm:$0xff]
    %v767 = vld [vmem:[%s1 + $0x1710] sm:$0xff]
    %v768 = vld [vmem:[%s1 + $0x1718] sm:$0xff]
    %v769 = vld [vmem:[%s1 + $0x1720] sm:$0xff]
    %v770 = vld [vmem:[%s1 + $0x1728] sm:$0xff]
    %v771 = vld [vmem:[%s1 + $0x1730] sm:$0xff]
    %v772 = vld [vmem:[%s1 + $0x1738] sm:$0xff]
    %v773 = vld [vmem:[%s1 + $0x1740] sm:$0xff]
    %v774 = vld [vmem:[%s1 + $0x1748] sm:$0xff]
    %v775 = vld [vmem:[%s1 + $0x1750] sm:$0xff]
    %v776 = vld [vmem:[%s1 + $0x1758] sm:$0xff]
    %v777 = vld [vmem:[%s1 + $0x1760] sm:$0xff]
    %v778 = vld [vmem:[%s1 + $0x1768] sm:$0xff]
    %v779 = vld [vmem:[%s1 + $0x1770] sm:$0xff]
    %v780 = vld [vmem:[%s1 + $0x1778] sm:$0xff]
    %v781 = vld [vmem:[%s1 + $0x1780] sm:$0xff]
    %v782 = vld [vmem:[%s1 + $0x1788] sm:$0xff]
    %v783 = vld [vmem:[%s1 + $0x1790] sm:$0xff]
    %v784 = vld [vmem:[%s1 + $0x1798] sm:$0xff]
    %v785 = vld [vmem:[%s1 + $0x17a0] sm:$0xff]
    %v786 = vld [vmem:[%s1 + $0x17a8] sm:$0xff]
    %v787 = vld [vmem:[%s1 + $0x17b0] sm:$0xff]
    %v788 = vld [vmem:[%s1 + $0x17b8] sm:$0xff]
    %v789 = vld [vmem:[%s1 + $0x17c0] sm:$0xff]
    %v790 = vld [vmem:[%s1 + $0x17c8] sm:$0xff]
    %v791 = vld [vmem:[%s1 + $0x17d0] sm:$0xff]
    %v792 = vld [vmem:[%s1 + $0x17d8] sm:$0xff]
    %v793 = vld [vmem:[%s1 + $0x17e0] sm:$0xff]
    %v794 = vld [vmem:[%s1 + $0x17e8] sm:$0xff]
    %v795 = vld [vmem:[%s1 + $0x17f0] sm:$0xff]
    %v796 = vld [vmem:[%s1 + $0x17f8] sm:$0xff]
    %v797 = vld [vmem:[%s1 + $0x1800] sm:$0xff]
    %v798 = vld [vmem:[%s1 + $0x1808] sm:$0xff]
    %v799 = vld [vmem:[%s1 + $0x1810] sm:$0xff]
    %v800 = vld [vmem:[%s1 + $0x1818] sm:$0xff]
    %v801 = vld [vmem:[%s1 + $0x1820] sm:$0xff]
    %v802 = vld [vmem:[%s1 + $0x1828] sm:$0xff]
    %v803 = vld [vmem:[%s1 + $0x1830] sm:$0xff]
    %v804 = vld [vmem:[%s1 + $0x1838] sm:$0xff]
    %v805 = vld [vmem:[%s1 + $0x1840] sm:$0xff]
    %v806 = vld [vmem:[%s1 + $0x1848] sm:$0xff]
    %v807 = vld [vmem:[%s1 + $0x1850] sm:$0xff]
    %v808 = vld [vmem:[%s1 + $0x1858] sm:$0xff]
    %v809 = vld [vmem:[%s1 + $0x1860] sm:$0xff]
    %v810 = vld [vmem:[%s1 + $0x1868] sm:$0xff]
    %v811 = vld [vmem:[%s1 + $0x1870] sm:$0xff]
    %v812 = vld [vmem:[%s1 + $0x1878] sm:$0xff]
    %v813 = vld [vmem:[%s1 + $0x1880] sm:$0xff]
    %v814 = vld [vmem:[%s1 + $0x1888] sm:$0xff]
    %v815 = vld [vmem:[%s1 + $0x1890] sm:$0xff]
    %v816 = vld [vmem:[%s1 + $0x1898] sm:$0xff]
    %v817 = vld [vmem:[%s1 + $0x18a0] sm:$0xff]
    %v818 = vld [vmem:[%s1 + $0x18a8] sm:$0xff]
    %v819 = vld [vmem:[%s1 + $0x18b0] sm:$0xff]
    %v820 = vld [vmem:[%s1 + $0x18b8] sm:$0xff]
    %v821 = vld [vmem:[%s1 + $0x18c0] sm:$0xff]
    %v822 = vld [vmem:[%s1 + $0x18c8] sm:$0xff]
    %v823 = vld [vmem:[%s1 + $0x18d0] sm:$0xff]
    %v824 = vld [vmem:[%s1 + $0x18d8] sm:$0xff]
    %v825 = vld [vmem:[%s1 + $0x18e0] sm:$0xff]
    %v826 = vld [vmem:[%s1 + $0x18e8] sm:$0xff]
    %v827 = vld [vmem:[%s1 + $0x18f0] sm:$0xff]
    %v828 = vld [vmem:[%s1 + $0x18f8] sm:$0xff]
    %v829 = vld [vmem:[%s1 + $0x1900] sm:$0xff]
    %v830 = vld [vmem:[%s1 + $0x1908] sm:$0xff]
    %v831 = vld [vmem:[%s1 + $0x1910] sm:$0xff]
    %v832 = vld [vmem:[%s1 + $0x1918] sm:$0xff]
    %v833 = vld [vmem:[%s1 + $0x1920] sm:$0xff]
    %v834 = vld [vmem:[%s1 + $0x1928] sm:$0xff]
    %v835 = vld [vmem:[%s1 + $0x1930] sm:$0xff]
    %v836 = vld [vmem:[%s1 + $0x1938] sm:$0xff]
    %v837 = vld [vmem:[%s1 + $0x1940] sm:$0xff]
    %v838 = vld [vmem:[%s1 + $0x1948] sm:$0xff]
    %v839 = vld [vmem:[%s1 + $0x1950] sm:$0xff]
    %v840 = vld [vmem:[%s1 + $0x1958] sm:$0xff]
    %v841 = vld [vmem:[%s1 + $0x1960] sm:$0xff]
    %v842 = vld [vmem:[%s1 + $0x1968] sm:$0xff]
    %v843 = vld [vmem:[%s1 + $0x1970] sm:$0xff]
    %v844 = vld [vmem:[%s1 + $0x1978] sm:$0xff]
    %v845 = vld [vmem:[%s1 + $0x1980] sm:$0xff]
    %v846 = vld [vmem:[%s1 + $0x1988] sm:$0xff]
    %v847 = vld [vmem:[%s1 + $0x1990] sm:$0xff]
    %v848 = vld [vmem:[%s1 + $0x1998] sm:$0xff]
    %v849 = vld [vmem:[%s1 + $0x19a0] sm:$0xff]
    %v850 = vld [vmem:[%s1 + $0x19a8] sm:$0xff]
    %v851 = vld [vmem:[%s1 + $0x19b0] sm:$0xff]
    %v852 = vld [vmem:[%s1 + $0x19b8] sm:$0xff]
    %v853 = vld [vmem:[%s1 + $0x19c0] sm:$0xff]
    %v854 = vld [vmem:[%s1 + $0x19c8] sm:$0xff]
    %v855 = vld [vmem:[%s1 + $0x19d0] sm:$0xff]
    %v856 = vld [vmem:[%s1 + $0x19d8] sm:$0xff]
    %v857 = vld [vmem:[%s1 + $0x19e0] sm:$0xff]
    %v858 = vld [vmem:[%s1 + $0x19e8] sm:$0xff]
    %v859 = vld [vmem:[%s1 + $0x19f0] sm:$0xff]
    %v860 = vld [vmem:[%s1 + $0x19f8] sm:$0xff]
    %v861 = vld [vmem:[%s1 + $0x1a00] sm:$0xff]
    %v862 = vld [vmem:[%s1 + $0x1a08] sm:$0xff]
    %v863 = vld [vmem:[%s1 + $0x1a10] sm:$0xff]
    %v864 = vld [vmem:[%s1 + $0x1a18] sm:$0xff]
    %v865 = vld [vmem:[%s1 + $0x1a20] sm:$0xff]
    %v866 = vld [vmem:[%s1 + $0x1a28] sm:$0xff]
    %v867 = vld [vmem:[%s1 + $0x1a30] sm:$0xff]
    %v868 = vld [vmem:[%s1 + $0x1a38] sm:$0xff]
    %v869 = vld [vmem:[%s1 + $0x1a40] sm:$0xff]
    %v870 = vld [vmem:[%s1 + $0x1a48] sm:$0xff]
    %v871 = vld [vmem:[%s1 + $0x1a50] sm:$0xff]
    %v872 = vld [vmem:[%s1 + $0x1a58] sm:$0xff]
    %v873 = vld [vmem:[%s1 + $0x1a60] sm:$0xff]
    %v874 = vld [vmem:[%s1 + $0x1a68] sm:$0xff]
    %v875 = vld [vmem:[%s1 + $0x1a70] sm:$0xff]
    %v876 = vld [vmem:[%s1 + $0x1a78] sm:$0xff]
    %v877 = vld [vmem:[%s1 + $0x1a80] sm:$0xff]
    %v878 = vld [vmem:[%s1 + $0x1a88] sm:$0xff]
    %v879 = vld [vmem:[%s1 + $0x1a90] sm:$0xff]
    %v880 = vld [vmem:[%s1 + $0x1a98] sm:$0xff]
    %v881 = vld [vmem:[%s1 + $0x1aa0] sm:$0xff]
    %v882 = vld [vmem:[%s1 + $0x1aa8] sm:$0xff]
    %v883 = vld [vmem:[%s1 + $0x1ab0] sm:$0xff]
    %v884 = vld [vmem:[%s1 + $0x1ab8] sm:$0xff]
    %v885 = vld [vmem:[%s1 + $0x1ac0] sm:$0xff]
    %v886 = vld [vmem:[%s1 + $0x1ac8] sm:$0xff]
    %v887 = vld [vmem:[%s1 + $0x1ad0] sm:$0xff]
    %v888 = vld [vmem:[%s1 + $0x1ad8] sm:$0xff]
    %v889 = vld [vmem:[%s1 + $0x1ae0] sm:$0xff]
    %v890 = vld [vmem:[%s1 + $0x1ae8] sm:$0xff]
    %v891 = vld [vmem:[%s1 + $0x1af0] sm:$0xff]
    %v892 = vld [vmem:[%s1 + $0x1af8] sm:$0xff]
    %v893 = vld [vmem:[%s1 + $0x1b00] sm:$0xff]
    %v894 = vld [vmem:[%s1 + $0x1b08] sm:$0xff]
    %v895 = vld [vmem:[%s1 + $0x1b10] sm:$0xff]
    %v896 = vld [vmem:[%s1 + $0x1b18] sm:$0xff]
    %v897 = vld [vmem:[%s1 + $0x1b20] sm:$0xff]
    %v898 = vld [vmem:[%s1 + $0x1b28] sm:$0xff]
    %v899 = vld [vmem:[%s1 + $0x1b30] sm:$0xff]
    %v900 = vld [vmem:[%s1 + $0x1b38] sm:$0xff]
    %v901 = vld [vmem:[%s1 + $0x1b40] sm:$0xff]
    %v902 = vld [vmem:[%s1 + $0x1b48] sm:$0xff]
    %v903 = vld [vmem:[%s1 + $0x1b50] sm:$0xff]
    %v904 = vld [vmem:[%s1 + $0x1b58] sm:$0xff]
    %v905 = vld [vmem:[%s1 + $0x1b60] sm:$0xff]
    %v906 = vld [vmem:[%s1 + $0x1b68] sm:$0xff]
    %v907 = vld [vmem:[%s1 + $0x1b70] sm:$0xff]
    %v908 = vld [vmem:[%s1 + $0x1b78] sm:$0xff]
    %v909 = vld [vmem:[%s1 + $0x1b80] sm:$0xff]
    %v910 = vld [vmem:[%s1 + $0x1b88] sm:$0xff]
    %v911 = vld [vmem:[%s1 + $0x1b90] sm:$0xff]
    %v912 = vld [vmem:[%s1 + $0x1b98] sm:$0xff]
    %v913 = vld [vmem:[%s1 + $0x1ba0] sm:$0xff]
    %v914 = vld [vmem:[%s1 + $0x1ba8] sm:$0xff]
    %v915 = vld [vmem:[%s1 + $0x1bb0] sm:$0xff]
    %v916 = vld [vmem:[%s1 + $0x1bb8] sm:$0xff]
    %v917 = vld [vmem:[%s1 + $0x1bc0] sm:$0xff]
    %v918 = vld [vmem:[%s1 + $0x1bc8] sm:$0xff]
    %v919 = vld [vmem:[%s1 + $0x1bd0] sm:$0xff]
    %v920 = vld [vmem:[%s1 + $0x1bd8] sm:$0xff]
    %v921 = vld [vmem:[%s1 + $0x1be0] sm:$0xff]
    %v922 = vld [vmem:[%s1 + $0x1be8] sm:$0xff]
    %v923 = vld [vmem:[%s1 + $0x1bf0] sm:$0xff]
    %v924 = vld [vmem:[%s1 + $0x1bf8] sm:$0xff]
    %v925 = vld [vmem:[%s1 + $0x1c00] sm:$0xff]
    %v926 = vld [vmem:[%s1 + $0x1c08] sm:$0xff]
    %v927 = vld [vmem:[%s1 + $0x1c10] sm:$0xff]
    %v928 = vld [vmem:[%s1 + $0x1c18] sm:$0xff]
    %v929 = vld [vmem:[%s1 + $0x1c20] sm:$0xff]
    %v930 = vld [vmem:[%s1 + $0x1c28] sm:$0xff]
    %v931 = vld [vmem:[%s1 + $0x1c30] sm:$0xff]
    %v932 = vld [vmem:[%s1 + $0x1c38] sm:$0xff]
    %v933 = vld [vmem:[%s1 + $0x1c40] sm:$0xff]
    %v934 = vld [vmem:[%s1 + $0x1c48] sm:$0xff]
    %v935 = vld [vmem:[%s1 + $0x1c50] sm:$0xff]
    %v936 = vld [vmem:[%s1 + $0x1c58] sm:$0xff]
    %v937 = vld [vmem:[%s1 + $0x1c60] sm:$0xff]
    %v938 = vld [vmem:[%s1 + $0x1c68] sm:$0xff]
    %v939 = vld [vmem:[%s1 + $0x1c70] sm:$0xff]
    %v940 = vld [vmem:[%s1 + $0x1c78] sm:$0xff]
    %v941 = vld [vmem:[%s1 + $0x1c80] sm:$0xff]
    %v942 = vld [vmem:[%s1 + $0x1c88] sm:$0xff]
    %v943 = vld [vmem:[%s1 + $0x1c90] sm:$0xff]
    %v944 = vld [vmem:[%s1 + $0x1c98] sm:$0xff]
    %v945 = vld [vmem:[%s1 + $0x1ca0] sm:$0xff]
    %v946 = vld [vmem:[%s1 + $0x1ca8] sm:$0xff]
    %v947 = vld [vmem:[%s1 + $0x1cb0] sm:$0xff]
    %v948 = vld [vmem:[%s1 + $0x1cb8] sm:$0xff]
    %v949 = vld [vmem:[%s1 + $0x1cc0] sm:$0xff]
    %v950 = vld [vmem:[%s1 + $0x1cc8] sm:$0xff]
    %v951 = vld [vmem:[%s1 + $0x1cd0] sm:$0xff]
    %v952 = vld [vmem:[%s1 + $0x1cd8] sm:$0xff]
    %v953 = vld [vmem:[%s1 + $0x1ce0] sm:$0xff]
    %v954 = vld [vmem:[%s1 + $0x1ce8] sm:$0xff]
    %v955 = vld [vmem:[%s1 + $0x1cf0] sm:$0xff]
    %v956 = vld [vmem:[%s1 + $0x1cf8] sm:$0xff]
    %v957 = vld [vmem:[%s1 + $0x1d00] sm:$0xff]
    %v958 = vld [vmem:[%s1 + $0x1d08] sm:$0xff]
    %v959 = vld [vmem:[%s1 + $0x1d10] sm:$0xff]
    %v960 = vld [vmem:[%s1 + $0x1d18] sm:$0xff]
    %v961 = vld [vmem:[%s1 + $0x1d20] sm:$0xff]
    %v962 = vld [vmem:[%s1 + $0x1d28] sm:$0xff]
    %v963 = vld [vmem:[%s1 + $0x1d30] sm:$0xff]
    %v964 = vld [vmem:[%s1 + $0x1d38] sm:$0xff]
    %v965 = vld [vmem:[%s1 + $0x1d40] sm:$0xff]
    %v966 = vld [vmem:[%s1 + $0x1d48] sm:$0xff]
    %v967 = vld [vmem:[%s1 + $0x1d50] sm:$0xff]
    %v968 = vld [vmem:[%s1 + $0x1d58] sm:$0xff]
    %v969 = vld [vmem:[%s1 + $0x1d60] sm:$0xff]
    %v970 = vld [vmem:[%s1 + $0x1d68] sm:$0xff]
    %v971 = vld [vmem:[%s1 + $0x1d70] sm:$0xff]
    %v972 = vld [vmem:[%s1 + $0x1d78] sm:$0xff]
    %v973 = vld [vmem:[%s1 + $0x1d80] sm:$0xff]
    %v974 = vld [vmem:[%s1 + $0x1d88] sm:$0xff]
    %v975 = vld [vmem:[%s1 + $0x1d90] sm:$0xff]
    %v976 = vld [vmem:[%s1 + $0x1d98] sm:$0xff]
    %v977 = vld [vmem:[%s1 + $0x1da0] sm:$0xff]
    %v978 = vld [vmem:[%s1 + $0x1da8] sm:$0xff]
    %v979 = vld [vmem:[%s1 + $0x1db0] sm:$0xff]
    %v980 = vld [vmem:[%s1 + $0x1db8] sm:$0xff]
    %v981 = vld [vmem:[%s1 + $0x1dc0] sm:$0xff]
    %v982 = vld [vmem:[%s1 + $0x1dc8] sm:$0xff]
    %v983 = vld [vmem:[%s1 + $0x1dd0] sm:$0xff]
    %v984 = vld [vmem:[%s1 + $0x1dd8] sm:$0xff]
    %v985 = vld [vmem:[%s1 + $0x1de0] sm:$0xff]
    %v986 = vld [vmem:[%s1 + $0x1de8] sm:$0xff]
    %v987 = vld [vmem:[%s1 + $0x1df0] sm:$0xff]
    %v988 = vld [vmem:[%s1 + $0x1df8] sm:$0xff]
    %v989 = vld [vmem:[%s1 + $0x1e00] sm:$0xff]
    %v990 = vld [vmem:[%s1 + $0x1e08] sm:$0xff]
    %v991 = vld [vmem:[%s1 + $0x1e10] sm:$0xff]
    %v992 = vld [vmem:[%s1 + $0x1e18] sm:$0xff]
    %v993 = vld [vmem:[%s1 + $0x1e20] sm:$0xff]
    %v994 = vld [vmem:[%s1 + $0x1e28] sm:$0xff]
    %v995 = vld [vmem:[%s1 + $0x1e30] sm:$0xff]
    %v996 = vld [vmem:[%s1 + $0x1e38] sm:$0xff]
    %v997 = vld [vmem:[%s1 + $0x1e40] sm:$0xff]
    %v998 = vld [vmem:[%s1 + $0x1e48] sm:$0xff]
    %v999 = vld [vmem:[%s1 + $0x1e50] sm:$0xff]
    %v1000 = vld [vmem:[%s1 + $0x1e58] sm:$0xff]
    %v1001 = vld [vmem:[%s1 + $0x1e60] sm:$0xff]
    %v1002 = vld [vmem:[%s1 + $0x1e68] sm:$0xff]
    %v1003 = vld [vmem:[%s1 + $0x1e70] sm:$0xff]
    %v1004 = vld [vmem:[%s1 + $0x1e78] sm:$0xff]
    %v1005 = vld [vmem:[%s1 + $0x1e80] sm:$0xff]
    %v1006 = vld [vmem:[%s1 + $0x1e88] sm:$0xff]
    %v1007 = vld [vmem:[%s1 + $0x1e90] sm:$0xff]
    %v1008 = vld [vmem:[%s1 + $0x1e98] sm:$0xff]
    %v1009 = vld [vmem:[%s1 + $0x1ea0] sm:$0xff]
    %v1010 = vld [vmem:[%s1 + $0x1ea8] sm:$0xff]
    %v1011 = vld [vmem:[%s1 + $0x1eb0] sm:$0xff]
    %v1012 = vld [vmem:[%s1 + $0x1eb8] sm:$0xff]
    %v1013 = vld [vmem:[%s1 + $0x1ec0] sm:$0xff]
    %v1014 = vld [vmem:[%s1 + $0x1ec8] sm:$0xff]
    %v1015 = vld [vmem:[%s1 + $0x1ed0] sm:$0xff]
    %v1016 = vld [vmem:[%s1 + $0x1ed8] sm:$0xff]
    %v1017 = vld [vmem:[%s1 + $0x1ee0] sm:$0xff]
    %v1018 = vld [vmem:[%s1 + $0x1ee8] sm:$0xff]
    %v1019 = vld [vmem:[%s1 + $0x1ef0] sm:$0xff]
    %v1020 = vld [vmem:[%s1 + $0x1ef8] sm:$0xff]
    %v1021 = vld [vmem:[%s1 + $0x1f00] sm:$0xff]
    %v1022 = vld [vmem:[%s1 + $0x1f08] sm:$0xff]
    %v1023 = vld [vmem:[%s1 + $0x1f10] sm:$0xff]
    %v1024 = vld [vmem:[%s1 + $0x1f18] sm:$0xff]
    %v1025 = vld [vmem:[%s1 + $0x1f20] sm:$0xff]
    %v1026 = vld [vmem:[%s1 + $0x1f28] sm:$0xff]
    %v1027 = vld [vmem:[%s1 + $0x1f30] sm:$0xff]
    %v1028 = vld [vmem:[%s1 + $0x1f38] sm:$0xff]
    %v1029 = vld [vmem:[%s1 + $0x1f40] sm:$0xff]
    %v1030 = vld [vmem:[%s1 + $0x1f48] sm:$0xff]
    %v1031 = vld [vmem:[%s1 + $0x1f50] sm:$0xff]
    %v1032 = vld [vmem:[%s1 + $0x1f58] sm:$0xff]
    %v1033 = vld [vmem:[%s1 + $0x1f60] sm:$0xff]
    %v1034 = vld [vmem:[%s1 + $0x1f68] sm:$0xff]
    %v1035 = vld [vmem:[%s1 + $0x1f70] sm:$0xff]
    %v1036 = vld [vmem:[%s1 + $0x1f78] sm:$0xff]
    %v1037 = vld [vmem:[%s1 + $0x1f80] sm:$0xff]
    %v1038 = vld [vmem:[%s1 + $0x1f88] sm:$0xff]
    %v1039 = vld [vmem:[%s1 + $0x1f90] sm:$0xff]
    %v1040 = vld [vmem:[%s1 + $0x1f98] sm:$0xff]
    %v1041 = vld [vmem:[%s1 + $0x1fa0] sm:$0xff]
    %v1042 = vld [vmem:[%s1 + $0x1fa8] sm:$0xff]
    %v1043 = vld [vmem:[%s1 + $0x1fb0] sm:$0xff]
    %v1044 = vld [vmem:[%s1 + $0x1fb8] sm:$0xff]
    %v1045 = vld [vmem:[%s1 + $0x1fc0] sm:$0xff]
    %v1046 = vld [vmem:[%s1 + $0x1fc8] sm:$0xff]
    %v1047 = vld [vmem:[%s1 + $0x1fd0] sm:$0xff]
    %v1048 = vld [vmem:[%s1 + $0x1fd8] sm:$0xff]
    %v1049 = vld [vmem:[%s1 + $0x1fe0] sm:$0xff]
    %v1050 = vld [vmem:[%s1 + $0x1fe8] sm:$0xff]
    %v1051 = vld [vmem:[%s1 + $0x1ff0] sm:$0xff]
    %v1052 = vld [vmem:[%s1 + $0x1ff8] sm:$0xff]
    %v1053 = vld [vmem:[%s2] sm:$0x3]
    %v1055 = vlaneseq
    %v1056 = vshrl.u32 %v1055, 7
    %v1057 = vsub.s32 0, %v1056
    %v1058 = vrot.slane %v1053, %v1057
    %v1059 = vlaneseq
    %v1060 = vshrl.u32 %v1059, 7
    %v1061 = vsub.s32 1, %v1060
    %v1062 = vrot.slane %v1053, %v1061
    %v1073 = vcombine.high %v21, %v21
    %v1075 = vunpack.c.l.s4 1966171168
    %v1076 = vunpack.c.0.s8 %v1075
    %v1077 = vlaneseq
    %v1078 = vshrl.u32 %v1077, 7
    %v1079 = vsub.s32 %v1076, %v1078
    %v1080 = vrot.slane %v21, %v1079
    %v1082 = vunpack.c.l.s4 1966171168
    %v1083 = vunpack.c.0.s8 %v1082
    %v1084 = vlaneseq
    %v1085 = vshrl.u32 %v1084, 7
    %v1086 = vsub.s32 %v1083, %v1085
    %v1087 = vrot.slane %v1073, %v1086
    %v1088 = vcombine.high %v1080, %v1080
    %v1089 = vcombine.high %v1087, %v1087
    %v1091 = vunpack.c.l.s4 1966171168
    %v1092 = vunpack.c.0.s8 %v1091
    %v1093 = vlaneseq
    %v1094 = vshrl.u32 %v1093, 7
    %v1095 = vsub.s32 %v1092, %v1094
    %v1096 = vrot.slane %v1080, %v1095
    %v1098 = vunpack.c.l.s4 1966171168
    %v1099 = vunpack.c.0.s8 %v1098
    %v1100 = vlaneseq
    %v1101 = vshrl.u32 %v1100, 7
    %v1102 = vsub.s32 %v1099, %v1101
    %v1103 = vrot.slane %v1087, %v1102
    %v1105 = vunpack.c.l.s4 1966171168
    %v1106 = vunpack.c.0.s8 %v1105
    %v1107 = vlaneseq
    %v1108 = vshrl.u32 %v1107, 7
    %v1109 = vsub.s32 %v1106, %v1108
    %v1110 = vrot.slane %v1088, %v1109
    %v1112 = vunpack.c.l.s4 1966171168
    %v1113 = vunpack.c.0.s8 %v1112
    %v1114 = vlaneseq
    %v1115 = vshrl.u32 %v1114, 7
    %v1116 = vsub.s32 %v1113, %v1115
    %v1117 = vrot.slane %v1089, %v1116
    %v1118 = vcombine.high %v1096, %v1096
    %v1119 = vcombine.high %v1103, %v1103
    %v1120 = vcombine.high %v1110, %v1110
    %v1121 = vcombine.high %v1117, %v1117
    %v1122 = vcombine.high %v22, %v22
    %v1124 = vunpack.c.l.s4 1966171168
    %v1125 = vunpack.c.0.s8 %v1124
    %v1126 = vlaneseq
    %v1127 = vshrl.u32 %v1126, 7
    %v1128 = vsub.s32 %v1125, %v1127
    %v1129 = vrot.slane %v22, %v1128
    %v1131 = vunpack.c.l.s4 1966171168
    %v1132 = vunpack.c.0.s8 %v1131
    %v1133 = vlaneseq
    %v1134 = vshrl.u32 %v1133, 7
    %v1135 = vsub.s32 %v1132, %v1134
    %v1136 = vrot.slane %v1122, %v1135
    %v1137 = vcombine.high %v1129, %v1129
    %v1138 = vcombine.high %v1136, %v1136
    %v1140 = vunpack.c.l.s4 1966171168
    %v1141 = vunpack.c.0.s8 %v1140
    %v1142 = vlaneseq
    %v1143 = vshrl.u32 %v1142, 7
    %v1144 = vsub.s32 %v1141, %v1143
    %v1145 = vrot.slane %v1129, %v1144
    %v1147 = vunpack.c.l.s4 1966171168
    %v1148 = vunpack.c.0.s8 %v1147
    %v1149 = vlaneseq
    %v1150 = vshrl.u32 %v1149, 7
    %v1151 = vsub.s32 %v1148, %v1150
    %v1152 = vrot.slane %v1136, %v1151
    %v1154 = vunpack.c.l.s4 1966171168
    %v1155 = vunpack.c.0.s8 %v1154
    %v1156 = vlaneseq
    %v1157 = vshrl.u32 %v1156, 7
    %v1158 = vsub.s32 %v1155, %v1157
    %v1159 = vrot.slane %v1137, %v1158
    %v1161 = vunpack.c.l.s4 1966171168
    %v1162 = vunpack.c.0.s8 %v1161
    %v1163 = vlaneseq
    %v1164 = vshrl.u32 %v1163, 7
    %v1165 = vsub.s32 %v1162, %v1164
    %v1166 = vrot.slane %v1138, %v1165
    %v1167 = vcombine.high %v1145, %v1145
    %v1168 = vcombine.high %v1152, %v1152
    %v1169 = vcombine.high %v1159, %v1159
    %v1170 = vcombine.high %v1166, %v1166
    %v1171 = vcombine.high %v23, %v23
    %v1173 = vunpack.c.l.s4 1966171168
    %v1174 = vunpack.c.0.s8 %v1173
    %v1175 = vlaneseq
    %v1176 = vshrl.u32 %v1175, 7
    %v1177 = vsub.s32 %v1174, %v1176
    %v1178 = vrot.slane %v23, %v1177
    %v1180 = vunpack.c.l.s4 1966171168
    %v1181 = vunpack.c.0.s8 %v1180
    %v1182 = vlaneseq
    %v1183 = vshrl.u32 %v1182, 7
    %v1184 = vsub.s32 %v1181, %v1183
    %v1185 = vrot.slane %v1171, %v1184
    %v1186 = vcombine.high %v1178, %v1178
    %v1187 = vcombine.high %v1185, %v1185
    %v1189 = vunpack.c.l.s4 1966171168
    %v1190 = vunpack.c.0.s8 %v1189
    %v1191 = vlaneseq
    %v1192 = vshrl.u32 %v1191, 7
    %v1193 = vsub.s32 %v1190, %v1192
    %v1194 = vrot.slane %v1178, %v1193
    %v1196 = vunpack.c.l.s4 1966171168
    %v1197 = vunpack.c.0.s8 %v1196
    %v1198 = vlaneseq
    %v1199 = vshrl.u32 %v1198, 7
    %v1200 = vsub.s32 %v1197, %v1199
    %v1201 = vrot.slane %v1185, %v1200
    %v1203 = vunpack.c.l.s4 1966171168
    %v1204 = vunpack.c.0.s8 %v1203
    %v1205 = vlaneseq
    %v1206 = vshrl.u32 %v1205, 7
    %v1207 = vsub.s32 %v1204, %v1206
    %v1208 = vrot.slane %v1186, %v1207
    %v1210 = vunpack.c.l.s4 1966171168
    %v1211 = vunpack.c.0.s8 %v1210
    %v1212 = vlaneseq
    %v1213 = vshrl.u32 %v1212, 7
    %v1214 = vsub.s32 %v1211, %v1213
    %v1215 = vrot.slane %v1187, %v1214
    %v1216 = vcombine.high %v1194, %v1194
    %v1217 = vcombine.high %v1201, %v1201
    %v1218 = vcombine.high %v1208, %v1208
    %v1219 = vcombine.high %v1215, %v1215
    %v1220 = vcombine.high %v24, %v24
    %v1222 = vunpack.c.l.s4 1966171168
    %v1223 = vunpack.c.0.s8 %v1222
    %v1224 = vlaneseq
    %v1225 = vshrl.u32 %v1224, 7
    %v1226 = vsub.s32 %v1223, %v1225
    %v1227 = vrot.slane %v24, %v1226
    %v1229 = vunpack.c.l.s4 1966171168
    %v1230 = vunpack.c.0.s8 %v1229
    %v1231 = vlaneseq
    %v1232 = vshrl.u32 %v1231, 7
    %v1233 = vsub.s32 %v1230, %v1232
    %v1234 = vrot.slane %v1220, %v1233
    %v1235 = vcombine.high %v1227, %v1227
    %v1236 = vcombine.high %v1234, %v1234
    %v1238 = vunpack.c.l.s4 1966171168
    %v1239 = vunpack.c.0.s8 %v1238
    %v1240 = vlaneseq
    %v1241 = vshrl.u32 %v1240, 7
    %v1242 = vsub.s32 %v1239, %v1241
    %v1243 = vrot.slane %v1227, %v1242
    %v1245 = vunpack.c.l.s4 1966171168
    %v1246 = vunpack.c.0.s8 %v1245
    %v1247 = vlaneseq
    %v1248 = vshrl.u32 %v1247, 7
    %v1249 = vsub.s32 %v1246, %v1248
    %v1250 = vrot.slane %v1234, %v1249
    %v1252 = vunpack.c.l.s4 1966171168
    %v1253 = vunpack.c.0.s8 %v1252
    %v1254 = vlaneseq
    %v1255 = vshrl.u32 %v1254, 7
    %v1256 = vsub.s32 %v1253, %v1255
    %v1257 = vrot.slane %v1235, %v1256
    %v1259 = vunpack.c.l.s4 1966171168
    %v1260 = vunpack.c.0.s8 %v1259
    %v1261 = vlaneseq
    %v1262 = vshrl.u32 %v1261, 7
    %v1263 = vsub.s32 %v1260, %v1262
    %v1264 = vrot.slane %v1236, %v1263
    %v1265 = vcombine.high %v1243, %v1243
    %v1266 = vcombine.high %v1250, %v1250
    %v1267 = vcombine.high %v1257, %v1257
    %v1268 = vcombine.high %v1264, %v1264
    %v1269 = vcombine.high %v25, %v25
    %v1271 = vunpack.c.l.s4 1966171168
    %v1272 = vunpack.c.0.s8 %v1271
    %v1273 = vlaneseq
    %v1274 = vshrl.u32 %v1273, 7
    %v1275 = vsub.s32 %v1272, %v1274
    %v1276 = vrot.slane %v25, %v1275
    %v1278 = vunpack.c.l.s4 1966171168
    %v1279 = vunpack.c.0.s8 %v1278
    %v1280 = vlaneseq
    %v1281 = vshrl.u32 %v1280, 7
    %v1282 = vsub.s32 %v1279, %v1281
    %v1283 = vrot.slane %v1269, %v1282
    %v1284 = vcombine.high %v1276, %v1276
    %v1285 = vcombine.high %v1283, %v1283
    %v1287 = vunpack.c.l.s4 1966171168
    %v1288 = vunpack.c.0.s8 %v1287
    %v1289 = vlaneseq
    %v1290 = vshrl.u32 %v1289, 7
    %v1291 = vsub.s32 %v1288, %v1290
    %v1292 = vrot.slane %v1276, %v1291
    %v1294 = vunpack.c.l.s4 1966171168
    %v1295 = vunpack.c.0.s8 %v1294
    %v1296 = vlaneseq
    %v1297 = vshrl.u32 %v1296, 7
    %v1298 = vsub.s32 %v1295, %v1297
    %v1299 = vrot.slane %v1283, %v1298
    %v1301 = vunpack.c.l.s4 1966171168
    %v1302 = vunpack.c.0.s8 %v1301
    %v1303 = vlaneseq
    %v1304 = vshrl.u32 %v1303, 7
    %v1305 = vsub.s32 %v1302, %v1304
    %v1306 = vrot.slane %v1284, %v1305
    %v1308 = vunpack.c.l.s4 1966171168
    %v1309 = vunpack.c.0.s8 %v1308
    %v1310 = vlaneseq
    %v1311 = vshrl.u32 %v1310, 7
    %v1312 = vsub.s32 %v1309, %v1311
    %v1313 = vrot.slane %v1285, %v1312
    %v1314 = vcombine.high %v1292, %v1292
    %v1315 = vcombine.high %v1299, %v1299
    %v1316 = vcombine.high %v1306, %v1306
    %v1317 = vcombine.high %v1313, %v1313
    %v1318 = vcombine.high %v26, %v26
    %v1320 = vunpack.c.l.s4 1966171168
    %v1321 = vunpack.c.0.s8 %v1320
    %v1322 = vlaneseq
    %v1323 = vshrl.u32 %v1322, 7
    %v1324 = vsub.s32 %v1321, %v1323
    %v1325 = vrot.slane %v26, %v1324
    %v1327 = vunpack.c.l.s4 1966171168
    %v1328 = vunpack.c.0.s8 %v1327
    %v1329 = vlaneseq
    %v1330 = vshrl.u32 %v1329, 7
    %v1331 = vsub.s32 %v1328, %v1330
    %v1332 = vrot.slane %v1318, %v1331
    %v1333 = vcombine.high %v1325, %v1325
    %v1334 = vcombine.high %v1332, %v1332
    %v1336 = vunpack.c.l.s4 1966171168
    %v1337 = vunpack.c.0.s8 %v1336
    %v1338 = vlaneseq
    %v1339 = vshrl.u32 %v1338, 7
    %v1340 = vsub.s32 %v1337, %v1339
    %v1341 = vrot.slane %v1325, %v1340
    %v1343 = vunpack.c.l.s4 1966171168
    %v1344 = vunpack.c.0.s8 %v1343
    %v1345 = vlaneseq
    %v1346 = vshrl.u32 %v1345, 7
    %v1347 = vsub.s32 %v1344, %v1346
    %v1348 = vrot.slane %v1332, %v1347
    %v1350 = vunpack.c.l.s4 1966171168
    %v1351 = vunpack.c.0.s8 %v1350
    %v1352 = vlaneseq
    %v1353 = vshrl.u32 %v1352, 7
    %v1354 = vsub.s32 %v1351, %v1353
    %v1355 = vrot.slane %v1333, %v1354
    %v1357 = vunpack.c.l.s4 1966171168
    %v1358 = vunpack.c.0.s8 %v1357
    %v1359 = vlaneseq
    %v1360 = vshrl.u32 %v1359, 7
    %v1361 = vsub.s32 %v1358, %v1360
    %v1362 = vrot.slane %v1334, %v1361
    %v1363 = vcombine.high %v1341, %v1341
    %v1364 = vcombine.high %v1348, %v1348
    %v1365 = vcombine.high %v1355, %v1355
    %v1366 = vcombine.high %v1362, %v1362
    %v1367 = vcombine.high %v27, %v27
    %v1369 = vunpack.c.l.s4 1966171168
    %v1370 = vunpack.c.0.s8 %v1369
    %v1371 = vlaneseq
    %v1372 = vshrl.u32 %v1371, 7
    %v1373 = vsub.s32 %v1370, %v1372
    %v1374 = vrot.slane %v27, %v1373
    %v1376 = vunpack.c.l.s4 1966171168
    %v1377 = vunpack.c.0.s8 %v1376
    %v1378 = vlaneseq
    %v1379 = vshrl.u32 %v1378, 7
    %v1380 = vsub.s32 %v1377, %v1379
    %v1381 = vrot.slane %v1367, %v1380
    %v1382 = vcombine.high %v1374, %v1374
    %v1383 = vcombine.high %v1381, %v1381
    %v1385 = vunpack.c.l.s4 1966171168
    %v1386 = vunpack.c.0.s8 %v1385
    %v1387 = vlaneseq
    %v1388 = vshrl.u32 %v1387, 7
    %v1389 = vsub.s32 %v1386, %v1388
    %v1390 = vrot.slane %v1374, %v1389
    %v1392 = vunpack.c.l.s4 1966171168
    %v1393 = vunpack.c.0.s8 %v1392
    %v1394 = vlaneseq
    %v1395 = vshrl.u32 %v1394, 7
    %v1396 = vsub.s32 %v1393, %v1395
    %v1397 = vrot.slane %v1381, %v1396
    %v1399 = vunpack.c.l.s4 1966171168
    %v1400 = vunpack.c.0.s8 %v1399
    %v1401 = vlaneseq
    %v1402 = vshrl.u32 %v1401, 7
    %v1403 = vsub.s32 %v1400, %v1402
    %v1404 = vrot.slane %v1382, %v1403
    %v1406 = vunpack.c.l.s4 1966171168
    %v1407 = vunpack.c.0.s8 %v1406
    %v1408 = vlaneseq
    %v1409 = vshrl.u32 %v1408, 7
    %v1410 = vsub.s32 %v1407, %v1409
    %v1411 = vrot.slane %v1383, %v1410
    %v1412 = vcombine.high %v1390, %v1390
    %v1413 = vcombine.high %v1397, %v1397
    %v1414 = vcombine.high %v1404, %v1404
    %v1415 = vcombine.high %v1411, %v1411
    %v1416 = vcombine.high %v28, %v28
    %v1418 = vunpack.c.l.s4 1966171168
    %v1419 = vunpack.c.0.s8 %v1418
    %v1420 = vlaneseq
    %v1421 = vshrl.u32 %v1420, 7
    %v1422 = vsub.s32 %v1419, %v1421
    %v1423 = vrot.slane %v28, %v1422
    %v1425 = vunpack.c.l.s4 1966171168
    %v1426 = vunpack.c.0.s8 %v1425
    %v1427 = vlaneseq
    %v1428 = vshrl.u32 %v1427, 7
    %v1429 = vsub.s32 %v1426, %v1428
    %v1430 = vrot.slane %v1416, %v1429
    %v1431 = vcombine.high %v1423, %v1423
    %v1432 = vcombine.high %v1430, %v1430
    %v1434 = vunpack.c.l.s4 1966171168
    %v1435 = vunpack.c.0.s8 %v1434
    %v1436 = vlaneseq
    %v1437 = vshrl.u32 %v1436, 7
    %v1438 = vsub.s32 %v1435, %v1437
    %v1439 = vrot.slane %v1423, %v1438
    %v1441 = vunpack.c.l.s4 1966171168
    %v1442 = vunpack.c.0.s8 %v1441
    %v1443 = vlaneseq
    %v1444 = vshrl.u32 %v1443, 7
    %v1445 = vsub.s32 %v1442, %v1444
    %v1446 = vrot.slane %v1430, %v1445
    %v1448 = vunpack.c.l.s4 1966171168
    %v1449 = vunpack.c.0.s8 %v1448
    %v1450 = vlaneseq
    %v1451 = vshrl.u32 %v1450, 7
    %v1452 = vsub.s32 %v1449, %v1451
    %v1453 = vrot.slane %v1431, %v1452
    %v1455 = vunpack.c.l.s4 1966171168
    %v1456 = vunpack.c.0.s8 %v1455
    %v1457 = vlaneseq
    %v1458 = vshrl.u32 %v1457, 7
    %v1459 = vsub.s32 %v1456, %v1458
    %v1460 = vrot.slane %v1432, %v1459
    %v1461 = vcombine.high %v1439, %v1439
    %v1462 = vcombine.high %v1446, %v1446
    %v1463 = vcombine.high %v1453, %v1453
    %v1464 = vcombine.high %v1460, %v1460
    %v2553 = vunpack.c.l.b16 %v29
    %v2554 = vunpack.c.h.b16 %v29
    %v2555 = vunpack.c.l.b16 %v30
    %v2556 = vunpack.c.h.b16 %v30
    %v2557 = vunpack.c.l.b16 %v31
    %v2558 = vunpack.c.h.b16 %v31
    %v2559 = vunpack.c.l.b16 %v32
    %v2560 = vunpack.c.h.b16 %v32
    %v2561 = vunpack.c.l.b16 %v33
    %v2562 = vunpack.c.h.b16 %v33
    %v2563 = vunpack.c.l.b16 %v34
    %v2564 = vunpack.c.h.b16 %v34
    %v2565 = vunpack.c.l.b16 %v35
    %v2566 = vunpack.c.h.b16 %v35
    %v2567 = vunpack.c.l.b16 %v36
    %v2568 = vunpack.c.h.b16 %v36
    %v2569 = vunpack.c.l.b16 %v37
    %v2570 = vunpack.c.h.b16 %v37
    %v2571 = vunpack.c.l.b16 %v38
    %v2572 = vunpack.c.h.b16 %v38
    %v2573 = vunpack.c.l.b16 %v39
    %v2574 = vunpack.c.h.b16 %v39
    %v2575 = vunpack.c.l.b16 %v40
    %v2576 = vunpack.c.h.b16 %v40
    %v2577 = vunpack.c.l.b16 %v41
    %v2578 = vunpack.c.h.b16 %v41
    %v2579 = vunpack.c.l.b16 %v42
    %v2580 = vunpack.c.h.b16 %v42
    %v2581 = vunpack.c.l.b16 %v43
    %v2582 = vunpack.c.h.b16 %v43
    %v2583 = vunpack.c.l.b16 %v44
    %v2584 = vunpack.c.h.b16 %v44
    %v2585 = vunpack.c.l.b16 %v45
    %v2586 = vunpack.c.h.b16 %v45
    %v2587 = vunpack.c.l.b16 %v46
    %v2588 = vunpack.c.h.b16 %v46
    %v2589 = vunpack.c.l.b16 %v47
    %v2590 = vunpack.c.h.b16 %v47
    %v2591 = vunpack.c.l.b16 %v48
    %v2592 = vunpack.c.h.b16 %v48
    %v2593 = vunpack.c.l.b16 %v49
    %v2594 = vunpack.c.h.b16 %v49
    %v2595 = vunpack.c.l.b16 %v50
    %v2596 = vunpack.c.h.b16 %v50
    %v2597 = vunpack.c.l.b16 %v51
    %v2598 = vunpack.c.h.b16 %v51
    %v2599 = vunpack.c.l.b16 %v52
    %v2600 = vunpack.c.h.b16 %v52
    %v2601 = vunpack.c.l.b16 %v53
    %v2602 = vunpack.c.h.b16 %v53
    %v2603 = vunpack.c.l.b16 %v54
    %v2604 = vunpack.c.h.b16 %v54
    %v2605 = vunpack.c.l.b16 %v55
    %v2606 = vunpack.c.h.b16 %v55
    %v2607 = vunpack.c.l.b16 %v56
    %v2608 = vunpack.c.h.b16 %v56
    %v2609 = vunpack.c.l.b16 %v57
    %v2610 = vunpack.c.h.b16 %v57
    %v2611 = vunpack.c.l.b16 %v58
    %v2612 = vunpack.c.h.b16 %v58
    %v2613 = vunpack.c.l.b16 %v59
    %v2614 = vunpack.c.h.b16 %v59
    %v2615 = vunpack.c.l.b16 %v60
    %v2616 = vunpack.c.h.b16 %v60
    %v2617 = vunpack.c.l.b16 %v61
    %v2618 = vunpack.c.h.b16 %v61
    %v2619 = vunpack.c.l.b16 %v62
    %v2620 = vunpack.c.h.b16 %v62
    %v2621 = vunpack.c.l.b16 %v63
    %v2622 = vunpack.c.h.b16 %v63
    %v2623 = vunpack.c.l.b16 %v64
    %v2624 = vunpack.c.h.b16 %v64
    %v2625 = vunpack.c.l.b16 %v65
    %v2626 = vunpack.c.h.b16 %v65
    %v2627 = vunpack.c.l.b16 %v66
    %v2628 = vunpack.c.h.b16 %v66
    %v2629 = vunpack.c.l.b16 %v67
    %v2630 = vunpack.c.h.b16 %v67
    %v2631 = vunpack.c.l.b16 %v68
    %v2632 = vunpack.c.h.b16 %v68
    %v2633 = vunpack.c.l.b16 %v69
    %v2634 = vunpack.c.h.b16 %v69
    %v2635 = vunpack.c.l.b16 %v70
    %v2636 = vunpack.c.h.b16 %v70
    %v2637 = vunpack.c.l.b16 %v71
    %v2638 = vunpack.c.h.b16 %v71
    %v2639 = vunpack.c.l.b16 %v72
    %v2640 = vunpack.c.h.b16 %v72
    %v2641 = vunpack.c.l.b16 %v73
    %v2642 = vunpack.c.h.b16 %v73
    %v2643 = vunpack.c.l.b16 %v74
    %v2644 = vunpack.c.h.b16 %v74
    %v2645 = vunpack.c.l.b16 %v75
    %v2646 = vunpack.c.h.b16 %v75
    %v2647 = vunpack.c.l.b16 %v76
    %v2648 = vunpack.c.h.b16 %v76
    %v2649 = vunpack.c.l.b16 %v77
    %v2650 = vunpack.c.h.b16 %v77
    %v2651 = vunpack.c.l.b16 %v78
    %v2652 = vunpack.c.h.b16 %v78
    %v2653 = vunpack.c.l.b16 %v79
    %v2654 = vunpack.c.h.b16 %v79
    %v2655 = vunpack.c.l.b16 %v80
    %v2656 = vunpack.c.h.b16 %v80
    %v2657 = vunpack.c.l.b16 %v81
    %v2658 = vunpack.c.h.b16 %v81
    %v2659 = vunpack.c.l.b16 %v82
    %v2660 = vunpack.c.h.b16 %v82
    %v2661 = vunpack.c.l.b16 %v83
    %v2662 = vunpack.c.h.b16 %v83
    %v2663 = vunpack.c.l.b16 %v84
    %v2664 = vunpack.c.h.b16 %v84
    %v2665 = vunpack.c.l.b16 %v85
    %v2666 = vunpack.c.h.b16 %v85
    %v2667 = vunpack.c.l.b16 %v86
    %v2668 = vunpack.c.h.b16 %v86
    %v2669 = vunpack.c.l.b16 %v87
    %v2670 = vunpack.c.h.b16 %v87
    %v2671 = vunpack.c.l.b16 %v88
    %v2672 = vunpack.c.h.b16 %v88
    %v2673 = vunpack.c.l.b16 %v89
    %v2674 = vunpack.c.h.b16 %v89
    %v2675 = vunpack.c.l.b16 %v90
    %v2676 = vunpack.c.h.b16 %v90
    %v2677 = vunpack.c.l.b16 %v91
    %v2678 = vunpack.c.h.b16 %v91
    %v2679 = vunpack.c.l.b16 %v92
    %v2680 = vunpack.c.h.b16 %v92
    %v2681 = vunpack.c.l.b16 %v93
    %v2682 = vunpack.c.h.b16 %v93
    %v2683 = vunpack.c.l.b16 %v94
    %v2684 = vunpack.c.h.b16 %v94
    %v2685 = vunpack.c.l.b16 %v95
    %v2686 = vunpack.c.h.b16 %v95
    %v2687 = vunpack.c.l.b16 %v96
    %v2688 = vunpack.c.h.b16 %v96
    %v2689 = vunpack.c.l.b16 %v97
    %v2690 = vunpack.c.h.b16 %v97
    %v2691 = vunpack.c.l.b16 %v98
    %v2692 = vunpack.c.h.b16 %v98
    %v2693 = vunpack.c.l.b16 %v99
    %v2694 = vunpack.c.h.b16 %v99
    %v2695 = vunpack.c.l.b16 %v100
    %v2696 = vunpack.c.h.b16 %v100
    %v2697 = vunpack.c.l.b16 %v101
    %v2698 = vunpack.c.h.b16 %v101
    %v2699 = vunpack.c.l.b16 %v102
    %v2700 = vunpack.c.h.b16 %v102
    %v2701 = vunpack.c.l.b16 %v103
    %v2702 = vunpack.c.h.b16 %v103
    %v2703 = vunpack.c.l.b16 %v104
    %v2704 = vunpack.c.h.b16 %v104
    %v2705 = vunpack.c.l.b16 %v105
    %v2706 = vunpack.c.h.b16 %v105
    %v2707 = vunpack.c.l.b16 %v106
    %v2708 = vunpack.c.h.b16 %v106
    %v2709 = vunpack.c.l.b16 %v107
    %v2710 = vunpack.c.h.b16 %v107
    %v2711 = vunpack.c.l.b16 %v108
    %v2712 = vunpack.c.h.b16 %v108
    %v2713 = vunpack.c.l.b16 %v109
    %v2714 = vunpack.c.h.b16 %v109
    %v2715 = vunpack.c.l.b16 %v110
    %v2716 = vunpack.c.h.b16 %v110
    %v2717 = vunpack.c.l.b16 %v111
    %v2718 = vunpack.c.h.b16 %v111
    %v2719 = vunpack.c.l.b16 %v112
    %v2720 = vunpack.c.h.b16 %v112
    %v2721 = vunpack.c.l.b16 %v113
    %v2722 = vunpack.c.h.b16 %v113
    %v2723 = vunpack.c.l.b16 %v114
    %v2724 = vunpack.c.h.b16 %v114
    %v2725 = vunpack.c.l.b16 %v115
    %v2726 = vunpack.c.h.b16 %v115
    %v2727 = vunpack.c.l.b16 %v116
    %v2728 = vunpack.c.h.b16 %v116
    %v2729 = vunpack.c.l.b16 %v117
    %v2730 = vunpack.c.h.b16 %v117
    %v2731 = vunpack.c.l.b16 %v118
    %v2732 = vunpack.c.h.b16 %v118
    %v2733 = vunpack.c.l.b16 %v119
    %v2734 = vunpack.c.h.b16 %v119
    %v2735 = vunpack.c.l.b16 %v120
    %v2736 = vunpack.c.h.b16 %v120
    %v2737 = vunpack.c.l.b16 %v121
    %v2738 = vunpack.c.h.b16 %v121
    %v2739 = vunpack.c.l.b16 %v122
    %v2740 = vunpack.c.h.b16 %v122
    %v2741 = vunpack.c.l.b16 %v123
    %v2742 = vunpack.c.h.b16 %v123
    %v2743 = vunpack.c.l.b16 %v124
    %v2744 = vunpack.c.h.b16 %v124
    %v2745 = vunpack.c.l.b16 %v125
    %v2746 = vunpack.c.h.b16 %v125
    %v2747 = vunpack.c.l.b16 %v126
    %v2748 = vunpack.c.h.b16 %v126
    %v2749 = vunpack.c.l.b16 %v127
    %v2750 = vunpack.c.h.b16 %v127
    %v2751 = vunpack.c.l.b16 %v128
    %v2752 = vunpack.c.h.b16 %v128
    %v2753 = vunpack.c.l.b16 %v129
    %v2754 = vunpack.c.h.b16 %v129
    %v2755 = vunpack.c.l.b16 %v130
    %v2756 = vunpack.c.h.b16 %v130
    %v2757 = vunpack.c.l.b16 %v131
    %v2758 = vunpack.c.h.b16 %v131
    %v2759 = vunpack.c.l.b16 %v132
    %v2760 = vunpack.c.h.b16 %v132
    %v2761 = vunpack.c.l.b16 %v133
    %v2762 = vunpack.c.h.b16 %v133
    %v2763 = vunpack.c.l.b16 %v134
    %v2764 = vunpack.c.h.b16 %v134
    %v2765 = vunpack.c.l.b16 %v135
    %v2766 = vunpack.c.h.b16 %v135
    %v2767 = vunpack.c.l.b16 %v136
    %v2768 = vunpack.c.h.b16 %v136
    %v2769 = vunpack.c.l.b16 %v137
    %v2770 = vunpack.c.h.b16 %v137
    %v2771 = vunpack.c.l.b16 %v138
    %v2772 = vunpack.c.h.b16 %v138
    %v2773 = vunpack.c.l.b16 %v139
    %v2774 = vunpack.c.h.b16 %v139
    %v2775 = vunpack.c.l.b16 %v140
    %v2776 = vunpack.c.h.b16 %v140
    %v2777 = vunpack.c.l.b16 %v141
    %v2778 = vunpack.c.h.b16 %v141
    %v2779 = vunpack.c.l.b16 %v142
    %v2780 = vunpack.c.h.b16 %v142
    %v2781 = vunpack.c.l.b16 %v143
    %v2782 = vunpack.c.h.b16 %v143
    %v2783 = vunpack.c.l.b16 %v144
    %v2784 = vunpack.c.h.b16 %v144
    %v2785 = vunpack.c.l.b16 %v145
    %v2786 = vunpack.c.h.b16 %v145
    %v2787 = vunpack.c.l.b16 %v146
    %v2788 = vunpack.c.h.b16 %v146
    %v2789 = vunpack.c.l.b16 %v147
    %v2790 = vunpack.c.h.b16 %v147
    %v2791 = vunpack.c.l.b16 %v148
    %v2792 = vunpack.c.h.b16 %v148
    %v2793 = vunpack.c.l.b16 %v149
    %v2794 = vunpack.c.h.b16 %v149
    %v2795 = vunpack.c.l.b16 %v150
    %v2796 = vunpack.c.h.b16 %v150
    %v2797 = vunpack.c.l.b16 %v151
    %v2798 = vunpack.c.h.b16 %v151
    %v2799 = vunpack.c.l.b16 %v152
    %v2800 = vunpack.c.h.b16 %v152
    %v2801 = vunpack.c.l.b16 %v153
    %v2802 = vunpack.c.h.b16 %v153
    %v2803 = vunpack.c.l.b16 %v154
    %v2804 = vunpack.c.h.b16 %v154
    %v2805 = vunpack.c.l.b16 %v155
    %v2806 = vunpack.c.h.b16 %v155
    %v2807 = vunpack.c.l.b16 %v156
    %v2808 = vunpack.c.h.b16 %v156
    %v2809 = vunpack.c.l.b16 %v157
    %v2810 = vunpack.c.h.b16 %v157
    %v2811 = vunpack.c.l.b16 %v158
    %v2812 = vunpack.c.h.b16 %v158
    %v2813 = vunpack.c.l.b16 %v159
    %v2814 = vunpack.c.h.b16 %v159
    %v2815 = vunpack.c.l.b16 %v160
    %v2816 = vunpack.c.h.b16 %v160
    %v2817 = vunpack.c.l.b16 %v161
    %v2818 = vunpack.c.h.b16 %v161
    %v2819 = vunpack.c.l.b16 %v162
    %v2820 = vunpack.c.h.b16 %v162
    %v2821 = vunpack.c.l.b16 %v163
    %v2822 = vunpack.c.h.b16 %v163
    %v2823 = vunpack.c.l.b16 %v164
    %v2824 = vunpack.c.h.b16 %v164
    %v2825 = vunpack.c.l.b16 %v165
    %v2826 = vunpack.c.h.b16 %v165
    %v2827 = vunpack.c.l.b16 %v166
    %v2828 = vunpack.c.h.b16 %v166
    %v2829 = vunpack.c.l.b16 %v167
    %v2830 = vunpack.c.h.b16 %v167
    %v2831 = vunpack.c.l.b16 %v168
    %v2832 = vunpack.c.h.b16 %v168
    %v2833 = vunpack.c.l.b16 %v169
    %v2834 = vunpack.c.h.b16 %v169
    %v2835 = vunpack.c.l.b16 %v170
    %v2836 = vunpack.c.h.b16 %v170
    %v2837 = vunpack.c.l.b16 %v171
    %v2838 = vunpack.c.h.b16 %v171
    %v2839 = vunpack.c.l.b16 %v172
    %v2840 = vunpack.c.h.b16 %v172
    %v2841 = vunpack.c.l.b16 %v173
    %v2842 = vunpack.c.h.b16 %v173
    %v2843 = vunpack.c.l.b16 %v174
    %v2844 = vunpack.c.h.b16 %v174
    %v2845 = vunpack.c.l.b16 %v175
    %v2846 = vunpack.c.h.b16 %v175
    %v2847 = vunpack.c.l.b16 %v176
    %v2848 = vunpack.c.h.b16 %v176
    %v2849 = vunpack.c.l.b16 %v177
    %v2850 = vunpack.c.h.b16 %v177
    %v2851 = vunpack.c.l.b16 %v178
    %v2852 = vunpack.c.h.b16 %v178
    %v2853 = vunpack.c.l.b16 %v179
    %v2854 = vunpack.c.h.b16 %v179
    %v2855 = vunpack.c.l.b16 %v180
    %v2856 = vunpack.c.h.b16 %v180
    %v2857 = vunpack.c.l.b16 %v181
    %v2858 = vunpack.c.h.b16 %v181
    %v2859 = vunpack.c.l.b16 %v182
    %v2860 = vunpack.c.h.b16 %v182
    %v2861 = vunpack.c.l.b16 %v183
    %v2862 = vunpack.c.h.b16 %v183
    %v2863 = vunpack.c.l.b16 %v184
    %v2864 = vunpack.c.h.b16 %v184
    %v2865 = vunpack.c.l.b16 %v185
    %v2866 = vunpack.c.h.b16 %v185
    %v2867 = vunpack.c.l.b16 %v186
    %v2868 = vunpack.c.h.b16 %v186
    %v2869 = vunpack.c.l.b16 %v187
    %v2870 = vunpack.c.h.b16 %v187
    %v2871 = vunpack.c.l.b16 %v188
    %v2872 = vunpack.c.h.b16 %v188
    %v2873 = vunpack.c.l.b16 %v189
    %v2874 = vunpack.c.h.b16 %v189
    %v2875 = vunpack.c.l.b16 %v190
    %v2876 = vunpack.c.h.b16 %v190
    %v2877 = vunpack.c.l.b16 %v191
    %v2878 = vunpack.c.h.b16 %v191
    %v2879 = vunpack.c.l.b16 %v192
    %v2880 = vunpack.c.h.b16 %v192
    %v2881 = vunpack.c.l.b16 %v193
    %v2882 = vunpack.c.h.b16 %v193
    %v2883 = vunpack.c.l.b16 %v194
    %v2884 = vunpack.c.h.b16 %v194
    %v2885 = vunpack.c.l.b16 %v195
    %v2886 = vunpack.c.h.b16 %v195
    %v2887 = vunpack.c.l.b16 %v196
    %v2888 = vunpack.c.h.b16 %v196
    %v2889 = vunpack.c.l.b16 %v197
    %v2890 = vunpack.c.h.b16 %v197
    %v2891 = vunpack.c.l.b16 %v198
    %v2892 = vunpack.c.h.b16 %v198
    %v2893 = vunpack.c.l.b16 %v199
    %v2894 = vunpack.c.h.b16 %v199
    %v2895 = vunpack.c.l.b16 %v200
    %v2896 = vunpack.c.h.b16 %v200
    %v2897 = vunpack.c.l.b16 %v201
    %v2898 = vunpack.c.h.b16 %v201
    %v2899 = vunpack.c.l.b16 %v202
    %v2900 = vunpack.c.h.b16 %v202
    %v2901 = vunpack.c.l.b16 %v203
    %v2902 = vunpack.c.h.b16 %v203
    %v2903 = vunpack.c.l.b16 %v204
    %v2904 = vunpack.c.h.b16 %v204
    %v2905 = vunpack.c.l.b16 %v205
    %v2906 = vunpack.c.h.b16 %v205
    %v2907 = vunpack.c.l.b16 %v206
    %v2908 = vunpack.c.h.b16 %v206
    %v2909 = vunpack.c.l.b16 %v207
    %v2910 = vunpack.c.h.b16 %v207
    %v2911 = vunpack.c.l.b16 %v208
    %v2912 = vunpack.c.h.b16 %v208
    %v2913 = vunpack.c.l.b16 %v209
    %v2914 = vunpack.c.h.b16 %v209
    %v2915 = vunpack.c.l.b16 %v210
    %v2916 = vunpack.c.h.b16 %v210
    %v2917 = vunpack.c.l.b16 %v211
    %v2918 = vunpack.c.h.b16 %v211
    %v2919 = vunpack.c.l.b16 %v212
    %v2920 = vunpack.c.h.b16 %v212
    %v2921 = vunpack.c.l.b16 %v213
    %v2922 = vunpack.c.h.b16 %v213
    %v2923 = vunpack.c.l.b16 %v214
    %v2924 = vunpack.c.h.b16 %v214
    %v2925 = vunpack.c.l.b16 %v215
    %v2926 = vunpack.c.h.b16 %v215
    %v2927 = vunpack.c.l.b16 %v216
    %v2928 = vunpack.c.h.b16 %v216
    %v2929 = vunpack.c.l.b16 %v217
    %v2930 = vunpack.c.h.b16 %v217
    %v2931 = vunpack.c.l.b16 %v218
    %v2932 = vunpack.c.h.b16 %v218
    %v2933 = vunpack.c.l.b16 %v219
    %v2934 = vunpack.c.h.b16 %v219
    %v2935 = vunpack.c.l.b16 %v220
    %v2936 = vunpack.c.h.b16 %v220
    %v2937 = vunpack.c.l.b16 %v221
    %v2938 = vunpack.c.h.b16 %v221
    %v2939 = vunpack.c.l.b16 %v222
    %v2940 = vunpack.c.h.b16 %v222
    %v2941 = vunpack.c.l.b16 %v223
    %v2942 = vunpack.c.h.b16 %v223
    %v2943 = vunpack.c.l.b16 %v224
    %v2944 = vunpack.c.h.b16 %v224
    %v2945 = vunpack.c.l.b16 %v225
    %v2946 = vunpack.c.h.b16 %v225
    %v2947 = vunpack.c.l.b16 %v226
    %v2948 = vunpack.c.h.b16 %v226
    %v2949 = vunpack.c.l.b16 %v227
    %v2950 = vunpack.c.h.b16 %v227
    %v2951 = vunpack.c.l.b16 %v228
    %v2952 = vunpack.c.h.b16 %v228
    %v2953 = vunpack.c.l.b16 %v229
    %v2954 = vunpack.c.h.b16 %v229
    %v2955 = vunpack.c.l.b16 %v230
    %v2956 = vunpack.c.h.b16 %v230
    %v2957 = vunpack.c.l.b16 %v231
    %v2958 = vunpack.c.h.b16 %v231
    %v2959 = vunpack.c.l.b16 %v232
    %v2960 = vunpack.c.h.b16 %v232
    %v2961 = vunpack.c.l.b16 %v233
    %v2962 = vunpack.c.h.b16 %v233
    %v2963 = vunpack.c.l.b16 %v234
    %v2964 = vunpack.c.h.b16 %v234
    %v2965 = vunpack.c.l.b16 %v235
    %v2966 = vunpack.c.h.b16 %v235
    %v2967 = vunpack.c.l.b16 %v236
    %v2968 = vunpack.c.h.b16 %v236
    %v2969 = vunpack.c.l.b16 %v237
    %v2970 = vunpack.c.h.b16 %v237
    %v2971 = vunpack.c.l.b16 %v238
    %v2972 = vunpack.c.h.b16 %v238
    %v2973 = vunpack.c.l.b16 %v239
    %v2974 = vunpack.c.h.b16 %v239
    %v2975 = vunpack.c.l.b16 %v240
    %v2976 = vunpack.c.h.b16 %v240
    %v2977 = vunpack.c.l.b16 %v241
    %v2978 = vunpack.c.h.b16 %v241
    %v2979 = vunpack.c.l.b16 %v242
    %v2980 = vunpack.c.h.b16 %v242
    %v2981 = vunpack.c.l.b16 %v243
    %v2982 = vunpack.c.h.b16 %v243
    %v2983 = vunpack.c.l.b16 %v244
    %v2984 = vunpack.c.h.b16 %v244
    %v2985 = vunpack.c.l.b16 %v245
    %v2986 = vunpack.c.h.b16 %v245
    %v2987 = vunpack.c.l.b16 %v246
    %v2988 = vunpack.c.h.b16 %v246
    %v2989 = vunpack.c.l.b16 %v247
    %v2990 = vunpack.c.h.b16 %v247
    %v2991 = vunpack.c.l.b16 %v248
    %v2992 = vunpack.c.h.b16 %v248
    %v2993 = vunpack.c.l.b16 %v249
    %v2994 = vunpack.c.h.b16 %v249
    %v2995 = vunpack.c.l.b16 %v250
    %v2996 = vunpack.c.h.b16 %v250
    %v2997 = vunpack.c.l.b16 %v251
    %v2998 = vunpack.c.h.b16 %v251
    %v2999 = vunpack.c.l.b16 %v252
    %v3000 = vunpack.c.h.b16 %v252
    %v3001 = vunpack.c.l.b16 %v253
    %v3002 = vunpack.c.h.b16 %v253
    %v3003 = vunpack.c.l.b16 %v254
    %v3004 = vunpack.c.h.b16 %v254
    %v3005 = vunpack.c.l.b16 %v255
    %v3006 = vunpack.c.h.b16 %v255
    %v3007 = vunpack.c.l.b16 %v256
    %v3008 = vunpack.c.h.b16 %v256
    %v3009 = vunpack.c.l.b16 %v257
    %v3010 = vunpack.c.h.b16 %v257
    %v3011 = vunpack.c.l.b16 %v258
    %v3012 = vunpack.c.h.b16 %v258
    %v3013 = vunpack.c.l.b16 %v259
    %v3014 = vunpack.c.h.b16 %v259
    %v3015 = vunpack.c.l.b16 %v260
    %v3016 = vunpack.c.h.b16 %v260
    %v3017 = vunpack.c.l.b16 %v261
    %v3018 = vunpack.c.h.b16 %v261
    %v3019 = vunpack.c.l.b16 %v262
    %v3020 = vunpack.c.h.b16 %v262
    %v3021 = vunpack.c.l.b16 %v263
    %v3022 = vunpack.c.h.b16 %v263
    %v3023 = vunpack.c.l.b16 %v264
    %v3024 = vunpack.c.h.b16 %v264
    %v3025 = vunpack.c.l.b16 %v265
    %v3026 = vunpack.c.h.b16 %v265
    %v3027 = vunpack.c.l.b16 %v266
    %v3028 = vunpack.c.h.b16 %v266
    %v3029 = vunpack.c.l.b16 %v267
    %v3030 = vunpack.c.h.b16 %v267
    %v3031 = vunpack.c.l.b16 %v268
    %v3032 = vunpack.c.h.b16 %v268
    %v3033 = vunpack.c.l.b16 %v269
    %v3034 = vunpack.c.h.b16 %v269
    %v3035 = vunpack.c.l.b16 %v270
    %v3036 = vunpack.c.h.b16 %v270
    %v3037 = vunpack.c.l.b16 %v271
    %v3038 = vunpack.c.h.b16 %v271
    %v3039 = vunpack.c.l.b16 %v272
    %v3040 = vunpack.c.h.b16 %v272
    %v3041 = vunpack.c.l.b16 %v273
    %v3042 = vunpack.c.h.b16 %v273
    %v3043 = vunpack.c.l.b16 %v274
    %v3044 = vunpack.c.h.b16 %v274
    %v3045 = vunpack.c.l.b16 %v275
    %v3046 = vunpack.c.h.b16 %v275
    %v3047 = vunpack.c.l.b16 %v276
    %v3048 = vunpack.c.h.b16 %v276
    %v3049 = vunpack.c.l.b16 %v277
    %v3050 = vunpack.c.h.b16 %v277
    %v3051 = vunpack.c.l.b16 %v278
    %v3052 = vunpack.c.h.b16 %v278
    %v3053 = vunpack.c.l.b16 %v279
    %v3054 = vunpack.c.h.b16 %v279
    %v3055 = vunpack.c.l.b16 %v280
    %v3056 = vunpack.c.h.b16 %v280
    %v3057 = vunpack.c.l.b16 %v281
    %v3058 = vunpack.c.h.b16 %v281
    %v3059 = vunpack.c.l.b16 %v282
    %v3060 = vunpack.c.h.b16 %v282
    %v3061 = vunpack.c.l.b16 %v283
    %v3062 = vunpack.c.h.b16 %v283
    %v3063 = vunpack.c.l.b16 %v284
    %v3064 = vunpack.c.h.b16 %v284
    %v3065 = vunpack.c.l.b16 %v285
    %v3066 = vunpack.c.h.b16 %v285
    %v3067 = vunpack.c.l.b16 %v286
    %v3068 = vunpack.c.h.b16 %v286
    %v3069 = vunpack.c.l.b16 %v287
    %v3070 = vunpack.c.h.b16 %v287
    %v3071 = vunpack.c.l.b16 %v288
    %v3072 = vunpack.c.h.b16 %v288
    %v3073 = vunpack.c.l.b16 %v289
    %v3074 = vunpack.c.h.b16 %v289
    %v3075 = vunpack.c.l.b16 %v290
    %v3076 = vunpack.c.h.b16 %v290
    %v3077 = vunpack.c.l.b16 %v291
    %v3078 = vunpack.c.h.b16 %v291
    %v3079 = vunpack.c.l.b16 %v292
    %v3080 = vunpack.c.h.b16 %v292
    %v3081 = vunpack.c.l.b16 %v293
    %v3082 = vunpack.c.h.b16 %v293
    %v3083 = vunpack.c.l.b16 %v294
    %v3084 = vunpack.c.h.b16 %v294
    %v3085 = vunpack.c.l.b16 %v295
    %v3086 = vunpack.c.h.b16 %v295
    %v3087 = vunpack.c.l.b16 %v296
    %v3088 = vunpack.c.h.b16 %v296
    %v3089 = vunpack.c.l.b16 %v297
    %v3090 = vunpack.c.h.b16 %v297
    %v3091 = vunpack.c.l.b16 %v298
    %v3092 = vunpack.c.h.b16 %v298
    %v3093 = vunpack.c.l.b16 %v299
    %v3094 = vunpack.c.h.b16 %v299
    %v3095 = vunpack.c.l.b16 %v300
    %v3096 = vunpack.c.h.b16 %v300
    %v3097 = vunpack.c.l.b16 %v301
    %v3098 = vunpack.c.h.b16 %v301
    %v3099 = vunpack.c.l.b16 %v302
    %v3100 = vunpack.c.h.b16 %v302
    %v3101 = vunpack.c.l.b16 %v303
    %v3102 = vunpack.c.h.b16 %v303
    %v3103 = vunpack.c.l.b16 %v304
    %v3104 = vunpack.c.h.b16 %v304
    %v3105 = vunpack.c.l.b16 %v305
    %v3106 = vunpack.c.h.b16 %v305
    %v3107 = vunpack.c.l.b16 %v306
    %v3108 = vunpack.c.h.b16 %v306
    %v3109 = vunpack.c.l.b16 %v307
    %v3110 = vunpack.c.h.b16 %v307
    %v3111 = vunpack.c.l.b16 %v308
    %v3112 = vunpack.c.h.b16 %v308
    %v3113 = vunpack.c.l.b16 %v309
    %v3114 = vunpack.c.h.b16 %v309
    %v3115 = vunpack.c.l.b16 %v310
    %v3116 = vunpack.c.h.b16 %v310
    %v3117 = vunpack.c.l.b16 %v311
    %v3118 = vunpack.c.h.b16 %v311
    %v3119 = vunpack.c.l.b16 %v312
    %v3120 = vunpack.c.h.b16 %v312
    %v3121 = vunpack.c.l.b16 %v313
    %v3122 = vunpack.c.h.b16 %v313
    %v3123 = vunpack.c.l.b16 %v314
    %v3124 = vunpack.c.h.b16 %v314
    %v3125 = vunpack.c.l.b16 %v315
    %v3126 = vunpack.c.h.b16 %v315
    %v3127 = vunpack.c.l.b16 %v316
    %v3128 = vunpack.c.h.b16 %v316
    %v3129 = vunpack.c.l.b16 %v317
    %v3130 = vunpack.c.h.b16 %v317
    %v3131 = vunpack.c.l.b16 %v318
    %v3132 = vunpack.c.h.b16 %v318
    %v3133 = vunpack.c.l.b16 %v319
    %v3134 = vunpack.c.h.b16 %v319
    %v3135 = vunpack.c.l.b16 %v320
    %v3136 = vunpack.c.h.b16 %v320
    %v3137 = vunpack.c.l.b16 %v321
    %v3138 = vunpack.c.h.b16 %v321
    %v3139 = vunpack.c.l.b16 %v322
    %v3140 = vunpack.c.h.b16 %v322
    %v3141 = vunpack.c.l.b16 %v323
    %v3142 = vunpack.c.h.b16 %v323
    %v3143 = vunpack.c.l.b16 %v324
    %v3144 = vunpack.c.h.b16 %v324
    %v3145 = vunpack.c.l.b16 %v325
    %v3146 = vunpack.c.h.b16 %v325
    %v3147 = vunpack.c.l.b16 %v326
    %v3148 = vunpack.c.h.b16 %v326
    %v3149 = vunpack.c.l.b16 %v327
    %v3150 = vunpack.c.h.b16 %v327
    %v3151 = vunpack.c.l.b16 %v328
    %v3152 = vunpack.c.h.b16 %v328
    %v3153 = vunpack.c.l.b16 %v329
    %v3154 = vunpack.c.h.b16 %v329
    %v3155 = vunpack.c.l.b16 %v330
    %v3156 = vunpack.c.h.b16 %v330
    %v3157 = vunpack.c.l.b16 %v331
    %v3158 = vunpack.c.h.b16 %v331
    %v3159 = vunpack.c.l.b16 %v332
    %v3160 = vunpack.c.h.b16 %v332
    %v3161 = vunpack.c.l.b16 %v333
    %v3162 = vunpack.c.h.b16 %v333
    %v3163 = vunpack.c.l.b16 %v334
    %v3164 = vunpack.c.h.b16 %v334
    %v3165 = vunpack.c.l.b16 %v335
    %v3166 = vunpack.c.h.b16 %v335
    %v3167 = vunpack.c.l.b16 %v336
    %v3168 = vunpack.c.h.b16 %v336
    %v3169 = vunpack.c.l.b16 %v337
    %v3170 = vunpack.c.h.b16 %v337
    %v3171 = vunpack.c.l.b16 %v338
    %v3172 = vunpack.c.h.b16 %v338
    %v3173 = vunpack.c.l.b16 %v339
    %v3174 = vunpack.c.h.b16 %v339
    %v3175 = vunpack.c.l.b16 %v340
    %v3176 = vunpack.c.h.b16 %v340
    %v3177 = vunpack.c.l.b16 %v341
    %v3178 = vunpack.c.h.b16 %v341
    %v3179 = vunpack.c.l.b16 %v342
    %v3180 = vunpack.c.h.b16 %v342
    %v3181 = vunpack.c.l.b16 %v343
    %v3182 = vunpack.c.h.b16 %v343
    %v3183 = vunpack.c.l.b16 %v344
    %v3184 = vunpack.c.h.b16 %v344
    %v3185 = vunpack.c.l.b16 %v345
    %v3186 = vunpack.c.h.b16 %v345
    %v3187 = vunpack.c.l.b16 %v346
    %v3188 = vunpack.c.h.b16 %v346
    %v3189 = vunpack.c.l.b16 %v347
    %v3190 = vunpack.c.h.b16 %v347
    %v3191 = vunpack.c.l.b16 %v348
    %v3192 = vunpack.c.h.b16 %v348
    %v3193 = vunpack.c.l.b16 %v349
    %v3194 = vunpack.c.h.b16 %v349
    %v3195 = vunpack.c.l.b16 %v350
    %v3196 = vunpack.c.h.b16 %v350
    %v3197 = vunpack.c.l.b16 %v351
    %v3198 = vunpack.c.h.b16 %v351
    %v3199 = vunpack.c.l.b16 %v352
    %v3200 = vunpack.c.h.b16 %v352
    %v3201 = vunpack.c.l.b16 %v353
    %v3202 = vunpack.c.h.b16 %v353
    %v3203 = vunpack.c.l.b16 %v354
    %v3204 = vunpack.c.h.b16 %v354
    %v3205 = vunpack.c.l.b16 %v355
    %v3206 = vunpack.c.h.b16 %v355
    %v3207 = vunpack.c.l.b16 %v356
    %v3208 = vunpack.c.h.b16 %v356
    %v3209 = vunpack.c.l.b16 %v357
    %v3210 = vunpack.c.h.b16 %v357
    %v3211 = vunpack.c.l.b16 %v358
    %v3212 = vunpack.c.h.b16 %v358
    %v3213 = vunpack.c.l.b16 %v359
    %v3214 = vunpack.c.h.b16 %v359
    %v3215 = vunpack.c.l.b16 %v360
    %v3216 = vunpack.c.h.b16 %v360
    %v3217 = vunpack.c.l.b16 %v361
    %v3218 = vunpack.c.h.b16 %v361
    %v3219 = vunpack.c.l.b16 %v362
    %v3220 = vunpack.c.h.b16 %v362
    %v3221 = vunpack.c.l.b16 %v363
    %v3222 = vunpack.c.h.b16 %v363
    %v3223 = vunpack.c.l.b16 %v364
    %v3224 = vunpack.c.h.b16 %v364
    %v3225 = vunpack.c.l.b16 %v365
    %v3226 = vunpack.c.h.b16 %v365
    %v3227 = vunpack.c.l.b16 %v366
    %v3228 = vunpack.c.h.b16 %v366
    %v3229 = vunpack.c.l.b16 %v367
    %v3230 = vunpack.c.h.b16 %v367
    %v3231 = vunpack.c.l.b16 %v368
    %v3232 = vunpack.c.h.b16 %v368
    %v3233 = vunpack.c.l.b16 %v369
    %v3234 = vunpack.c.h.b16 %v369
    %v3235 = vunpack.c.l.b16 %v370
    %v3236 = vunpack.c.h.b16 %v370
    %v3237 = vunpack.c.l.b16 %v371
    %v3238 = vunpack.c.h.b16 %v371
    %v3239 = vunpack.c.l.b16 %v372
    %v3240 = vunpack.c.h.b16 %v372
    %v3241 = vunpack.c.l.b16 %v373
    %v3242 = vunpack.c.h.b16 %v373
    %v3243 = vunpack.c.l.b16 %v374
    %v3244 = vunpack.c.h.b16 %v374
    %v3245 = vunpack.c.l.b16 %v375
    %v3246 = vunpack.c.h.b16 %v375
    %v3247 = vunpack.c.l.b16 %v376
    %v3248 = vunpack.c.h.b16 %v376
    %v3249 = vunpack.c.l.b16 %v377
    %v3250 = vunpack.c.h.b16 %v377
    %v3251 = vunpack.c.l.b16 %v378
    %v3252 = vunpack.c.h.b16 %v378
    %v3253 = vunpack.c.l.b16 %v379
    %v3254 = vunpack.c.h.b16 %v379
    %v3255 = vunpack.c.l.b16 %v380
    %v3256 = vunpack.c.h.b16 %v380
    %v3257 = vunpack.c.l.b16 %v381
    %v3258 = vunpack.c.h.b16 %v381
    %v3259 = vunpack.c.l.b16 %v382
    %v3260 = vunpack.c.h.b16 %v382
    %v3261 = vunpack.c.l.b16 %v383
    %v3262 = vunpack.c.h.b16 %v383
    %v3263 = vunpack.c.l.b16 %v384
    %v3264 = vunpack.c.h.b16 %v384
    %v3265 = vunpack.c.l.b16 %v385
    %v3266 = vunpack.c.h.b16 %v385
    %v3267 = vunpack.c.l.b16 %v386
    %v3268 = vunpack.c.h.b16 %v386
    %v3269 = vunpack.c.l.b16 %v387
    %v3270 = vunpack.c.h.b16 %v387
    %v3271 = vunpack.c.l.b16 %v388
    %v3272 = vunpack.c.h.b16 %v388
    %v3273 = vunpack.c.l.b16 %v389
    %v3274 = vunpack.c.h.b16 %v389
    %v3275 = vunpack.c.l.b16 %v390
    %v3276 = vunpack.c.h.b16 %v390
    %v3277 = vunpack.c.l.b16 %v391
    %v3278 = vunpack.c.h.b16 %v391
    %v3279 = vunpack.c.l.b16 %v392
    %v3280 = vunpack.c.h.b16 %v392
    %v3281 = vunpack.c.l.b16 %v393
    %v3282 = vunpack.c.h.b16 %v393
    %v3283 = vunpack.c.l.b16 %v394
    %v3284 = vunpack.c.h.b16 %v394
    %v3285 = vunpack.c.l.b16 %v395
    %v3286 = vunpack.c.h.b16 %v395
    %v3287 = vunpack.c.l.b16 %v396
    %v3288 = vunpack.c.h.b16 %v396
    %v3289 = vunpack.c.l.b16 %v397
    %v3290 = vunpack.c.h.b16 %v397
    %v3291 = vunpack.c.l.b16 %v398
    %v3292 = vunpack.c.h.b16 %v398
    %v3293 = vunpack.c.l.b16 %v399
    %v3294 = vunpack.c.h.b16 %v399
    %v3295 = vunpack.c.l.b16 %v400
    %v3296 = vunpack.c.h.b16 %v400
    %v3297 = vunpack.c.l.b16 %v401
    %v3298 = vunpack.c.h.b16 %v401
    %v3299 = vunpack.c.l.b16 %v402
    %v3300 = vunpack.c.h.b16 %v402
    %v3301 = vunpack.c.l.b16 %v403
    %v3302 = vunpack.c.h.b16 %v403
    %v3303 = vunpack.c.l.b16 %v404
    %v3304 = vunpack.c.h.b16 %v404
    %v3305 = vunpack.c.l.b16 %v405
    %v3306 = vunpack.c.h.b16 %v405
    %v3307 = vunpack.c.l.b16 %v406
    %v3308 = vunpack.c.h.b16 %v406
    %v3309 = vunpack.c.l.b16 %v407
    %v3310 = vunpack.c.h.b16 %v407
    %v3311 = vunpack.c.l.b16 %v408
    %v3312 = vunpack.c.h.b16 %v408
    %v3313 = vunpack.c.l.b16 %v409
    %v3314 = vunpack.c.h.b16 %v409
    %v3315 = vunpack.c.l.b16 %v410
    %v3316 = vunpack.c.h.b16 %v410
    %v3317 = vunpack.c.l.b16 %v411
    %v3318 = vunpack.c.h.b16 %v411
    %v3319 = vunpack.c.l.b16 %v412
    %v3320 = vunpack.c.h.b16 %v412
    %v3321 = vunpack.c.l.b16 %v413
    %v3322 = vunpack.c.h.b16 %v413
    %v3323 = vunpack.c.l.b16 %v414
    %v3324 = vunpack.c.h.b16 %v414
    %v3325 = vunpack.c.l.b16 %v415
    %v3326 = vunpack.c.h.b16 %v415
    %v3327 = vunpack.c.l.b16 %v416
    %v3328 = vunpack.c.h.b16 %v416
    %v3329 = vunpack.c.l.b16 %v417
    %v3330 = vunpack.c.h.b16 %v417
    %v3331 = vunpack.c.l.b16 %v418
    %v3332 = vunpack.c.h.b16 %v418
    %v3333 = vunpack.c.l.b16 %v419
    %v3334 = vunpack.c.h.b16 %v419
    %v3335 = vunpack.c.l.b16 %v420
    %v3336 = vunpack.c.h.b16 %v420
    %v3337 = vunpack.c.l.b16 %v421
    %v3338 = vunpack.c.h.b16 %v421
    %v3339 = vunpack.c.l.b16 %v422
    %v3340 = vunpack.c.h.b16 %v422
    %v3341 = vunpack.c.l.b16 %v423
    %v3342 = vunpack.c.h.b16 %v423
    %v3343 = vunpack.c.l.b16 %v424
    %v3344 = vunpack.c.h.b16 %v424
    %v3345 = vunpack.c.l.b16 %v425
    %v3346 = vunpack.c.h.b16 %v425
    %v3347 = vunpack.c.l.b16 %v426
    %v3348 = vunpack.c.h.b16 %v426
    %v3349 = vunpack.c.l.b16 %v427
    %v3350 = vunpack.c.h.b16 %v427
    %v3351 = vunpack.c.l.b16 %v428
    %v3352 = vunpack.c.h.b16 %v428
    %v3353 = vunpack.c.l.b16 %v429
    %v3354 = vunpack.c.h.b16 %v429
    %v3355 = vunpack.c.l.b16 %v430
    %v3356 = vunpack.c.h.b16 %v430
    %v3357 = vunpack.c.l.b16 %v431
    %v3358 = vunpack.c.h.b16 %v431
    %v3359 = vunpack.c.l.b16 %v432
    %v3360 = vunpack.c.h.b16 %v432
    %v3361 = vunpack.c.l.b16 %v433
    %v3362 = vunpack.c.h.b16 %v433
    %v3363 = vunpack.c.l.b16 %v434
    %v3364 = vunpack.c.h.b16 %v434
    %v3365 = vunpack.c.l.b16 %v435
    %v3366 = vunpack.c.h.b16 %v435
    %v3367 = vunpack.c.l.b16 %v436
    %v3368 = vunpack.c.h.b16 %v436
    %v3369 = vunpack.c.l.b16 %v437
    %v3370 = vunpack.c.h.b16 %v437
    %v3371 = vunpack.c.l.b16 %v438
    %v3372 = vunpack.c.h.b16 %v438
    %v3373 = vunpack.c.l.b16 %v439
    %v3374 = vunpack.c.h.b16 %v439
    %v3375 = vunpack.c.l.b16 %v440
    %v3376 = vunpack.c.h.b16 %v440
    %v3377 = vunpack.c.l.b16 %v441
    %v3378 = vunpack.c.h.b16 %v441
    %v3379 = vunpack.c.l.b16 %v442
    %v3380 = vunpack.c.h.b16 %v442
    %v3381 = vunpack.c.l.b16 %v443
    %v3382 = vunpack.c.h.b16 %v443
    %v3383 = vunpack.c.l.b16 %v444
    %v3384 = vunpack.c.h.b16 %v444
    %v3385 = vunpack.c.l.b16 %v445
    %v3386 = vunpack.c.h.b16 %v445
    %v3387 = vunpack.c.l.b16 %v446
    %v3388 = vunpack.c.h.b16 %v446
    %v3389 = vunpack.c.l.b16 %v447
    %v3390 = vunpack.c.h.b16 %v447
    %v3391 = vunpack.c.l.b16 %v448
    %v3392 = vunpack.c.h.b16 %v448
    %v3393 = vunpack.c.l.b16 %v449
    %v3394 = vunpack.c.h.b16 %v449
    %v3395 = vunpack.c.l.b16 %v450
    %v3396 = vunpack.c.h.b16 %v450
    %v3397 = vunpack.c.l.b16 %v451
    %v3398 = vunpack.c.h.b16 %v451
    %v3399 = vunpack.c.l.b16 %v452
    %v3400 = vunpack.c.h.b16 %v452
    %v3401 = vunpack.c.l.b16 %v453
    %v3402 = vunpack.c.h.b16 %v453
    %v3403 = vunpack.c.l.b16 %v454
    %v3404 = vunpack.c.h.b16 %v454
    %v3405 = vunpack.c.l.b16 %v455
    %v3406 = vunpack.c.h.b16 %v455
    %v3407 = vunpack.c.l.b16 %v456
    %v3408 = vunpack.c.h.b16 %v456
    %v3409 = vunpack.c.l.b16 %v457
    %v3410 = vunpack.c.h.b16 %v457
    %v3411 = vunpack.c.l.b16 %v458
    %v3412 = vunpack.c.h.b16 %v458
    %v3413 = vunpack.c.l.b16 %v459
    %v3414 = vunpack.c.h.b16 %v459
    %v3415 = vunpack.c.l.b16 %v460
    %v3416 = vunpack.c.h.b16 %v460
    %v3417 = vunpack.c.l.b16 %v461
    %v3418 = vunpack.c.h.b16 %v461
    %v3419 = vunpack.c.l.b16 %v462
    %v3420 = vunpack.c.h.b16 %v462
    %v3421 = vunpack.c.l.b16 %v463
    %v3422 = vunpack.c.h.b16 %v463
    %v3423 = vunpack.c.l.b16 %v464
    %v3424 = vunpack.c.h.b16 %v464
    %v3425 = vunpack.c.l.b16 %v465
    %v3426 = vunpack.c.h.b16 %v465
    %v3427 = vunpack.c.l.b16 %v466
    %v3428 = vunpack.c.h.b16 %v466
    %v3429 = vunpack.c.l.b16 %v467
    %v3430 = vunpack.c.h.b16 %v467
    %v3431 = vunpack.c.l.b16 %v468
    %v3432 = vunpack.c.h.b16 %v468
    %v3433 = vunpack.c.l.b16 %v469
    %v3434 = vunpack.c.h.b16 %v469
    %v3435 = vunpack.c.l.b16 %v470
    %v3436 = vunpack.c.h.b16 %v470
    %v3437 = vunpack.c.l.b16 %v471
    %v3438 = vunpack.c.h.b16 %v471
    %v3439 = vunpack.c.l.b16 %v472
    %v3440 = vunpack.c.h.b16 %v472
    %v3441 = vunpack.c.l.b16 %v473
    %v3442 = vunpack.c.h.b16 %v473
    %v3443 = vunpack.c.l.b16 %v474
    %v3444 = vunpack.c.h.b16 %v474
    %v3445 = vunpack.c.l.b16 %v475
    %v3446 = vunpack.c.h.b16 %v475
    %v3447 = vunpack.c.l.b16 %v476
    %v3448 = vunpack.c.h.b16 %v476
    %v3449 = vunpack.c.l.b16 %v477
    %v3450 = vunpack.c.h.b16 %v477
    %v3451 = vunpack.c.l.b16 %v478
    %v3452 = vunpack.c.h.b16 %v478
    %v3453 = vunpack.c.l.b16 %v479
    %v3454 = vunpack.c.h.b16 %v479
    %v3455 = vunpack.c.l.b16 %v480
    %v3456 = vunpack.c.h.b16 %v480
    %v3457 = vunpack.c.l.b16 %v481
    %v3458 = vunpack.c.h.b16 %v481
    %v3459 = vunpack.c.l.b16 %v482
    %v3460 = vunpack.c.h.b16 %v482
    %v3461 = vunpack.c.l.b16 %v483
    %v3462 = vunpack.c.h.b16 %v483
    %v3463 = vunpack.c.l.b16 %v484
    %v3464 = vunpack.c.h.b16 %v484
    %v3465 = vunpack.c.l.b16 %v485
    %v3466 = vunpack.c.h.b16 %v485
    %v3467 = vunpack.c.l.b16 %v486
    %v3468 = vunpack.c.h.b16 %v486
    %v3469 = vunpack.c.l.b16 %v487
    %v3470 = vunpack.c.h.b16 %v487
    %v3471 = vunpack.c.l.b16 %v488
    %v3472 = vunpack.c.h.b16 %v488
    %v3473 = vunpack.c.l.b16 %v489
    %v3474 = vunpack.c.h.b16 %v489
    %v3475 = vunpack.c.l.b16 %v490
    %v3476 = vunpack.c.h.b16 %v490
    %v3477 = vunpack.c.l.b16 %v491
    %v3478 = vunpack.c.h.b16 %v491
    %v3479 = vunpack.c.l.b16 %v492
    %v3480 = vunpack.c.h.b16 %v492
    %v3481 = vunpack.c.l.b16 %v493
    %v3482 = vunpack.c.h.b16 %v493
    %v3483 = vunpack.c.l.b16 %v494
    %v3484 = vunpack.c.h.b16 %v494
    %v3485 = vunpack.c.l.b16 %v495
    %v3486 = vunpack.c.h.b16 %v495
    %v3487 = vunpack.c.l.b16 %v496
    %v3488 = vunpack.c.h.b16 %v496
    %v3489 = vunpack.c.l.b16 %v497
    %v3490 = vunpack.c.h.b16 %v497
    %v3491 = vunpack.c.l.b16 %v498
    %v3492 = vunpack.c.h.b16 %v498
    %v3493 = vunpack.c.l.b16 %v499
    %v3494 = vunpack.c.h.b16 %v499
    %v3495 = vunpack.c.l.b16 %v500
    %v3496 = vunpack.c.h.b16 %v500
    %v3497 = vunpack.c.l.b16 %v501
    %v3498 = vunpack.c.h.b16 %v501
    %v3499 = vunpack.c.l.b16 %v502
    %v3500 = vunpack.c.h.b16 %v502
    %v3501 = vunpack.c.l.b16 %v503
    %v3502 = vunpack.c.h.b16 %v503
    %v3503 = vunpack.c.l.b16 %v504
    %v3504 = vunpack.c.h.b16 %v504
    %v3505 = vunpack.c.l.b16 %v505
    %v3506 = vunpack.c.h.b16 %v505
    %v3507 = vunpack.c.l.b16 %v506
    %v3508 = vunpack.c.h.b16 %v506
    %v3509 = vunpack.c.l.b16 %v507
    %v3510 = vunpack.c.h.b16 %v507
    %v3511 = vunpack.c.l.b16 %v508
    %v3512 = vunpack.c.h.b16 %v508
    %v3513 = vunpack.c.l.b16 %v509
    %v3514 = vunpack.c.h.b16 %v509
    %v3515 = vunpack.c.l.b16 %v510
    %v3516 = vunpack.c.h.b16 %v510
    %v3517 = vunpack.c.l.b16 %v511
    %v3518 = vunpack.c.h.b16 %v511
    %v3519 = vunpack.c.l.b16 %v512
    %v3520 = vunpack.c.h.b16 %v512
    %v3521 = vunpack.c.l.b16 %v513
    %v3522 = vunpack.c.h.b16 %v513
    %v3523 = vunpack.c.l.b16 %v514
    %v3524 = vunpack.c.h.b16 %v514
    %v3525 = vunpack.c.l.b16 %v515
    %v3526 = vunpack.c.h.b16 %v515
    %v3527 = vunpack.c.l.b16 %v516
    %v3528 = vunpack.c.h.b16 %v516
    %v3529 = vunpack.c.l.b16 %v517
    %v3530 = vunpack.c.h.b16 %v517
    %v3531 = vunpack.c.l.b16 %v518
    %v3532 = vunpack.c.h.b16 %v518
    %v3533 = vunpack.c.l.b16 %v519
    %v3534 = vunpack.c.h.b16 %v519
    %v3535 = vunpack.c.l.b16 %v520
    %v3536 = vunpack.c.h.b16 %v520
    %v3537 = vunpack.c.l.b16 %v521
    %v3538 = vunpack.c.h.b16 %v521
    %v3539 = vunpack.c.l.b16 %v522
    %v3540 = vunpack.c.h.b16 %v522
    %v3541 = vunpack.c.l.b16 %v523
    %v3542 = vunpack.c.h.b16 %v523
    %v3543 = vunpack.c.l.b16 %v524
    %v3544 = vunpack.c.h.b16 %v524
    %v3545 = vunpack.c.l.b16 %v525
    %v3546 = vunpack.c.h.b16 %v525
    %v3547 = vunpack.c.l.b16 %v526
    %v3548 = vunpack.c.h.b16 %v526
    %v3549 = vunpack.c.l.b16 %v527
    %v3550 = vunpack.c.h.b16 %v527
    %v3551 = vunpack.c.l.b16 %v528
    %v3552 = vunpack.c.h.b16 %v528
    %v3553 = vunpack.c.l.b16 %v529
    %v3554 = vunpack.c.h.b16 %v529
    %v3555 = vunpack.c.l.b16 %v530
    %v3556 = vunpack.c.h.b16 %v530
    %v3557 = vunpack.c.l.b16 %v531
    %v3558 = vunpack.c.h.b16 %v531
    %v3559 = vunpack.c.l.b16 %v532
    %v3560 = vunpack.c.h.b16 %v532
    %v3561 = vunpack.c.l.b16 %v533
    %v3562 = vunpack.c.h.b16 %v533
    %v3563 = vunpack.c.l.b16 %v534
    %v3564 = vunpack.c.h.b16 %v534
    %v3565 = vunpack.c.l.b16 %v535
    %v3566 = vunpack.c.h.b16 %v535
    %v3567 = vunpack.c.l.b16 %v536
    %v3568 = vunpack.c.h.b16 %v536
    %v3569 = vunpack.c.l.b16 %v537
    %v3570 = vunpack.c.h.b16 %v537
    %v3571 = vunpack.c.l.b16 %v538
    %v3572 = vunpack.c.h.b16 %v538
    %v3573 = vunpack.c.l.b16 %v539
    %v3574 = vunpack.c.h.b16 %v539
    %v3575 = vunpack.c.l.b16 %v540
    %v3576 = vunpack.c.h.b16 %v540
    %v3577 = vunpack.c.l.b16 %v541
    %v3578 = vunpack.c.h.b16 %v541
    %v3579 = vunpack.c.l.b16 %v542
    %v3580 = vunpack.c.h.b16 %v542
    %v3581 = vunpack.c.l.b16 %v543
    %v3582 = vunpack.c.h.b16 %v543
    %v3583 = vunpack.c.l.b16 %v544
    %v3584 = vunpack.c.h.b16 %v544
    %v3585 = vunpack.c.l.b16 %v545
    %v3586 = vunpack.c.h.b16 %v545
    %v3587 = vunpack.c.l.b16 %v546
    %v3588 = vunpack.c.h.b16 %v546
    %v3589 = vunpack.c.l.b16 %v547
    %v3590 = vunpack.c.h.b16 %v547
    %v3591 = vunpack.c.l.b16 %v548
    %v3592 = vunpack.c.h.b16 %v548
    %v3593 = vunpack.c.l.b16 %v549
    %v3594 = vunpack.c.h.b16 %v549
    %v3595 = vunpack.c.l.b16 %v550
    %v3596 = vunpack.c.h.b16 %v550
    %v3597 = vunpack.c.l.b16 %v551
    %v3598 = vunpack.c.h.b16 %v551
    %v3599 = vunpack.c.l.b16 %v552
    %v3600 = vunpack.c.h.b16 %v552
    %v3601 = vunpack.c.l.b16 %v553
    %v3602 = vunpack.c.h.b16 %v553
    %v3603 = vunpack.c.l.b16 %v554
    %v3604 = vunpack.c.h.b16 %v554
    %v3605 = vunpack.c.l.b16 %v555
    %v3606 = vunpack.c.h.b16 %v555
    %v3607 = vunpack.c.l.b16 %v556
    %v3608 = vunpack.c.h.b16 %v556
    %v3609 = vunpack.c.l.b16 %v557
    %v3610 = vunpack.c.h.b16 %v557
    %v3611 = vunpack.c.l.b16 %v558
    %v3612 = vunpack.c.h.b16 %v558
    %v3613 = vunpack.c.l.b16 %v559
    %v3614 = vunpack.c.h.b16 %v559
    %v3615 = vunpack.c.l.b16 %v560
    %v3616 = vunpack.c.h.b16 %v560
    %v3617 = vunpack.c.l.b16 %v561
    %v3618 = vunpack.c.h.b16 %v561
    %v3619 = vunpack.c.l.b16 %v562
    %v3620 = vunpack.c.h.b16 %v562
    %v3621 = vunpack.c.l.b16 %v563
    %v3622 = vunpack.c.h.b16 %v563
    %v3623 = vunpack.c.l.b16 %v564
    %v3624 = vunpack.c.h.b16 %v564
    %v3625 = vunpack.c.l.b16 %v565
    %v3626 = vunpack.c.h.b16 %v565
    %v3627 = vunpack.c.l.b16 %v566
    %v3628 = vunpack.c.h.b16 %v566
    %v3629 = vunpack.c.l.b16 %v567
    %v3630 = vunpack.c.h.b16 %v567
    %v3631 = vunpack.c.l.b16 %v568
    %v3632 = vunpack.c.h.b16 %v568
    %v3633 = vunpack.c.l.b16 %v569
    %v3634 = vunpack.c.h.b16 %v569
    %v3635 = vunpack.c.l.b16 %v570
    %v3636 = vunpack.c.h.b16 %v570
    %v3637 = vunpack.c.l.b16 %v571
    %v3638 = vunpack.c.h.b16 %v571
    %v3639 = vunpack.c.l.b16 %v572
    %v3640 = vunpack.c.h.b16 %v572
    %v3641 = vunpack.c.l.b16 %v573
    %v3642 = vunpack.c.h.b16 %v573
    %v3643 = vunpack.c.l.b16 %v574
    %v3644 = vunpack.c.h.b16 %v574
    %v3645 = vunpack.c.l.b16 %v575
    %v3646 = vunpack.c.h.b16 %v575
    %v3647 = vunpack.c.l.b16 %v576
    %v3648 = vunpack.c.h.b16 %v576
    %v3649 = vunpack.c.l.b16 %v577
    %v3650 = vunpack.c.h.b16 %v577
    %v3651 = vunpack.c.l.b16 %v578
    %v3652 = vunpack.c.h.b16 %v578
    %v3653 = vunpack.c.l.b16 %v579
    %v3654 = vunpack.c.h.b16 %v579
    %v3655 = vunpack.c.l.b16 %v580
    %v3656 = vunpack.c.h.b16 %v580
    %v3657 = vunpack.c.l.b16 %v581
    %v3658 = vunpack.c.h.b16 %v581
    %v3659 = vunpack.c.l.b16 %v582
    %v3660 = vunpack.c.h.b16 %v582
    %v3661 = vunpack.c.l.b16 %v583
    %v3662 = vunpack.c.h.b16 %v583
    %v3663 = vunpack.c.l.b16 %v584
    %v3664 = vunpack.c.h.b16 %v584
    %v3665 = vunpack.c.l.b16 %v585
    %v3666 = vunpack.c.h.b16 %v585
    %v3667 = vunpack.c.l.b16 %v586
    %v3668 = vunpack.c.h.b16 %v586
    %v3669 = vunpack.c.l.b16 %v587
    %v3670 = vunpack.c.h.b16 %v587
    %v3671 = vunpack.c.l.b16 %v588
    %v3672 = vunpack.c.h.b16 %v588
    %v3673 = vunpack.c.l.b16 %v589
    %v3674 = vunpack.c.h.b16 %v589
    %v3675 = vunpack.c.l.b16 %v590
    %v3676 = vunpack.c.h.b16 %v590
    %v3677 = vunpack.c.l.b16 %v591
    %v3678 = vunpack.c.h.b16 %v591
    %v3679 = vunpack.c.l.b16 %v592
    %v3680 = vunpack.c.h.b16 %v592
    %v3681 = vunpack.c.l.b16 %v593
    %v3682 = vunpack.c.h.b16 %v593
    %v3683 = vunpack.c.l.b16 %v594
    %v3684 = vunpack.c.h.b16 %v594
    %v3685 = vunpack.c.l.b16 %v595
    %v3686 = vunpack.c.h.b16 %v595
    %v3687 = vunpack.c.l.b16 %v596
    %v3688 = vunpack.c.h.b16 %v596
    %v3689 = vunpack.c.l.b16 %v597
    %v3690 = vunpack.c.h.b16 %v597
    %v3691 = vunpack.c.l.b16 %v598
    %v3692 = vunpack.c.h.b16 %v598
    %v3693 = vunpack.c.l.b16 %v599
    %v3694 = vunpack.c.h.b16 %v599
    %v3695 = vunpack.c.l.b16 %v600
    %v3696 = vunpack.c.h.b16 %v600
    %v3697 = vunpack.c.l.b16 %v601
    %v3698 = vunpack.c.h.b16 %v601
    %v3699 = vunpack.c.l.b16 %v602
    %v3700 = vunpack.c.h.b16 %v602
    %v3701 = vunpack.c.l.b16 %v603
    %v3702 = vunpack.c.h.b16 %v603
    %v3703 = vunpack.c.l.b16 %v604
    %v3704 = vunpack.c.h.b16 %v604
    %v3705 = vunpack.c.l.b16 %v605
    %v3706 = vunpack.c.h.b16 %v605
    %v3707 = vunpack.c.l.b16 %v606
    %v3708 = vunpack.c.h.b16 %v606
    %v3709 = vunpack.c.l.b16 %v607
    %v3710 = vunpack.c.h.b16 %v607
    %v3711 = vunpack.c.l.b16 %v608
    %v3712 = vunpack.c.h.b16 %v608
    %v3713 = vunpack.c.l.b16 %v609
    %v3714 = vunpack.c.h.b16 %v609
    %v3715 = vunpack.c.l.b16 %v610
    %v3716 = vunpack.c.h.b16 %v610
    %v3717 = vunpack.c.l.b16 %v611
    %v3718 = vunpack.c.h.b16 %v611
    %v3719 = vunpack.c.l.b16 %v612
    %v3720 = vunpack.c.h.b16 %v612
    %v3721 = vunpack.c.l.b16 %v613
    %v3722 = vunpack.c.h.b16 %v613
    %v3723 = vunpack.c.l.b16 %v614
    %v3724 = vunpack.c.h.b16 %v614
    %v3725 = vunpack.c.l.b16 %v615
    %v3726 = vunpack.c.h.b16 %v615
    %v3727 = vunpack.c.l.b16 %v616
    %v3728 = vunpack.c.h.b16 %v616
    %v3729 = vunpack.c.l.b16 %v617
    %v3730 = vunpack.c.h.b16 %v617
    %v3731 = vunpack.c.l.b16 %v618
    %v3732 = vunpack.c.h.b16 %v618
    %v3733 = vunpack.c.l.b16 %v619
    %v3734 = vunpack.c.h.b16 %v619
    %v3735 = vunpack.c.l.b16 %v620
    %v3736 = vunpack.c.h.b16 %v620
    %v3737 = vunpack.c.l.b16 %v621
    %v3738 = vunpack.c.h.b16 %v621
    %v3739 = vunpack.c.l.b16 %v622
    %v3740 = vunpack.c.h.b16 %v622
    %v3741 = vunpack.c.l.b16 %v623
    %v3742 = vunpack.c.h.b16 %v623
    %v3743 = vunpack.c.l.b16 %v624
    %v3744 = vunpack.c.h.b16 %v624
    %v3745 = vunpack.c.l.b16 %v625
    %v3746 = vunpack.c.h.b16 %v625
    %v3747 = vunpack.c.l.b16 %v626
    %v3748 = vunpack.c.h.b16 %v626
    %v3749 = vunpack.c.l.b16 %v627
    %v3750 = vunpack.c.h.b16 %v627
    %v3751 = vunpack.c.l.b16 %v628
    %v3752 = vunpack.c.h.b16 %v628
    %v3753 = vunpack.c.l.b16 %v629
    %v3754 = vunpack.c.h.b16 %v629
    %v3755 = vunpack.c.l.b16 %v630
    %v3756 = vunpack.c.h.b16 %v630
    %v3757 = vunpack.c.l.b16 %v631
    %v3758 = vunpack.c.h.b16 %v631
    %v3759 = vunpack.c.l.b16 %v632
    %v3760 = vunpack.c.h.b16 %v632
    %v3761 = vunpack.c.l.b16 %v633
    %v3762 = vunpack.c.h.b16 %v633
    %v3763 = vunpack.c.l.b16 %v634
    %v3764 = vunpack.c.h.b16 %v634
    %v3765 = vunpack.c.l.b16 %v635
    %v3766 = vunpack.c.h.b16 %v635
    %v3767 = vunpack.c.l.b16 %v636
    %v3768 = vunpack.c.h.b16 %v636
    %v3769 = vunpack.c.l.b16 %v637
    %v3770 = vunpack.c.h.b16 %v637
    %v3771 = vunpack.c.l.b16 %v638
    %v3772 = vunpack.c.h.b16 %v638
    %v3773 = vunpack.c.l.b16 %v639
    %v3774 = vunpack.c.h.b16 %v639
    %v3775 = vunpack.c.l.b16 %v640
    %v3776 = vunpack.c.h.b16 %v640
    %v3777 = vunpack.c.l.b16 %v641
    %v3778 = vunpack.c.h.b16 %v641
    %v3779 = vunpack.c.l.b16 %v642
    %v3780 = vunpack.c.h.b16 %v642
    %v3781 = vunpack.c.l.b16 %v643
    %v3782 = vunpack.c.h.b16 %v643
    %v3783 = vunpack.c.l.b16 %v644
    %v3784 = vunpack.c.h.b16 %v644
    %v3785 = vunpack.c.l.b16 %v645
    %v3786 = vunpack.c.h.b16 %v645
    %v3787 = vunpack.c.l.b16 %v646
    %v3788 = vunpack.c.h.b16 %v646
    %v3789 = vunpack.c.l.b16 %v647
    %v3790 = vunpack.c.h.b16 %v647
    %v3791 = vunpack.c.l.b16 %v648
    %v3792 = vunpack.c.h.b16 %v648
    %v3793 = vunpack.c.l.b16 %v649
    %v3794 = vunpack.c.h.b16 %v649
    %v3795 = vunpack.c.l.b16 %v650
    %v3796 = vunpack.c.h.b16 %v650
    %v3797 = vunpack.c.l.b16 %v651
    %v3798 = vunpack.c.h.b16 %v651
    %v3799 = vunpack.c.l.b16 %v652
    %v3800 = vunpack.c.h.b16 %v652
    %v3801 = vunpack.c.l.b16 %v653
    %v3802 = vunpack.c.h.b16 %v653
    %v3803 = vunpack.c.l.b16 %v654
    %v3804 = vunpack.c.h.b16 %v654
    %v3805 = vunpack.c.l.b16 %v655
    %v3806 = vunpack.c.h.b16 %v655
    %v3807 = vunpack.c.l.b16 %v656
    %v3808 = vunpack.c.h.b16 %v656
    %v3809 = vunpack.c.l.b16 %v657
    %v3810 = vunpack.c.h.b16 %v657
    %v3811 = vunpack.c.l.b16 %v658
    %v3812 = vunpack.c.h.b16 %v658
    %v3813 = vunpack.c.l.b16 %v659
    %v3814 = vunpack.c.h.b16 %v659
    %v3815 = vunpack.c.l.b16 %v660
    %v3816 = vunpack.c.h.b16 %v660
    %v3817 = vunpack.c.l.b16 %v661
    %v3818 = vunpack.c.h.b16 %v661
    %v3819 = vunpack.c.l.b16 %v662
    %v3820 = vunpack.c.h.b16 %v662
    %v3821 = vunpack.c.l.b16 %v663
    %v3822 = vunpack.c.h.b16 %v663
    %v3823 = vunpack.c.l.b16 %v664
    %v3824 = vunpack.c.h.b16 %v664
    %v3825 = vunpack.c.l.b16 %v665
    %v3826 = vunpack.c.h.b16 %v665
    %v3827 = vunpack.c.l.b16 %v666
    %v3828 = vunpack.c.h.b16 %v666
    %v3829 = vunpack.c.l.b16 %v667
    %v3830 = vunpack.c.h.b16 %v667
    %v3831 = vunpack.c.l.b16 %v668
    %v3832 = vunpack.c.h.b16 %v668
    %v3833 = vunpack.c.l.b16 %v669
    %v3834 = vunpack.c.h.b16 %v669
    %v3835 = vunpack.c.l.b16 %v670
    %v3836 = vunpack.c.h.b16 %v670
    %v3837 = vunpack.c.l.b16 %v671
    %v3838 = vunpack.c.h.b16 %v671
    %v3839 = vunpack.c.l.b16 %v672
    %v3840 = vunpack.c.h.b16 %v672
    %v3841 = vunpack.c.l.b16 %v673
    %v3842 = vunpack.c.h.b16 %v673
    %v3843 = vunpack.c.l.b16 %v674
    %v3844 = vunpack.c.h.b16 %v674
    %v3845 = vunpack.c.l.b16 %v675
    %v3846 = vunpack.c.h.b16 %v675
    %v3847 = vunpack.c.l.b16 %v676
    %v3848 = vunpack.c.h.b16 %v676
    %v3849 = vunpack.c.l.b16 %v677
    %v3850 = vunpack.c.h.b16 %v677
    %v3851 = vunpack.c.l.b16 %v678
    %v3852 = vunpack.c.h.b16 %v678
    %v3853 = vunpack.c.l.b16 %v679
    %v3854 = vunpack.c.h.b16 %v679
    %v3855 = vunpack.c.l.b16 %v680
    %v3856 = vunpack.c.h.b16 %v680
    %v3857 = vunpack.c.l.b16 %v681
    %v3858 = vunpack.c.h.b16 %v681
    %v3859 = vunpack.c.l.b16 %v682
    %v3860 = vunpack.c.h.b16 %v682
    %v3861 = vunpack.c.l.b16 %v683
    %v3862 = vunpack.c.h.b16 %v683
    %v3863 = vunpack.c.l.b16 %v684
    %v3864 = vunpack.c.h.b16 %v684
    %v3865 = vunpack.c.l.b16 %v685
    %v3866 = vunpack.c.h.b16 %v685
    %v3867 = vunpack.c.l.b16 %v686
    %v3868 = vunpack.c.h.b16 %v686
    %v3869 = vunpack.c.l.b16 %v687
    %v3870 = vunpack.c.h.b16 %v687
    %v3871 = vunpack.c.l.b16 %v688
    %v3872 = vunpack.c.h.b16 %v688
    %v3873 = vunpack.c.l.b16 %v689
    %v3874 = vunpack.c.h.b16 %v689
    %v3875 = vunpack.c.l.b16 %v690
    %v3876 = vunpack.c.h.b16 %v690
    %v3877 = vunpack.c.l.b16 %v691
    %v3878 = vunpack.c.h.b16 %v691
    %v3879 = vunpack.c.l.b16 %v692
    %v3880 = vunpack.c.h.b16 %v692
    %v3881 = vunpack.c.l.b16 %v693
    %v3882 = vunpack.c.h.b16 %v693
    %v3883 = vunpack.c.l.b16 %v694
    %v3884 = vunpack.c.h.b16 %v694
    %v3885 = vunpack.c.l.b16 %v695
    %v3886 = vunpack.c.h.b16 %v695
    %v3887 = vunpack.c.l.b16 %v696
    %v3888 = vunpack.c.h.b16 %v696
    %v3889 = vunpack.c.l.b16 %v697
    %v3890 = vunpack.c.h.b16 %v697
    %v3891 = vunpack.c.l.b16 %v698
    %v3892 = vunpack.c.h.b16 %v698
    %v3893 = vunpack.c.l.b16 %v699
    %v3894 = vunpack.c.h.b16 %v699
    %v3895 = vunpack.c.l.b16 %v700
    %v3896 = vunpack.c.h.b16 %v700
    %v3897 = vunpack.c.l.b16 %v701
    %v3898 = vunpack.c.h.b16 %v701
    %v3899 = vunpack.c.l.b16 %v702
    %v3900 = vunpack.c.h.b16 %v702
    %v3901 = vunpack.c.l.b16 %v703
    %v3902 = vunpack.c.h.b16 %v703
    %v3903 = vunpack.c.l.b16 %v704
    %v3904 = vunpack.c.h.b16 %v704
    %v3905 = vunpack.c.l.b16 %v705
    %v3906 = vunpack.c.h.b16 %v705
    %v3907 = vunpack.c.l.b16 %v706
    %v3908 = vunpack.c.h.b16 %v706
    %v3909 = vunpack.c.l.b16 %v707
    %v3910 = vunpack.c.h.b16 %v707
    %v3911 = vunpack.c.l.b16 %v708
    %v3912 = vunpack.c.h.b16 %v708
    %v3913 = vunpack.c.l.b16 %v709
    %v3914 = vunpack.c.h.b16 %v709
    %v3915 = vunpack.c.l.b16 %v710
    %v3916 = vunpack.c.h.b16 %v710
    %v3917 = vunpack.c.l.b16 %v711
    %v3918 = vunpack.c.h.b16 %v711
    %v3919 = vunpack.c.l.b16 %v712
    %v3920 = vunpack.c.h.b16 %v712
    %v3921 = vunpack.c.l.b16 %v713
    %v3922 = vunpack.c.h.b16 %v713
    %v3923 = vunpack.c.l.b16 %v714
    %v3924 = vunpack.c.h.b16 %v714
    %v3925 = vunpack.c.l.b16 %v715
    %v3926 = vunpack.c.h.b16 %v715
    %v3927 = vunpack.c.l.b16 %v716
    %v3928 = vunpack.c.h.b16 %v716
    %v3929 = vunpack.c.l.b16 %v717
    %v3930 = vunpack.c.h.b16 %v717
    %v3931 = vunpack.c.l.b16 %v718
    %v3932 = vunpack.c.h.b16 %v718
    %v3933 = vunpack.c.l.b16 %v719
    %v3934 = vunpack.c.h.b16 %v719
    %v3935 = vunpack.c.l.b16 %v720
    %v3936 = vunpack.c.h.b16 %v720
    %v3937 = vunpack.c.l.b16 %v721
    %v3938 = vunpack.c.h.b16 %v721
    %v3939 = vunpack.c.l.b16 %v722
    %v3940 = vunpack.c.h.b16 %v722
    %v3941 = vunpack.c.l.b16 %v723
    %v3942 = vunpack.c.h.b16 %v723
    %v3943 = vunpack.c.l.b16 %v724
    %v3944 = vunpack.c.h.b16 %v724
    %v3945 = vunpack.c.l.b16 %v725
    %v3946 = vunpack.c.h.b16 %v725
    %v3947 = vunpack.c.l.b16 %v726
    %v3948 = vunpack.c.h.b16 %v726
    %v3949 = vunpack.c.l.b16 %v727
    %v3950 = vunpack.c.h.b16 %v727
    %v3951 = vunpack.c.l.b16 %v728
    %v3952 = vunpack.c.h.b16 %v728
    %v3953 = vunpack.c.l.b16 %v729
    %v3954 = vunpack.c.h.b16 %v729
    %v3955 = vunpack.c.l.b16 %v730
    %v3956 = vunpack.c.h.b16 %v730
    %v3957 = vunpack.c.l.b16 %v731
    %v3958 = vunpack.c.h.b16 %v731
    %v3959 = vunpack.c.l.b16 %v732
    %v3960 = vunpack.c.h.b16 %v732
    %v3961 = vunpack.c.l.b16 %v733
    %v3962 = vunpack.c.h.b16 %v733
    %v3963 = vunpack.c.l.b16 %v734
    %v3964 = vunpack.c.h.b16 %v734
    %v3965 = vunpack.c.l.b16 %v735
    %v3966 = vunpack.c.h.b16 %v735
    %v3967 = vunpack.c.l.b16 %v736
    %v3968 = vunpack.c.h.b16 %v736
    %v3969 = vunpack.c.l.b16 %v737
    %v3970 = vunpack.c.h.b16 %v737
    %v3971 = vunpack.c.l.b16 %v738
    %v3972 = vunpack.c.h.b16 %v738
    %v3973 = vunpack.c.l.b16 %v739
    %v3974 = vunpack.c.h.b16 %v739
    %v3975 = vunpack.c.l.b16 %v740
    %v3976 = vunpack.c.h.b16 %v740
    %v3977 = vunpack.c.l.b16 %v741
    %v3978 = vunpack.c.h.b16 %v741
    %v3979 = vunpack.c.l.b16 %v742
    %v3980 = vunpack.c.h.b16 %v742
    %v3981 = vunpack.c.l.b16 %v743
    %v3982 = vunpack.c.h.b16 %v743
    %v3983 = vunpack.c.l.b16 %v744
    %v3984 = vunpack.c.h.b16 %v744
    %v3985 = vunpack.c.l.b16 %v745
    %v3986 = vunpack.c.h.b16 %v745
    %v3987 = vunpack.c.l.b16 %v746
    %v3988 = vunpack.c.h.b16 %v746
    %v3989 = vunpack.c.l.b16 %v747
    %v3990 = vunpack.c.h.b16 %v747
    %v3991 = vunpack.c.l.b16 %v748
    %v3992 = vunpack.c.h.b16 %v748
    %v3993 = vunpack.c.l.b16 %v749
    %v3994 = vunpack.c.h.b16 %v749
    %v3995 = vunpack.c.l.b16 %v750
    %v3996 = vunpack.c.h.b16 %v750
    %v3997 = vunpack.c.l.b16 %v751
    %v3998 = vunpack.c.h.b16 %v751
    %v3999 = vunpack.c.l.b16 %v752
    %v4000 = vunpack.c.h.b16 %v752
    %v4001 = vunpack.c.l.b16 %v753
    %v4002 = vunpack.c.h.b16 %v753
    %v4003 = vunpack.c.l.b16 %v754
    %v4004 = vunpack.c.h.b16 %v754
    %v4005 = vunpack.c.l.b16 %v755
    %v4006 = vunpack.c.h.b16 %v755
    %v4007 = vunpack.c.l.b16 %v756
    %v4008 = vunpack.c.h.b16 %v756
    %v4009 = vunpack.c.l.b16 %v757
    %v4010 = vunpack.c.h.b16 %v757
    %v4011 = vunpack.c.l.b16 %v758
    %v4012 = vunpack.c.h.b16 %v758
    %v4013 = vunpack.c.l.b16 %v759
    %v4014 = vunpack.c.h.b16 %v759
    %v4015 = vunpack.c.l.b16 %v760
    %v4016 = vunpack.c.h.b16 %v760
    %v4017 = vunpack.c.l.b16 %v761
    %v4018 = vunpack.c.h.b16 %v761
    %v4019 = vunpack.c.l.b16 %v762
    %v4020 = vunpack.c.h.b16 %v762
    %v4021 = vunpack.c.l.b16 %v763
    %v4022 = vunpack.c.h.b16 %v763
    %v4023 = vunpack.c.l.b16 %v764
    %v4024 = vunpack.c.h.b16 %v764
    %v4025 = vunpack.c.l.b16 %v765
    %v4026 = vunpack.c.h.b16 %v765
    %v4027 = vunpack.c.l.b16 %v766
    %v4028 = vunpack.c.h.b16 %v766
    %v4029 = vunpack.c.l.b16 %v767
    %v4030 = vunpack.c.h.b16 %v767
    %v4031 = vunpack.c.l.b16 %v768
    %v4032 = vunpack.c.h.b16 %v768
    %v4033 = vunpack.c.l.b16 %v769
    %v4034 = vunpack.c.h.b16 %v769
    %v4035 = vunpack.c.l.b16 %v770
    %v4036 = vunpack.c.h.b16 %v770
    %v4037 = vunpack.c.l.b16 %v771
    %v4038 = vunpack.c.h.b16 %v771
    %v4039 = vunpack.c.l.b16 %v772
    %v4040 = vunpack.c.h.b16 %v772
    %v4041 = vunpack.c.l.b16 %v773
    %v4042 = vunpack.c.h.b16 %v773
    %v4043 = vunpack.c.l.b16 %v774
    %v4044 = vunpack.c.h.b16 %v774
    %v4045 = vunpack.c.l.b16 %v775
    %v4046 = vunpack.c.h.b16 %v775
    %v4047 = vunpack.c.l.b16 %v776
    %v4048 = vunpack.c.h.b16 %v776
    %v4049 = vunpack.c.l.b16 %v777
    %v4050 = vunpack.c.h.b16 %v777
    %v4051 = vunpack.c.l.b16 %v778
    %v4052 = vunpack.c.h.b16 %v778
    %v4053 = vunpack.c.l.b16 %v779
    %v4054 = vunpack.c.h.b16 %v779
    %v4055 = vunpack.c.l.b16 %v780
    %v4056 = vunpack.c.h.b16 %v780
    %v4057 = vunpack.c.l.b16 %v781
    %v4058 = vunpack.c.h.b16 %v781
    %v4059 = vunpack.c.l.b16 %v782
    %v4060 = vunpack.c.h.b16 %v782
    %v4061 = vunpack.c.l.b16 %v783
    %v4062 = vunpack.c.h.b16 %v783
    %v4063 = vunpack.c.l.b16 %v784
    %v4064 = vunpack.c.h.b16 %v784
    %v4065 = vunpack.c.l.b16 %v785
    %v4066 = vunpack.c.h.b16 %v785
    %v4067 = vunpack.c.l.b16 %v786
    %v4068 = vunpack.c.h.b16 %v786
    %v4069 = vunpack.c.l.b16 %v787
    %v4070 = vunpack.c.h.b16 %v787
    %v4071 = vunpack.c.l.b16 %v788
    %v4072 = vunpack.c.h.b16 %v788
    %v4073 = vunpack.c.l.b16 %v789
    %v4074 = vunpack.c.h.b16 %v789
    %v4075 = vunpack.c.l.b16 %v790
    %v4076 = vunpack.c.h.b16 %v790
    %v4077 = vunpack.c.l.b16 %v791
    %v4078 = vunpack.c.h.b16 %v791
    %v4079 = vunpack.c.l.b16 %v792
    %v4080 = vunpack.c.h.b16 %v792
    %v4081 = vunpack.c.l.b16 %v793
    %v4082 = vunpack.c.h.b16 %v793
    %v4083 = vunpack.c.l.b16 %v794
    %v4084 = vunpack.c.h.b16 %v794
    %v4085 = vunpack.c.l.b16 %v795
    %v4086 = vunpack.c.h.b16 %v795
    %v4087 = vunpack.c.l.b16 %v796
    %v4088 = vunpack.c.h.b16 %v796
    %v4089 = vunpack.c.l.b16 %v797
    %v4090 = vunpack.c.h.b16 %v797
    %v4091 = vunpack.c.l.b16 %v798
    %v4092 = vunpack.c.h.b16 %v798
    %v4093 = vunpack.c.l.b16 %v799
    %v4094 = vunpack.c.h.b16 %v799
    %v4095 = vunpack.c.l.b16 %v800
    %v4096 = vunpack.c.h.b16 %v800
    %v4097 = vunpack.c.l.b16 %v801
    %v4098 = vunpack.c.h.b16 %v801
    %v4099 = vunpack.c.l.b16 %v802
    %v4100 = vunpack.c.h.b16 %v802
    %v4101 = vunpack.c.l.b16 %v803
    %v4102 = vunpack.c.h.b16 %v803
    %v4103 = vunpack.c.l.b16 %v804
    %v4104 = vunpack.c.h.b16 %v804
    %v4105 = vunpack.c.l.b16 %v805
    %v4106 = vunpack.c.h.b16 %v805
    %v4107 = vunpack.c.l.b16 %v806
    %v4108 = vunpack.c.h.b16 %v806
    %v4109 = vunpack.c.l.b16 %v807
    %v4110 = vunpack.c.h.b16 %v807
    %v4111 = vunpack.c.l.b16 %v808
    %v4112 = vunpack.c.h.b16 %v808
    %v4113 = vunpack.c.l.b16 %v809
    %v4114 = vunpack.c.h.b16 %v809
    %v4115 = vunpack.c.l.b16 %v810
    %v4116 = vunpack.c.h.b16 %v810
    %v4117 = vunpack.c.l.b16 %v811
    %v4118 = vunpack.c.h.b16 %v811
    %v4119 = vunpack.c.l.b16 %v812
    %v4120 = vunpack.c.h.b16 %v812
    %v4121 = vunpack.c.l.b16 %v813
    %v4122 = vunpack.c.h.b16 %v813
    %v4123 = vunpack.c.l.b16 %v814
    %v4124 = vunpack.c.h.b16 %v814
    %v4125 = vunpack.c.l.b16 %v815
    %v4126 = vunpack.c.h.b16 %v815
    %v4127 = vunpack.c.l.b16 %v816
    %v4128 = vunpack.c.h.b16 %v816
    %v4129 = vunpack.c.l.b16 %v817
    %v4130 = vunpack.c.h.b16 %v817
    %v4131 = vunpack.c.l.b16 %v818
    %v4132 = vunpack.c.h.b16 %v818
    %v4133 = vunpack.c.l.b16 %v819
    %v4134 = vunpack.c.h.b16 %v819
    %v4135 = vunpack.c.l.b16 %v820
    %v4136 = vunpack.c.h.b16 %v820
    %v4137 = vunpack.c.l.b16 %v821
    %v4138 = vunpack.c.h.b16 %v821
    %v4139 = vunpack.c.l.b16 %v822
    %v4140 = vunpack.c.h.b16 %v822
    %v4141 = vunpack.c.l.b16 %v823
    %v4142 = vunpack.c.h.b16 %v823
    %v4143 = vunpack.c.l.b16 %v824
    %v4144 = vunpack.c.h.b16 %v824
    %v4145 = vunpack.c.l.b16 %v825
    %v4146 = vunpack.c.h.b16 %v825
    %v4147 = vunpack.c.l.b16 %v826
    %v4148 = vunpack.c.h.b16 %v826
    %v4149 = vunpack.c.l.b16 %v827
    %v4150 = vunpack.c.h.b16 %v827
    %v4151 = vunpack.c.l.b16 %v828
    %v4152 = vunpack.c.h.b16 %v828
    %v4153 = vunpack.c.l.b16 %v829
    %v4154 = vunpack.c.h.b16 %v829
    %v4155 = vunpack.c.l.b16 %v830
    %v4156 = vunpack.c.h.b16 %v830
    %v4157 = vunpack.c.l.b16 %v831
    %v4158 = vunpack.c.h.b16 %v831
    %v4159 = vunpack.c.l.b16 %v832
    %v4160 = vunpack.c.h.b16 %v832
    %v4161 = vunpack.c.l.b16 %v833
    %v4162 = vunpack.c.h.b16 %v833
    %v4163 = vunpack.c.l.b16 %v834
    %v4164 = vunpack.c.h.b16 %v834
    %v4165 = vunpack.c.l.b16 %v835
    %v4166 = vunpack.c.h.b16 %v835
    %v4167 = vunpack.c.l.b16 %v836
    %v4168 = vunpack.c.h.b16 %v836
    %v4169 = vunpack.c.l.b16 %v837
    %v4170 = vunpack.c.h.b16 %v837
    %v4171 = vunpack.c.l.b16 %v838
    %v4172 = vunpack.c.h.b16 %v838
    %v4173 = vunpack.c.l.b16 %v839
    %v4174 = vunpack.c.h.b16 %v839
    %v4175 = vunpack.c.l.b16 %v840
    %v4176 = vunpack.c.h.b16 %v840
    %v4177 = vunpack.c.l.b16 %v841
    %v4178 = vunpack.c.h.b16 %v841
    %v4179 = vunpack.c.l.b16 %v842
    %v4180 = vunpack.c.h.b16 %v842
    %v4181 = vunpack.c.l.b16 %v843
    %v4182 = vunpack.c.h.b16 %v843
    %v4183 = vunpack.c.l.b16 %v844
    %v4184 = vunpack.c.h.b16 %v844
    %v4185 = vunpack.c.l.b16 %v845
    %v4186 = vunpack.c.h.b16 %v845
    %v4187 = vunpack.c.l.b16 %v846
    %v4188 = vunpack.c.h.b16 %v846
    %v4189 = vunpack.c.l.b16 %v847
    %v4190 = vunpack.c.h.b16 %v847
    %v4191 = vunpack.c.l.b16 %v848
    %v4192 = vunpack.c.h.b16 %v848
    %v4193 = vunpack.c.l.b16 %v849
    %v4194 = vunpack.c.h.b16 %v849
    %v4195 = vunpack.c.l.b16 %v850
    %v4196 = vunpack.c.h.b16 %v850
    %v4197 = vunpack.c.l.b16 %v851
    %v4198 = vunpack.c.h.b16 %v851
    %v4199 = vunpack.c.l.b16 %v852
    %v4200 = vunpack.c.h.b16 %v852
    %v4201 = vunpack.c.l.b16 %v853
    %v4202 = vunpack.c.h.b16 %v853
    %v4203 = vunpack.c.l.b16 %v854
    %v4204 = vunpack.c.h.b16 %v854
    %v4205 = vunpack.c.l.b16 %v855
    %v4206 = vunpack.c.h.b16 %v855
    %v4207 = vunpack.c.l.b16 %v856
    %v4208 = vunpack.c.h.b16 %v856
    %v4209 = vunpack.c.l.b16 %v857
    %v4210 = vunpack.c.h.b16 %v857
    %v4211 = vunpack.c.l.b16 %v858
    %v4212 = vunpack.c.h.b16 %v858
    %v4213 = vunpack.c.l.b16 %v859
    %v4214 = vunpack.c.h.b16 %v859
    %v4215 = vunpack.c.l.b16 %v860
    %v4216 = vunpack.c.h.b16 %v860
    %v4217 = vunpack.c.l.b16 %v861
    %v4218 = vunpack.c.h.b16 %v861
    %v4219 = vunpack.c.l.b16 %v862
    %v4220 = vunpack.c.h.b16 %v862
    %v4221 = vunpack.c.l.b16 %v863
    %v4222 = vunpack.c.h.b16 %v863
    %v4223 = vunpack.c.l.b16 %v864
    %v4224 = vunpack.c.h.b16 %v864
    %v4225 = vunpack.c.l.b16 %v865
    %v4226 = vunpack.c.h.b16 %v865
    %v4227 = vunpack.c.l.b16 %v866
    %v4228 = vunpack.c.h.b16 %v866
    %v4229 = vunpack.c.l.b16 %v867
    %v4230 = vunpack.c.h.b16 %v867
    %v4231 = vunpack.c.l.b16 %v868
    %v4232 = vunpack.c.h.b16 %v868
    %v4233 = vunpack.c.l.b16 %v869
    %v4234 = vunpack.c.h.b16 %v869
    %v4235 = vunpack.c.l.b16 %v870
    %v4236 = vunpack.c.h.b16 %v870
    %v4237 = vunpack.c.l.b16 %v871
    %v4238 = vunpack.c.h.b16 %v871
    %v4239 = vunpack.c.l.b16 %v872
    %v4240 = vunpack.c.h.b16 %v872
    %v4241 = vunpack.c.l.b16 %v873
    %v4242 = vunpack.c.h.b16 %v873
    %v4243 = vunpack.c.l.b16 %v874
    %v4244 = vunpack.c.h.b16 %v874
    %v4245 = vunpack.c.l.b16 %v875
    %v4246 = vunpack.c.h.b16 %v875
    %v4247 = vunpack.c.l.b16 %v876
    %v4248 = vunpack.c.h.b16 %v876
    %v4249 = vunpack.c.l.b16 %v877
    %v4250 = vunpack.c.h.b16 %v877
    %v4251 = vunpack.c.l.b16 %v878
    %v4252 = vunpack.c.h.b16 %v878
    %v4253 = vunpack.c.l.b16 %v879
    %v4254 = vunpack.c.h.b16 %v879
    %v4255 = vunpack.c.l.b16 %v880
    %v4256 = vunpack.c.h.b16 %v880
    %v4257 = vunpack.c.l.b16 %v881
    %v4258 = vunpack.c.h.b16 %v881
    %v4259 = vunpack.c.l.b16 %v882
    %v4260 = vunpack.c.h.b16 %v882
    %v4261 = vunpack.c.l.b16 %v883
    %v4262 = vunpack.c.h.b16 %v883
    %v4263 = vunpack.c.l.b16 %v884
    %v4264 = vunpack.c.h.b16 %v884
    %v4265 = vunpack.c.l.b16 %v885
    %v4266 = vunpack.c.h.b16 %v885
    %v4267 = vunpack.c.l.b16 %v886
    %v4268 = vunpack.c.h.b16 %v886
    %v4269 = vunpack.c.l.b16 %v887
    %v4270 = vunpack.c.h.b16 %v887
    %v4271 = vunpack.c.l.b16 %v888
    %v4272 = vunpack.c.h.b16 %v888
    %v4273 = vunpack.c.l.b16 %v889
    %v4274 = vunpack.c.h.b16 %v889
    %v4275 = vunpack.c.l.b16 %v890
    %v4276 = vunpack.c.h.b16 %v890
    %v4277 = vunpack.c.l.b16 %v891
    %v4278 = vunpack.c.h.b16 %v891
    %v4279 = vunpack.c.l.b16 %v892
    %v4280 = vunpack.c.h.b16 %v892
    %v4281 = vunpack.c.l.b16 %v893
    %v4282 = vunpack.c.h.b16 %v893
    %v4283 = vunpack.c.l.b16 %v894
    %v4284 = vunpack.c.h.b16 %v894
    %v4285 = vunpack.c.l.b16 %v895
    %v4286 = vunpack.c.h.b16 %v895
    %v4287 = vunpack.c.l.b16 %v896
    %v4288 = vunpack.c.h.b16 %v896
    %v4289 = vunpack.c.l.b16 %v897
    %v4290 = vunpack.c.h.b16 %v897
    %v4291 = vunpack.c.l.b16 %v898
    %v4292 = vunpack.c.h.b16 %v898
    %v4293 = vunpack.c.l.b16 %v899
    %v4294 = vunpack.c.h.b16 %v899
    %v4295 = vunpack.c.l.b16 %v900
    %v4296 = vunpack.c.h.b16 %v900
    %v4297 = vunpack.c.l.b16 %v901
    %v4298 = vunpack.c.h.b16 %v901
    %v4299 = vunpack.c.l.b16 %v902
    %v4300 = vunpack.c.h.b16 %v902
    %v4301 = vunpack.c.l.b16 %v903
    %v4302 = vunpack.c.h.b16 %v903
    %v4303 = vunpack.c.l.b16 %v904
    %v4304 = vunpack.c.h.b16 %v904
    %v4305 = vunpack.c.l.b16 %v905
    %v4306 = vunpack.c.h.b16 %v905
    %v4307 = vunpack.c.l.b16 %v906
    %v4308 = vunpack.c.h.b16 %v906
    %v4309 = vunpack.c.l.b16 %v907
    %v4310 = vunpack.c.h.b16 %v907
    %v4311 = vunpack.c.l.b16 %v908
    %v4312 = vunpack.c.h.b16 %v908
    %v4313 = vunpack.c.l.b16 %v909
    %v4314 = vunpack.c.h.b16 %v909
    %v4315 = vunpack.c.l.b16 %v910
    %v4316 = vunpack.c.h.b16 %v910
    %v4317 = vunpack.c.l.b16 %v911
    %v4318 = vunpack.c.h.b16 %v911
    %v4319 = vunpack.c.l.b16 %v912
    %v4320 = vunpack.c.h.b16 %v912
    %v4321 = vunpack.c.l.b16 %v913
    %v4322 = vunpack.c.h.b16 %v913
    %v4323 = vunpack.c.l.b16 %v914
    %v4324 = vunpack.c.h.b16 %v914
    %v4325 = vunpack.c.l.b16 %v915
    %v4326 = vunpack.c.h.b16 %v915
    %v4327 = vunpack.c.l.b16 %v916
    %v4328 = vunpack.c.h.b16 %v916
    %v4329 = vunpack.c.l.b16 %v917
    %v4330 = vunpack.c.h.b16 %v917
    %v4331 = vunpack.c.l.b16 %v918
    %v4332 = vunpack.c.h.b16 %v918
    %v4333 = vunpack.c.l.b16 %v919
    %v4334 = vunpack.c.h.b16 %v919
    %v4335 = vunpack.c.l.b16 %v920
    %v4336 = vunpack.c.h.b16 %v920
    %v4337 = vunpack.c.l.b16 %v921
    %v4338 = vunpack.c.h.b16 %v921
    %v4339 = vunpack.c.l.b16 %v922
    %v4340 = vunpack.c.h.b16 %v922
    %v4341 = vunpack.c.l.b16 %v923
    %v4342 = vunpack.c.h.b16 %v923
    %v4343 = vunpack.c.l.b16 %v924
    %v4344 = vunpack.c.h.b16 %v924
    %v4345 = vunpack.c.l.b16 %v925
    %v4346 = vunpack.c.h.b16 %v925
    %v4347 = vunpack.c.l.b16 %v926
    %v4348 = vunpack.c.h.b16 %v926
    %v4349 = vunpack.c.l.b16 %v927
    %v4350 = vunpack.c.h.b16 %v927
    %v4351 = vunpack.c.l.b16 %v928
    %v4352 = vunpack.c.h.b16 %v928
    %v4353 = vunpack.c.l.b16 %v929
    %v4354 = vunpack.c.h.b16 %v929
    %v4355 = vunpack.c.l.b16 %v930
    %v4356 = vunpack.c.h.b16 %v930
    %v4357 = vunpack.c.l.b16 %v931
    %v4358 = vunpack.c.h.b16 %v931
    %v4359 = vunpack.c.l.b16 %v932
    %v4360 = vunpack.c.h.b16 %v932
    %v4361 = vunpack.c.l.b16 %v933
    %v4362 = vunpack.c.h.b16 %v933
    %v4363 = vunpack.c.l.b16 %v934
    %v4364 = vunpack.c.h.b16 %v934
    %v4365 = vunpack.c.l.b16 %v935
    %v4366 = vunpack.c.h.b16 %v935
    %v4367 = vunpack.c.l.b16 %v936
    %v4368 = vunpack.c.h.b16 %v936
    %v4369 = vunpack.c.l.b16 %v937
    %v4370 = vunpack.c.h.b16 %v937
    %v4371 = vunpack.c.l.b16 %v938
    %v4372 = vunpack.c.h.b16 %v938
    %v4373 = vunpack.c.l.b16 %v939
    %v4374 = vunpack.c.h.b16 %v939
    %v4375 = vunpack.c.l.b16 %v940
    %v4376 = vunpack.c.h.b16 %v940
    %v4377 = vunpack.c.l.b16 %v941
    %v4378 = vunpack.c.h.b16 %v941
    %v4379 = vunpack.c.l.b16 %v942
    %v4380 = vunpack.c.h.b16 %v942
    %v4381 = vunpack.c.l.b16 %v943
    %v4382 = vunpack.c.h.b16 %v943
    %v4383 = vunpack.c.l.b16 %v944
    %v4384 = vunpack.c.h.b16 %v944
    %v4385 = vunpack.c.l.b16 %v945
    %v4386 = vunpack.c.h.b16 %v945
    %v4387 = vunpack.c.l.b16 %v946
    %v4388 = vunpack.c.h.b16 %v946
    %v4389 = vunpack.c.l.b16 %v947
    %v4390 = vunpack.c.h.b16 %v947
    %v4391 = vunpack.c.l.b16 %v948
    %v4392 = vunpack.c.h.b16 %v948
    %v4393 = vunpack.c.l.b16 %v949
    %v4394 = vunpack.c.h.b16 %v949
    %v4395 = vunpack.c.l.b16 %v950
    %v4396 = vunpack.c.h.b16 %v950
    %v4397 = vunpack.c.l.b16 %v951
    %v4398 = vunpack.c.h.b16 %v951
    %v4399 = vunpack.c.l.b16 %v952
    %v4400 = vunpack.c.h.b16 %v952
    %v4401 = vunpack.c.l.b16 %v953
    %v4402 = vunpack.c.h.b16 %v953
    %v4403 = vunpack.c.l.b16 %v954
    %v4404 = vunpack.c.h.b16 %v954
    %v4405 = vunpack.c.l.b16 %v955
    %v4406 = vunpack.c.h.b16 %v955
    %v4407 = vunpack.c.l.b16 %v956
    %v4408 = vunpack.c.h.b16 %v956
    %v4409 = vunpack.c.l.b16 %v957
    %v4410 = vunpack.c.h.b16 %v957
    %v4411 = vunpack.c.l.b16 %v958
    %v4412 = vunpack.c.h.b16 %v958
    %v4413 = vunpack.c.l.b16 %v959
    %v4414 = vunpack.c.h.b16 %v959
    %v4415 = vunpack.c.l.b16 %v960
    %v4416 = vunpack.c.h.b16 %v960
    %v4417 = vunpack.c.l.b16 %v961
    %v4418 = vunpack.c.h.b16 %v961
    %v4419 = vunpack.c.l.b16 %v962
    %v4420 = vunpack.c.h.b16 %v962
    %v4421 = vunpack.c.l.b16 %v963
    %v4422 = vunpack.c.h.b16 %v963
    %v4423 = vunpack.c.l.b16 %v964
    %v4424 = vunpack.c.h.b16 %v964
    %v4425 = vunpack.c.l.b16 %v965
    %v4426 = vunpack.c.h.b16 %v965
    %v4427 = vunpack.c.l.b16 %v966
    %v4428 = vunpack.c.h.b16 %v966
    %v4429 = vunpack.c.l.b16 %v967
    %v4430 = vunpack.c.h.b16 %v967
    %v4431 = vunpack.c.l.b16 %v968
    %v4432 = vunpack.c.h.b16 %v968
    %v4433 = vunpack.c.l.b16 %v969
    %v4434 = vunpack.c.h.b16 %v969
    %v4435 = vunpack.c.l.b16 %v970
    %v4436 = vunpack.c.h.b16 %v970
    %v4437 = vunpack.c.l.b16 %v971
    %v4438 = vunpack.c.h.b16 %v971
    %v4439 = vunpack.c.l.b16 %v972
    %v4440 = vunpack.c.h.b16 %v972
    %v4441 = vunpack.c.l.b16 %v973
    %v4442 = vunpack.c.h.b16 %v973
    %v4443 = vunpack.c.l.b16 %v974
    %v4444 = vunpack.c.h.b16 %v974
    %v4445 = vunpack.c.l.b16 %v975
    %v4446 = vunpack.c.h.b16 %v975
    %v4447 = vunpack.c.l.b16 %v976
    %v4448 = vunpack.c.h.b16 %v976
    %v4449 = vunpack.c.l.b16 %v977
    %v4450 = vunpack.c.h.b16 %v977
    %v4451 = vunpack.c.l.b16 %v978
    %v4452 = vunpack.c.h.b16 %v978
    %v4453 = vunpack.c.l.b16 %v979
    %v4454 = vunpack.c.h.b16 %v979
    %v4455 = vunpack.c.l.b16 %v980
    %v4456 = vunpack.c.h.b16 %v980
    %v4457 = vunpack.c.l.b16 %v981
    %v4458 = vunpack.c.h.b16 %v981
    %v4459 = vunpack.c.l.b16 %v982
    %v4460 = vunpack.c.h.b16 %v982
    %v4461 = vunpack.c.l.b16 %v983
    %v4462 = vunpack.c.h.b16 %v983
    %v4463 = vunpack.c.l.b16 %v984
    %v4464 = vunpack.c.h.b16 %v984
    %v4465 = vunpack.c.l.b16 %v985
    %v4466 = vunpack.c.h.b16 %v985
    %v4467 = vunpack.c.l.b16 %v986
    %v4468 = vunpack.c.h.b16 %v986
    %v4469 = vunpack.c.l.b16 %v987
    %v4470 = vunpack.c.h.b16 %v987
    %v4471 = vunpack.c.l.b16 %v988
    %v4472 = vunpack.c.h.b16 %v988
    %v4473 = vunpack.c.l.b16 %v989
    %v4474 = vunpack.c.h.b16 %v989
    %v4475 = vunpack.c.l.b16 %v990
    %v4476 = vunpack.c.h.b16 %v990
    %v4477 = vunpack.c.l.b16 %v991
    %v4478 = vunpack.c.h.b16 %v991
    %v4479 = vunpack.c.l.b16 %v992
    %v4480 = vunpack.c.h.b16 %v992
    %v4481 = vunpack.c.l.b16 %v993
    %v4482 = vunpack.c.h.b16 %v993
    %v4483 = vunpack.c.l.b16 %v994
    %v4484 = vunpack.c.h.b16 %v994
    %v4485 = vunpack.c.l.b16 %v995
    %v4486 = vunpack.c.h.b16 %v995
    %v4487 = vunpack.c.l.b16 %v996
    %v4488 = vunpack.c.h.b16 %v996
    %v4489 = vunpack.c.l.b16 %v997
    %v4490 = vunpack.c.h.b16 %v997
    %v4491 = vunpack.c.l.b16 %v998
    %v4492 = vunpack.c.h.b16 %v998
    %v4493 = vunpack.c.l.b16 %v999
    %v4494 = vunpack.c.h.b16 %v999
    %v4495 = vunpack.c.l.b16 %v1000
    %v4496 = vunpack.c.h.b16 %v1000
    %v4497 = vunpack.c.l.b16 %v1001
    %v4498 = vunpack.c.h.b16 %v1001
    %v4499 = vunpack.c.l.b16 %v1002
    %v4500 = vunpack.c.h.b16 %v1002
    %v4501 = vunpack.c.l.b16 %v1003
    %v4502 = vunpack.c.h.b16 %v1003
    %v4503 = vunpack.c.l.b16 %v1004
    %v4504 = vunpack.c.h.b16 %v1004
    %v4505 = vunpack.c.l.b16 %v1005
    %v4506 = vunpack.c.h.b16 %v1005
    %v4507 = vunpack.c.l.b16 %v1006
    %v4508 = vunpack.c.h.b16 %v1006
    %v4509 = vunpack.c.l.b16 %v1007
    %v4510 = vunpack.c.h.b16 %v1007
    %v4511 = vunpack.c.l.b16 %v1008
    %v4512 = vunpack.c.h.b16 %v1008
    %v4513 = vunpack.c.l.b16 %v1009
    %v4514 = vunpack.c.h.b16 %v1009
    %v4515 = vunpack.c.l.b16 %v1010
    %v4516 = vunpack.c.h.b16 %v1010
    %v4517 = vunpack.c.l.b16 %v1011
    %v4518 = vunpack.c.h.b16 %v1011
    %v4519 = vunpack.c.l.b16 %v1012
    %v4520 = vunpack.c.h.b16 %v1012
    %v4521 = vunpack.c.l.b16 %v1013
    %v4522 = vunpack.c.h.b16 %v1013
    %v4523 = vunpack.c.l.b16 %v1014
    %v4524 = vunpack.c.h.b16 %v1014
    %v4525 = vunpack.c.l.b16 %v1015
    %v4526 = vunpack.c.h.b16 %v1015
    %v4527 = vunpack.c.l.b16 %v1016
    %v4528 = vunpack.c.h.b16 %v1016
    %v4529 = vunpack.c.l.b16 %v1017
    %v4530 = vunpack.c.h.b16 %v1017
    %v4531 = vunpack.c.l.b16 %v1018
    %v4532 = vunpack.c.h.b16 %v1018
    %v4533 = vunpack.c.l.b16 %v1019
    %v4534 = vunpack.c.h.b16 %v1019
    %v4535 = vunpack.c.l.b16 %v1020
    %v4536 = vunpack.c.h.b16 %v1020
    %v4537 = vunpack.c.l.b16 %v1021
    %v4538 = vunpack.c.h.b16 %v1021
    %v4539 = vunpack.c.l.b16 %v1022
    %v4540 = vunpack.c.h.b16 %v1022
    %v4541 = vunpack.c.l.b16 %v1023
    %v4542 = vunpack.c.h.b16 %v1023
    %v4543 = vunpack.c.l.b16 %v1024
    %v4544 = vunpack.c.h.b16 %v1024
    %v4545 = vunpack.c.l.b16 %v1025
    %v4546 = vunpack.c.h.b16 %v1025
    %v4547 = vunpack.c.l.b16 %v1026
    %v4548 = vunpack.c.h.b16 %v1026
    %v4549 = vunpack.c.l.b16 %v1027
    %v4550 = vunpack.c.h.b16 %v1027
    %v4551 = vunpack.c.l.b16 %v1028
    %v4552 = vunpack.c.h.b16 %v1028
    %v4553 = vunpack.c.l.b16 %v1029
    %v4554 = vunpack.c.h.b16 %v1029
    %v4555 = vunpack.c.l.b16 %v1030
    %v4556 = vunpack.c.h.b16 %v1030
    %v4557 = vunpack.c.l.b16 %v1031
    %v4558 = vunpack.c.h.b16 %v1031
    %v4559 = vunpack.c.l.b16 %v1032
    %v4560 = vunpack.c.h.b16 %v1032
    %v4561 = vunpack.c.l.b16 %v1033
    %v4562 = vunpack.c.h.b16 %v1033
    %v4563 = vunpack.c.l.b16 %v1034
    %v4564 = vunpack.c.h.b16 %v1034
    %v4565 = vunpack.c.l.b16 %v1035
    %v4566 = vunpack.c.h.b16 %v1035
    %v4567 = vunpack.c.l.b16 %v1036
    %v4568 = vunpack.c.h.b16 %v1036
    %v4569 = vunpack.c.l.b16 %v1037
    %v4570 = vunpack.c.h.b16 %v1037
    %v4571 = vunpack.c.l.b16 %v1038
    %v4572 = vunpack.c.h.b16 %v1038
    %v4573 = vunpack.c.l.b16 %v1039
    %v4574 = vunpack.c.h.b16 %v1039
    %v4575 = vunpack.c.l.b16 %v1040
    %v4576 = vunpack.c.h.b16 %v1040
    %v4577 = vunpack.c.l.b16 %v1041
    %v4578 = vunpack.c.h.b16 %v1041
    %v4579 = vunpack.c.l.b16 %v1042
    %v4580 = vunpack.c.h.b16 %v1042
    %v4581 = vunpack.c.l.b16 %v1043
    %v4582 = vunpack.c.h.b16 %v1043
    %v4583 = vunpack.c.l.b16 %v1044
    %v4584 = vunpack.c.h.b16 %v1044
    %v4585 = vunpack.c.l.b16 %v1045
    %v4586 = vunpack.c.h.b16 %v1045
    %v4587 = vunpack.c.l.b16 %v1046
    %v4588 = vunpack.c.h.b16 %v1046
    %v4589 = vunpack.c.l.b16 %v1047
    %v4590 = vunpack.c.h.b16 %v1047
    %v4591 = vunpack.c.l.b16 %v1048
    %v4592 = vunpack.c.h.b16 %v1048
    %v4593 = vunpack.c.l.b16 %v1049
    %v4594 = vunpack.c.h.b16 %v1049
    %v4595 = vunpack.c.l.b16 %v1050
    %v4596 = vunpack.c.h.b16 %v1050
    %v4597 = vunpack.c.l.b16 %v1051
    %v4598 = vunpack.c.h.b16 %v1051
    %v4599 = vunpack.c.l.b16 %v1052
    %v4600 = vunpack.c.h.b16 %v1052
    %v4601 = vpack.c.b16 %v2555, %v2553
    %v4602 = vpack.c.b16 %v2556, %v2554
    %v4603 = vpack.c.b16 %v2559, %v2557
    %v4604 = vpack.c.b16 %v2560, %v2558
    %v4605 = vpack.c.b16 %v2563, %v2561
    %v4606 = vpack.c.b16 %v2564, %v2562
    %v4607 = vpack.c.b16 %v2567, %v2565
    %v4608 = vpack.c.b16 %v2568, %v2566
    %v4609 = vpack.c.b16 %v2571, %v2569
    %v4610 = vpack.c.b16 %v2572, %v2570
    %v4611 = vpack.c.b16 %v2575, %v2573
    %v4612 = vpack.c.b16 %v2576, %v2574
    %v4613 = vpack.c.b16 %v2579, %v2577
    %v4614 = vpack.c.b16 %v2580, %v2578
    %v4615 = vpack.c.b16 %v2583, %v2581
    %v4616 = vpack.c.b16 %v2584, %v2582
    %v4617 = vpack.c.b16 %v2587, %v2585
    %v4618 = vpack.c.b16 %v2588, %v2586
    %v4619 = vpack.c.b16 %v2591, %v2589
    %v4620 = vpack.c.b16 %v2592, %v2590
    %v4621 = vpack.c.b16 %v2595, %v2593
    %v4622 = vpack.c.b16 %v2596, %v2594
    %v4623 = vpack.c.b16 %v2599, %v2597
    %v4624 = vpack.c.b16 %v2600, %v2598
    %v4625 = vpack.c.b16 %v2603, %v2601
    %v4626 = vpack.c.b16 %v2604, %v2602
    %v4627 = vpack.c.b16 %v2607, %v2605
    %v4628 = vpack.c.b16 %v2608, %v2606
    %v4629 = vpack.c.b16 %v2611, %v2609
    %v4630 = vpack.c.b16 %v2612, %v2610
    %v4631 = vpack.c.b16 %v2615, %v2613
    %v4632 = vpack.c.b16 %v2616, %v2614
    %v4633 = vpack.c.b16 %v2619, %v2617
    %v4634 = vpack.c.b16 %v2620, %v2618
    %v4635 = vpack.c.b16 %v2623, %v2621
    %v4636 = vpack.c.b16 %v2624, %v2622
    %v4637 = vpack.c.b16 %v2627, %v2625
    %v4638 = vpack.c.b16 %v2628, %v2626
    %v4639 = vpack.c.b16 %v2631, %v2629
    %v4640 = vpack.c.b16 %v2632, %v2630
    %v4641 = vpack.c.b16 %v2635, %v2633
    %v4642 = vpack.c.b16 %v2636, %v2634
    %v4643 = vpack.c.b16 %v2639, %v2637
    %v4644 = vpack.c.b16 %v2640, %v2638
    %v4645 = vpack.c.b16 %v2643, %v2641
    %v4646 = vpack.c.b16 %v2644, %v2642
    %v4647 = vpack.c.b16 %v2647, %v2645
    %v4648 = vpack.c.b16 %v2648, %v2646
    %v4649 = vpack.c.b16 %v2651, %v2649
    %v4650 = vpack.c.b16 %v2652, %v2650
    %v4651 = vpack.c.b16 %v2655, %v2653
    %v4652 = vpack.c.b16 %v2656, %v2654
    %v4653 = vpack.c.b16 %v2659, %v2657
    %v4654 = vpack.c.b16 %v2660, %v2658
    %v4655 = vpack.c.b16 %v2663, %v2661
    %v4656 = vpack.c.b16 %v2664, %v2662
    %v4657 = vpack.c.b16 %v2667, %v2665
    %v4658 = vpack.c.b16 %v2668, %v2666
    %v4659 = vpack.c.b16 %v2671, %v2669
    %v4660 = vpack.c.b16 %v2672, %v2670
    %v4661 = vpack.c.b16 %v2675, %v2673
    %v4662 = vpack.c.b16 %v2676, %v2674
    %v4663 = vpack.c.b16 %v2679, %v2677
    %v4664 = vpack.c.b16 %v2680, %v2678
    %v4665 = vpack.c.b16 %v2683, %v2681
    %v4666 = vpack.c.b16 %v2684, %v2682
    %v4667 = vpack.c.b16 %v2687, %v2685
    %v4668 = vpack.c.b16 %v2688, %v2686
    %v4669 = vpack.c.b16 %v2691, %v2689
    %v4670 = vpack.c.b16 %v2692, %v2690
    %v4671 = vpack.c.b16 %v2695, %v2693
    %v4672 = vpack.c.b16 %v2696, %v2694
    %v4673 = vpack.c.b16 %v2699, %v2697
    %v4674 = vpack.c.b16 %v2700, %v2698
    %v4675 = vpack.c.b16 %v2703, %v2701
    %v4676 = vpack.c.b16 %v2704, %v2702
    %v4677 = vpack.c.b16 %v2707, %v2705
    %v4678 = vpack.c.b16 %v2708, %v2706
    %v4679 = vpack.c.b16 %v2711, %v2709
    %v4680 = vpack.c.b16 %v2712, %v2710
    %v4681 = vpack.c.b16 %v2715, %v2713
    %v4682 = vpack.c.b16 %v2716, %v2714
    %v4683 = vpack.c.b16 %v2719, %v2717
    %v4684 = vpack.c.b16 %v2720, %v2718
    %v4685 = vpack.c.b16 %v2723, %v2721
    %v4686 = vpack.c.b16 %v2724, %v2722
    %v4687 = vpack.c.b16 %v2727, %v2725
    %v4688 = vpack.c.b16 %v2728, %v2726
    %v4689 = vpack.c.b16 %v2731, %v2729
    %v4690 = vpack.c.b16 %v2732, %v2730
    %v4691 = vpack.c.b16 %v2735, %v2733
    %v4692 = vpack.c.b16 %v2736, %v2734
    %v4693 = vpack.c.b16 %v2739, %v2737
    %v4694 = vpack.c.b16 %v2740, %v2738
    %v4695 = vpack.c.b16 %v2743, %v2741
    %v4696 = vpack.c.b16 %v2744, %v2742
    %v4697 = vpack.c.b16 %v2747, %v2745
    %v4698 = vpack.c.b16 %v2748, %v2746
    %v4699 = vpack.c.b16 %v2751, %v2749
    %v4700 = vpack.c.b16 %v2752, %v2750
    %v4701 = vpack.c.b16 %v2755, %v2753
    %v4702 = vpack.c.b16 %v2756, %v2754
    %v4703 = vpack.c.b16 %v2759, %v2757
    %v4704 = vpack.c.b16 %v2760, %v2758
    %v4705 = vpack.c.b16 %v2763, %v2761
    %v4706 = vpack.c.b16 %v2764, %v2762
    %v4707 = vpack.c.b16 %v2767, %v2765
    %v4708 = vpack.c.b16 %v2768, %v2766
    %v4709 = vpack.c.b16 %v2771, %v2769
    %v4710 = vpack.c.b16 %v2772, %v2770
    %v4711 = vpack.c.b16 %v2775, %v2773
    %v4712 = vpack.c.b16 %v2776, %v2774
    %v4713 = vpack.c.b16 %v2779, %v2777
    %v4714 = vpack.c.b16 %v2780, %v2778
    %v4715 = vpack.c.b16 %v2783, %v2781
    %v4716 = vpack.c.b16 %v2784, %v2782
    %v4717 = vpack.c.b16 %v2787, %v2785
    %v4718 = vpack.c.b16 %v2788, %v2786
    %v4719 = vpack.c.b16 %v2791, %v2789
    %v4720 = vpack.c.b16 %v2792, %v2790
    %v4721 = vpack.c.b16 %v2795, %v2793
    %v4722 = vpack.c.b16 %v2796, %v2794
    %v4723 = vpack.c.b16 %v2799, %v2797
    %v4724 = vpack.c.b16 %v2800, %v2798
    %v4725 = vpack.c.b16 %v2803, %v2801
    %v4726 = vpack.c.b16 %v2804, %v2802
    %v4727 = vpack.c.b16 %v2807, %v2805
    %v4728 = vpack.c.b16 %v2808, %v2806
    %v4729 = vpack.c.b16 %v2811, %v2809
    %v4730 = vpack.c.b16 %v2812, %v2810
    %v4731 = vpack.c.b16 %v2815, %v2813
    %v4732 = vpack.c.b16 %v2816, %v2814
    %v4733 = vpack.c.b16 %v2819, %v2817
    %v4734 = vpack.c.b16 %v2820, %v2818
    %v4735 = vpack.c.b16 %v2823, %v2821
    %v4736 = vpack.c.b16 %v2824, %v2822
    %v4737 = vpack.c.b16 %v2827, %v2825
    %v4738 = vpack.c.b16 %v2828, %v2826
    %v4739 = vpack.c.b16 %v2831, %v2829
    %v4740 = vpack.c.b16 %v2832, %v2830
    %v4741 = vpack.c.b16 %v2835, %v2833
    %v4742 = vpack.c.b16 %v2836, %v2834
    %v4743 = vpack.c.b16 %v2839, %v2837
    %v4744 = vpack.c.b16 %v2840, %v2838
    %v4745 = vpack.c.b16 %v2843, %v2841
    %v4746 = vpack.c.b16 %v2844, %v2842
    %v4747 = vpack.c.b16 %v2847, %v2845
    %v4748 = vpack.c.b16 %v2848, %v2846
    %v4749 = vpack.c.b16 %v2851, %v2849
    %v4750 = vpack.c.b16 %v2852, %v2850
    %v4751 = vpack.c.b16 %v2855, %v2853
    %v4752 = vpack.c.b16 %v2856, %v2854
    %v4753 = vpack.c.b16 %v2859, %v2857
    %v4754 = vpack.c.b16 %v2860, %v2858
    %v4755 = vpack.c.b16 %v2863, %v2861
    %v4756 = vpack.c.b16 %v2864, %v2862
    %v4757 = vpack.c.b16 %v2867, %v2865
    %v4758 = vpack.c.b16 %v2868, %v2866
    %v4759 = vpack.c.b16 %v2871, %v2869
    %v4760 = vpack.c.b16 %v2872, %v2870
    %v4761 = vpack.c.b16 %v2875, %v2873
    %v4762 = vpack.c.b16 %v2876, %v2874
    %v4763 = vpack.c.b16 %v2879, %v2877
    %v4764 = vpack.c.b16 %v2880, %v2878
    %v4765 = vpack.c.b16 %v2883, %v2881
    %v4766 = vpack.c.b16 %v2884, %v2882
    %v4767 = vpack.c.b16 %v2887, %v2885
    %v4768 = vpack.c.b16 %v2888, %v2886
    %v4769 = vpack.c.b16 %v2891, %v2889
    %v4770 = vpack.c.b16 %v2892, %v2890
    %v4771 = vpack.c.b16 %v2895, %v2893
    %v4772 = vpack.c.b16 %v2896, %v2894
    %v4773 = vpack.c.b16 %v2899, %v2897
    %v4774 = vpack.c.b16 %v2900, %v2898
    %v4775 = vpack.c.b16 %v2903, %v2901
    %v4776 = vpack.c.b16 %v2904, %v2902
    %v4777 = vpack.c.b16 %v2907, %v2905
    %v4778 = vpack.c.b16 %v2908, %v2906
    %v4779 = vpack.c.b16 %v2911, %v2909
    %v4780 = vpack.c.b16 %v2912, %v2910
    %v4781 = vpack.c.b16 %v2915, %v2913
    %v4782 = vpack.c.b16 %v2916, %v2914
    %v4783 = vpack.c.b16 %v2919, %v2917
    %v4784 = vpack.c.b16 %v2920, %v2918
    %v4785 = vpack.c.b16 %v2923, %v2921
    %v4786 = vpack.c.b16 %v2924, %v2922
    %v4787 = vpack.c.b16 %v2927, %v2925
    %v4788 = vpack.c.b16 %v2928, %v2926
    %v4789 = vpack.c.b16 %v2931, %v2929
    %v4790 = vpack.c.b16 %v2932, %v2930
    %v4791 = vpack.c.b16 %v2935, %v2933
    %v4792 = vpack.c.b16 %v2936, %v2934
    %v4793 = vpack.c.b16 %v2939, %v2937
    %v4794 = vpack.c.b16 %v2940, %v2938
    %v4795 = vpack.c.b16 %v2943, %v2941
    %v4796 = vpack.c.b16 %v2944, %v2942
    %v4797 = vpack.c.b16 %v2947, %v2945
    %v4798 = vpack.c.b16 %v2948, %v2946
    %v4799 = vpack.c.b16 %v2951, %v2949
    %v4800 = vpack.c.b16 %v2952, %v2950
    %v4801 = vpack.c.b16 %v2955, %v2953
    %v4802 = vpack.c.b16 %v2956, %v2954
    %v4803 = vpack.c.b16 %v2959, %v2957
    %v4804 = vpack.c.b16 %v2960, %v2958
    %v4805 = vpack.c.b16 %v2963, %v2961
    %v4806 = vpack.c.b16 %v2964, %v2962
    %v4807 = vpack.c.b16 %v2967, %v2965
    %v4808 = vpack.c.b16 %v2968, %v2966
    %v4809 = vpack.c.b16 %v2971, %v2969
    %v4810 = vpack.c.b16 %v2972, %v2970
    %v4811 = vpack.c.b16 %v2975, %v2973
    %v4812 = vpack.c.b16 %v2976, %v2974
    %v4813 = vpack.c.b16 %v2979, %v2977
    %v4814 = vpack.c.b16 %v2980, %v2978
    %v4815 = vpack.c.b16 %v2983, %v2981
    %v4816 = vpack.c.b16 %v2984, %v2982
    %v4817 = vpack.c.b16 %v2987, %v2985
    %v4818 = vpack.c.b16 %v2988, %v2986
    %v4819 = vpack.c.b16 %v2991, %v2989
    %v4820 = vpack.c.b16 %v2992, %v2990
    %v4821 = vpack.c.b16 %v2995, %v2993
    %v4822 = vpack.c.b16 %v2996, %v2994
    %v4823 = vpack.c.b16 %v2999, %v2997
    %v4824 = vpack.c.b16 %v3000, %v2998
    %v4825 = vpack.c.b16 %v3003, %v3001
    %v4826 = vpack.c.b16 %v3004, %v3002
    %v4827 = vpack.c.b16 %v3007, %v3005
    %v4828 = vpack.c.b16 %v3008, %v3006
    %v4829 = vpack.c.b16 %v3011, %v3009
    %v4830 = vpack.c.b16 %v3012, %v3010
    %v4831 = vpack.c.b16 %v3015, %v3013
    %v4832 = vpack.c.b16 %v3016, %v3014
    %v4833 = vpack.c.b16 %v3019, %v3017
    %v4834 = vpack.c.b16 %v3020, %v3018
    %v4835 = vpack.c.b16 %v3023, %v3021
    %v4836 = vpack.c.b16 %v3024, %v3022
    %v4837 = vpack.c.b16 %v3027, %v3025
    %v4838 = vpack.c.b16 %v3028, %v3026
    %v4839 = vpack.c.b16 %v3031, %v3029
    %v4840 = vpack.c.b16 %v3032, %v3030
    %v4841 = vpack.c.b16 %v3035, %v3033
    %v4842 = vpack.c.b16 %v3036, %v3034
    %v4843 = vpack.c.b16 %v3039, %v3037
    %v4844 = vpack.c.b16 %v3040, %v3038
    %v4845 = vpack.c.b16 %v3043, %v3041
    %v4846 = vpack.c.b16 %v3044, %v3042
    %v4847 = vpack.c.b16 %v3047, %v3045
    %v4848 = vpack.c.b16 %v3048, %v3046
    %v4849 = vpack.c.b16 %v3051, %v3049
    %v4850 = vpack.c.b16 %v3052, %v3050
    %v4851 = vpack.c.b16 %v3055, %v3053
    %v4852 = vpack.c.b16 %v3056, %v3054
    %v4853 = vpack.c.b16 %v3059, %v3057
    %v4854 = vpack.c.b16 %v3060, %v3058
    %v4855 = vpack.c.b16 %v3063, %v3061
    %v4856 = vpack.c.b16 %v3064, %v3062
    %v4857 = vpack.c.b16 %v3067, %v3065
    %v4858 = vpack.c.b16 %v3068, %v3066
    %v4859 = vpack.c.b16 %v3071, %v3069
    %v4860 = vpack.c.b16 %v3072, %v3070
    %v4861 = vpack.c.b16 %v3075, %v3073
    %v4862 = vpack.c.b16 %v3076, %v3074
    %v4863 = vpack.c.b16 %v3079, %v3077
    %v4864 = vpack.c.b16 %v3080, %v3078
    %v4865 = vpack.c.b16 %v3083, %v3081
    %v4866 = vpack.c.b16 %v3084, %v3082
    %v4867 = vpack.c.b16 %v3087, %v3085
    %v4868 = vpack.c.b16 %v3088, %v3086
    %v4869 = vpack.c.b16 %v3091, %v3089
    %v4870 = vpack.c.b16 %v3092, %v3090
    %v4871 = vpack.c.b16 %v3095, %v3093
    %v4872 = vpack.c.b16 %v3096, %v3094
    %v4873 = vpack.c.b16 %v3099, %v3097
    %v4874 = vpack.c.b16 %v3100, %v3098
    %v4875 = vpack.c.b16 %v3103, %v3101
    %v4876 = vpack.c.b16 %v3104, %v3102
    %v4877 = vpack.c.b16 %v3107, %v3105
    %v4878 = vpack.c.b16 %v3108, %v3106
    %v4879 = vpack.c.b16 %v3111, %v3109
    %v4880 = vpack.c.b16 %v3112, %v3110
    %v4881 = vpack.c.b16 %v3115, %v3113
    %v4882 = vpack.c.b16 %v3116, %v3114
    %v4883 = vpack.c.b16 %v3119, %v3117
    %v4884 = vpack.c.b16 %v3120, %v3118
    %v4885 = vpack.c.b16 %v3123, %v3121
    %v4886 = vpack.c.b16 %v3124, %v3122
    %v4887 = vpack.c.b16 %v3127, %v3125
    %v4888 = vpack.c.b16 %v3128, %v3126
    %v4889 = vpack.c.b16 %v3131, %v3129
    %v4890 = vpack.c.b16 %v3132, %v3130
    %v4891 = vpack.c.b16 %v3135, %v3133
    %v4892 = vpack.c.b16 %v3136, %v3134
    %v4893 = vpack.c.b16 %v3139, %v3137
    %v4894 = vpack.c.b16 %v3140, %v3138
    %v4895 = vpack.c.b16 %v3143, %v3141
    %v4896 = vpack.c.b16 %v3144, %v3142
    %v4897 = vpack.c.b16 %v3147, %v3145
    %v4898 = vpack.c.b16 %v3148, %v3146
    %v4899 = vpack.c.b16 %v3151, %v3149
    %v4900 = vpack.c.b16 %v3152, %v3150
    %v4901 = vpack.c.b16 %v3155, %v3153
    %v4902 = vpack.c.b16 %v3156, %v3154
    %v4903 = vpack.c.b16 %v3159, %v3157
    %v4904 = vpack.c.b16 %v3160, %v3158
    %v4905 = vpack.c.b16 %v3163, %v3161
    %v4906 = vpack.c.b16 %v3164, %v3162
    %v4907 = vpack.c.b16 %v3167, %v3165
    %v4908 = vpack.c.b16 %v3168, %v3166
    %v4909 = vpack.c.b16 %v3171, %v3169
    %v4910 = vpack.c.b16 %v3172, %v3170
    %v4911 = vpack.c.b16 %v3175, %v3173
    %v4912 = vpack.c.b16 %v3176, %v3174
    %v4913 = vpack.c.b16 %v3179, %v3177
    %v4914 = vpack.c.b16 %v3180, %v3178
    %v4915 = vpack.c.b16 %v3183, %v3181
    %v4916 = vpack.c.b16 %v3184, %v3182
    %v4917 = vpack.c.b16 %v3187, %v3185
    %v4918 = vpack.c.b16 %v3188, %v3186
    %v4919 = vpack.c.b16 %v3191, %v3189
    %v4920 = vpack.c.b16 %v3192, %v3190
    %v4921 = vpack.c.b16 %v3195, %v3193
    %v4922 = vpack.c.b16 %v3196, %v3194
    %v4923 = vpack.c.b16 %v3199, %v3197
    %v4924 = vpack.c.b16 %v3200, %v3198
    %v4925 = vpack.c.b16 %v3203, %v3201
    %v4926 = vpack.c.b16 %v3204, %v3202
    %v4927 = vpack.c.b16 %v3207, %v3205
    %v4928 = vpack.c.b16 %v3208, %v3206
    %v4929 = vpack.c.b16 %v3211, %v3209
    %v4930 = vpack.c.b16 %v3212, %v3210
    %v4931 = vpack.c.b16 %v3215, %v3213
    %v4932 = vpack.c.b16 %v3216, %v3214
    %v4933 = vpack.c.b16 %v3219, %v3217
    %v4934 = vpack.c.b16 %v3220, %v3218
    %v4935 = vpack.c.b16 %v3223, %v3221
    %v4936 = vpack.c.b16 %v3224, %v3222
    %v4937 = vpack.c.b16 %v3227, %v3225
    %v4938 = vpack.c.b16 %v3228, %v3226
    %v4939 = vpack.c.b16 %v3231, %v3229
    %v4940 = vpack.c.b16 %v3232, %v3230
    %v4941 = vpack.c.b16 %v3235, %v3233
    %v4942 = vpack.c.b16 %v3236, %v3234
    %v4943 = vpack.c.b16 %v3239, %v3237
    %v4944 = vpack.c.b16 %v3240, %v3238
    %v4945 = vpack.c.b16 %v3243, %v3241
    %v4946 = vpack.c.b16 %v3244, %v3242
    %v4947 = vpack.c.b16 %v3247, %v3245
    %v4948 = vpack.c.b16 %v3248, %v3246
    %v4949 = vpack.c.b16 %v3251, %v3249
    %v4950 = vpack.c.b16 %v3252, %v3250
    %v4951 = vpack.c.b16 %v3255, %v3253
    %v4952 = vpack.c.b16 %v3256, %v3254
    %v4953 = vpack.c.b16 %v3259, %v3257
    %v4954 = vpack.c.b16 %v3260, %v3258
    %v4955 = vpack.c.b16 %v3263, %v3261
    %v4956 = vpack.c.b16 %v3264, %v3262
    %v4957 = vpack.c.b16 %v3267, %v3265
    %v4958 = vpack.c.b16 %v3268, %v3266
    %v4959 = vpack.c.b16 %v3271, %v3269
    %v4960 = vpack.c.b16 %v3272, %v3270
    %v4961 = vpack.c.b16 %v3275, %v3273
    %v4962 = vpack.c.b16 %v3276, %v3274
    %v4963 = vpack.c.b16 %v3279, %v3277
    %v4964 = vpack.c.b16 %v3280, %v3278
    %v4965 = vpack.c.b16 %v3283, %v3281
    %v4966 = vpack.c.b16 %v3284, %v3282
    %v4967 = vpack.c.b16 %v3287, %v3285
    %v4968 = vpack.c.b16 %v3288, %v3286
    %v4969 = vpack.c.b16 %v3291, %v3289
    %v4970 = vpack.c.b16 %v3292, %v3290
    %v4971 = vpack.c.b16 %v3295, %v3293
    %v4972 = vpack.c.b16 %v3296, %v3294
    %v4973 = vpack.c.b16 %v3299, %v3297
    %v4974 = vpack.c.b16 %v3300, %v3298
    %v4975 = vpack.c.b16 %v3303, %v3301
    %v4976 = vpack.c.b16 %v3304, %v3302
    %v4977 = vpack.c.b16 %v3307, %v3305
    %v4978 = vpack.c.b16 %v3308, %v3306
    %v4979 = vpack.c.b16 %v3311, %v3309
    %v4980 = vpack.c.b16 %v3312, %v3310
    %v4981 = vpack.c.b16 %v3315, %v3313
    %v4982 = vpack.c.b16 %v3316, %v3314
    %v4983 = vpack.c.b16 %v3319, %v3317
    %v4984 = vpack.c.b16 %v3320, %v3318
    %v4985 = vpack.c.b16 %v3323, %v3321
    %v4986 = vpack.c.b16 %v3324, %v3322
    %v4987 = vpack.c.b16 %v3327, %v3325
    %v4988 = vpack.c.b16 %v3328, %v3326
    %v4989 = vpack.c.b16 %v3331, %v3329
    %v4990 = vpack.c.b16 %v3332, %v3330
    %v4991 = vpack.c.b16 %v3335, %v3333
    %v4992 = vpack.c.b16 %v3336, %v3334
    %v4993 = vpack.c.b16 %v3339, %v3337
    %v4994 = vpack.c.b16 %v3340, %v3338
    %v4995 = vpack.c.b16 %v3343, %v3341
    %v4996 = vpack.c.b16 %v3344, %v3342
    %v4997 = vpack.c.b16 %v3347, %v3345
    %v4998 = vpack.c.b16 %v3348, %v3346
    %v4999 = vpack.c.b16 %v3351, %v3349
    %v5000 = vpack.c.b16 %v3352, %v3350
    %v5001 = vpack.c.b16 %v3355, %v3353
    %v5002 = vpack.c.b16 %v3356, %v3354
    %v5003 = vpack.c.b16 %v3359, %v3357
    %v5004 = vpack.c.b16 %v3360, %v3358
    %v5005 = vpack.c.b16 %v3363, %v3361
    %v5006 = vpack.c.b16 %v3364, %v3362
    %v5007 = vpack.c.b16 %v3367, %v3365
    %v5008 = vpack.c.b16 %v3368, %v3366
    %v5009 = vpack.c.b16 %v3371, %v3369
    %v5010 = vpack.c.b16 %v3372, %v3370
    %v5011 = vpack.c.b16 %v3375, %v3373
    %v5012 = vpack.c.b16 %v3376, %v3374
    %v5013 = vpack.c.b16 %v3379, %v3377
    %v5014 = vpack.c.b16 %v3380, %v3378
    %v5015 = vpack.c.b16 %v3383, %v3381
    %v5016 = vpack.c.b16 %v3384, %v3382
    %v5017 = vpack.c.b16 %v3387, %v3385
    %v5018 = vpack.c.b16 %v3388, %v3386
    %v5019 = vpack.c.b16 %v3391, %v3389
    %v5020 = vpack.c.b16 %v3392, %v3390
    %v5021 = vpack.c.b16 %v3395, %v3393
    %v5022 = vpack.c.b16 %v3396, %v3394
    %v5023 = vpack.c.b16 %v3399, %v3397
    %v5024 = vpack.c.b16 %v3400, %v3398
    %v5025 = vpack.c.b16 %v3403, %v3401
    %v5026 = vpack.c.b16 %v3404, %v3402
    %v5027 = vpack.c.b16 %v3407, %v3405
    %v5028 = vpack.c.b16 %v3408, %v3406
    %v5029 = vpack.c.b16 %v3411, %v3409
    %v5030 = vpack.c.b16 %v3412, %v3410
    %v5031 = vpack.c.b16 %v3415, %v3413
    %v5032 = vpack.c.b16 %v3416, %v3414
    %v5033 = vpack.c.b16 %v3419, %v3417
    %v5034 = vpack.c.b16 %v3420, %v3418
    %v5035 = vpack.c.b16 %v3423, %v3421
    %v5036 = vpack.c.b16 %v3424, %v3422
    %v5037 = vpack.c.b16 %v3427, %v3425
    %v5038 = vpack.c.b16 %v3428, %v3426
    %v5039 = vpack.c.b16 %v3431, %v3429
    %v5040 = vpack.c.b16 %v3432, %v3430
    %v5041 = vpack.c.b16 %v3435, %v3433
    %v5042 = vpack.c.b16 %v3436, %v3434
    %v5043 = vpack.c.b16 %v3439, %v3437
    %v5044 = vpack.c.b16 %v3440, %v3438
    %v5045 = vpack.c.b16 %v3443, %v3441
    %v5046 = vpack.c.b16 %v3444, %v3442
    %v5047 = vpack.c.b16 %v3447, %v3445
    %v5048 = vpack.c.b16 %v3448, %v3446
    %v5049 = vpack.c.b16 %v3451, %v3449
    %v5050 = vpack.c.b16 %v3452, %v3450
    %v5051 = vpack.c.b16 %v3455, %v3453
    %v5052 = vpack.c.b16 %v3456, %v3454
    %v5053 = vpack.c.b16 %v3459, %v3457
    %v5054 = vpack.c.b16 %v3460, %v3458
    %v5055 = vpack.c.b16 %v3463, %v3461
    %v5056 = vpack.c.b16 %v3464, %v3462
    %v5057 = vpack.c.b16 %v3467, %v3465
    %v5058 = vpack.c.b16 %v3468, %v3466
    %v5059 = vpack.c.b16 %v3471, %v3469
    %v5060 = vpack.c.b16 %v3472, %v3470
    %v5061 = vpack.c.b16 %v3475, %v3473
    %v5062 = vpack.c.b16 %v3476, %v3474
    %v5063 = vpack.c.b16 %v3479, %v3477
    %v5064 = vpack.c.b16 %v3480, %v3478
    %v5065 = vpack.c.b16 %v3483, %v3481
    %v5066 = vpack.c.b16 %v3484, %v3482
    %v5067 = vpack.c.b16 %v3487, %v3485
    %v5068 = vpack.c.b16 %v3488, %v3486
    %v5069 = vpack.c.b16 %v3491, %v3489
    %v5070 = vpack.c.b16 %v3492, %v3490
    %v5071 = vpack.c.b16 %v3495, %v3493
    %v5072 = vpack.c.b16 %v3496, %v3494
    %v5073 = vpack.c.b16 %v3499, %v3497
    %v5074 = vpack.c.b16 %v3500, %v3498
    %v5075 = vpack.c.b16 %v3503, %v3501
    %v5076 = vpack.c.b16 %v3504, %v3502
    %v5077 = vpack.c.b16 %v3507, %v3505
    %v5078 = vpack.c.b16 %v3508, %v3506
    %v5079 = vpack.c.b16 %v3511, %v3509
    %v5080 = vpack.c.b16 %v3512, %v3510
    %v5081 = vpack.c.b16 %v3515, %v3513
    %v5082 = vpack.c.b16 %v3516, %v3514
    %v5083 = vpack.c.b16 %v3519, %v3517
    %v5084 = vpack.c.b16 %v3520, %v3518
    %v5085 = vpack.c.b16 %v3523, %v3521
    %v5086 = vpack.c.b16 %v3524, %v3522
    %v5087 = vpack.c.b16 %v3527, %v3525
    %v5088 = vpack.c.b16 %v3528, %v3526
    %v5089 = vpack.c.b16 %v3531, %v3529
    %v5090 = vpack.c.b16 %v3532, %v3530
    %v5091 = vpack.c.b16 %v3535, %v3533
    %v5092 = vpack.c.b16 %v3536, %v3534
    %v5093 = vpack.c.b16 %v3539, %v3537
    %v5094 = vpack.c.b16 %v3540, %v3538
    %v5095 = vpack.c.b16 %v3543, %v3541
    %v5096 = vpack.c.b16 %v3544, %v3542
    %v5097 = vpack.c.b16 %v3547, %v3545
    %v5098 = vpack.c.b16 %v3548, %v3546
    %v5099 = vpack.c.b16 %v3551, %v3549
    %v5100 = vpack.c.b16 %v3552, %v3550
    %v5101 = vpack.c.b16 %v3555, %v3553
    %v5102 = vpack.c.b16 %v3556, %v3554
    %v5103 = vpack.c.b16 %v3559, %v3557
    %v5104 = vpack.c.b16 %v3560, %v3558
    %v5105 = vpack.c.b16 %v3563, %v3561
    %v5106 = vpack.c.b16 %v3564, %v3562
    %v5107 = vpack.c.b16 %v3567, %v3565
    %v5108 = vpack.c.b16 %v3568, %v3566
    %v5109 = vpack.c.b16 %v3571, %v3569
    %v5110 = vpack.c.b16 %v3572, %v3570
    %v5111 = vpack.c.b16 %v3575, %v3573
    %v5112 = vpack.c.b16 %v3576, %v3574
    %v5113 = vpack.c.b16 %v3579, %v3577
    %v5114 = vpack.c.b16 %v3580, %v3578
    %v5115 = vpack.c.b16 %v3583, %v3581
    %v5116 = vpack.c.b16 %v3584, %v3582
    %v5117 = vpack.c.b16 %v3587, %v3585
    %v5118 = vpack.c.b16 %v3588, %v3586
    %v5119 = vpack.c.b16 %v3591, %v3589
    %v5120 = vpack.c.b16 %v3592, %v3590
    %v5121 = vpack.c.b16 %v3595, %v3593
    %v5122 = vpack.c.b16 %v3596, %v3594
    %v5123 = vpack.c.b16 %v3599, %v3597
    %v5124 = vpack.c.b16 %v3600, %v3598
    %v5125 = vpack.c.b16 %v3603, %v3601
    %v5126 = vpack.c.b16 %v3604, %v3602
    %v5127 = vpack.c.b16 %v3607, %v3605
    %v5128 = vpack.c.b16 %v3608, %v3606
    %v5129 = vpack.c.b16 %v3611, %v3609
    %v5130 = vpack.c.b16 %v3612, %v3610
    %v5131 = vpack.c.b16 %v3615, %v3613
    %v5132 = vpack.c.b16 %v3616, %v3614
    %v5133 = vpack.c.b16 %v3619, %v3617
    %v5134 = vpack.c.b16 %v3620, %v3618
    %v5135 = vpack.c.b16 %v3623, %v3621
    %v5136 = vpack.c.b16 %v3624, %v3622
    %v5137 = vpack.c.b16 %v3627, %v3625
    %v5138 = vpack.c.b16 %v3628, %v3626
    %v5139 = vpack.c.b16 %v3631, %v3629
    %v5140 = vpack.c.b16 %v3632, %v3630
    %v5141 = vpack.c.b16 %v3635, %v3633
    %v5142 = vpack.c.b16 %v3636, %v3634
    %v5143 = vpack.c.b16 %v3639, %v3637
    %v5144 = vpack.c.b16 %v3640, %v3638
    %v5145 = vpack.c.b16 %v3643, %v3641
    %v5146 = vpack.c.b16 %v3644, %v3642
    %v5147 = vpack.c.b16 %v3647, %v3645
    %v5148 = vpack.c.b16 %v3648, %v3646
    %v5149 = vpack.c.b16 %v3651, %v3649
    %v5150 = vpack.c.b16 %v3652, %v3650
    %v5151 = vpack.c.b16 %v3655, %v3653
    %v5152 = vpack.c.b16 %v3656, %v3654
    %v5153 = vpack.c.b16 %v3659, %v3657
    %v5154 = vpack.c.b16 %v3660, %v3658
    %v5155 = vpack.c.b16 %v3663, %v3661
    %v5156 = vpack.c.b16 %v3664, %v3662
    %v5157 = vpack.c.b16 %v3667, %v3665
    %v5158 = vpack.c.b16 %v3668, %v3666
    %v5159 = vpack.c.b16 %v3671, %v3669
    %v5160 = vpack.c.b16 %v3672, %v3670
    %v5161 = vpack.c.b16 %v3675, %v3673
    %v5162 = vpack.c.b16 %v3676, %v3674
    %v5163 = vpack.c.b16 %v3679, %v3677
    %v5164 = vpack.c.b16 %v3680, %v3678
    %v5165 = vpack.c.b16 %v3683, %v3681
    %v5166 = vpack.c.b16 %v3684, %v3682
    %v5167 = vpack.c.b16 %v3687, %v3685
    %v5168 = vpack.c.b16 %v3688, %v3686
    %v5169 = vpack.c.b16 %v3691, %v3689
    %v5170 = vpack.c.b16 %v3692, %v3690
    %v5171 = vpack.c.b16 %v3695, %v3693
    %v5172 = vpack.c.b16 %v3696, %v3694
    %v5173 = vpack.c.b16 %v3699, %v3697
    %v5174 = vpack.c.b16 %v3700, %v3698
    %v5175 = vpack.c.b16 %v3703, %v3701
    %v5176 = vpack.c.b16 %v3704, %v3702
    %v5177 = vpack.c.b16 %v3707, %v3705
    %v5178 = vpack.c.b16 %v3708, %v3706
    %v5179 = vpack.c.b16 %v3711, %v3709
    %v5180 = vpack.c.b16 %v3712, %v3710
    %v5181 = vpack.c.b16 %v3715, %v3713
    %v5182 = vpack.c.b16 %v3716, %v3714
    %v5183 = vpack.c.b16 %v3719, %v3717
    %v5184 = vpack.c.b16 %v3720, %v3718
    %v5185 = vpack.c.b16 %v3723, %v3721
    %v5186 = vpack.c.b16 %v3724, %v3722
    %v5187 = vpack.c.b16 %v3727, %v3725
    %v5188 = vpack.c.b16 %v3728, %v3726
    %v5189 = vpack.c.b16 %v3731, %v3729
    %v5190 = vpack.c.b16 %v3732, %v3730
    %v5191 = vpack.c.b16 %v3735, %v3733
    %v5192 = vpack.c.b16 %v3736, %v3734
    %v5193 = vpack.c.b16 %v3739, %v3737
    %v5194 = vpack.c.b16 %v3740, %v3738
    %v5195 = vpack.c.b16 %v3743, %v3741
    %v5196 = vpack.c.b16 %v3744, %v3742
    %v5197 = vpack.c.b16 %v3747, %v3745
    %v5198 = vpack.c.b16 %v3748, %v3746
    %v5199 = vpack.c.b16 %v3751, %v3749
    %v5200 = vpack.c.b16 %v3752, %v3750
    %v5201 = vpack.c.b16 %v3755, %v3753
    %v5202 = vpack.c.b16 %v3756, %v3754
    %v5203 = vpack.c.b16 %v3759, %v3757
    %v5204 = vpack.c.b16 %v3760, %v3758
    %v5205 = vpack.c.b16 %v3763, %v3761
    %v5206 = vpack.c.b16 %v3764, %v3762
    %v5207 = vpack.c.b16 %v3767, %v3765
    %v5208 = vpack.c.b16 %v3768, %v3766
    %v5209 = vpack.c.b16 %v3771, %v3769
    %v5210 = vpack.c.b16 %v3772, %v3770
    %v5211 = vpack.c.b16 %v3775, %v3773
    %v5212 = vpack.c.b16 %v3776, %v3774
    %v5213 = vpack.c.b16 %v3779, %v3777
    %v5214 = vpack.c.b16 %v3780, %v3778
    %v5215 = vpack.c.b16 %v3783, %v3781
    %v5216 = vpack.c.b16 %v3784, %v3782
    %v5217 = vpack.c.b16 %v3787, %v3785
    %v5218 = vpack.c.b16 %v3788, %v3786
    %v5219 = vpack.c.b16 %v3791, %v3789
    %v5220 = vpack.c.b16 %v3792, %v3790
    %v5221 = vpack.c.b16 %v3795, %v3793
    %v5222 = vpack.c.b16 %v3796, %v3794
    %v5223 = vpack.c.b16 %v3799, %v3797
    %v5224 = vpack.c.b16 %v3800, %v3798
    %v5225 = vpack.c.b16 %v3803, %v3801
    %v5226 = vpack.c.b16 %v3804, %v3802
    %v5227 = vpack.c.b16 %v3807, %v3805
    %v5228 = vpack.c.b16 %v3808, %v3806
    %v5229 = vpack.c.b16 %v3811, %v3809
    %v5230 = vpack.c.b16 %v3812, %v3810
    %v5231 = vpack.c.b16 %v3815, %v3813
    %v5232 = vpack.c.b16 %v3816, %v3814
    %v5233 = vpack.c.b16 %v3819, %v3817
    %v5234 = vpack.c.b16 %v3820, %v3818
    %v5235 = vpack.c.b16 %v3823, %v3821
    %v5236 = vpack.c.b16 %v3824, %v3822
    %v5237 = vpack.c.b16 %v3827, %v3825
    %v5238 = vpack.c.b16 %v3828, %v3826
    %v5239 = vpack.c.b16 %v3831, %v3829
    %v5240 = vpack.c.b16 %v3832, %v3830
    %v5241 = vpack.c.b16 %v3835, %v3833
    %v5242 = vpack.c.b16 %v3836, %v3834
    %v5243 = vpack.c.b16 %v3839, %v3837
    %v5244 = vpack.c.b16 %v3840, %v3838
    %v5245 = vpack.c.b16 %v3843, %v3841
    %v5246 = vpack.c.b16 %v3844, %v3842
    %v5247 = vpack.c.b16 %v3847, %v3845
    %v5248 = vpack.c.b16 %v3848, %v3846
    %v5249 = vpack.c.b16 %v3851, %v3849
    %v5250 = vpack.c.b16 %v3852, %v3850
    %v5251 = vpack.c.b16 %v3855, %v3853
    %v5252 = vpack.c.b16 %v3856, %v3854
    %v5253 = vpack.c.b16 %v3859, %v3857
    %v5254 = vpack.c.b16 %v3860, %v3858
    %v5255 = vpack.c.b16 %v3863, %v3861
    %v5256 = vpack.c.b16 %v3864, %v3862
    %v5257 = vpack.c.b16 %v3867, %v3865
    %v5258 = vpack.c.b16 %v3868, %v3866
    %v5259 = vpack.c.b16 %v3871, %v3869
    %v5260 = vpack.c.b16 %v3872, %v3870
    %v5261 = vpack.c.b16 %v3875, %v3873
    %v5262 = vpack.c.b16 %v3876, %v3874
    %v5263 = vpack.c.b16 %v3879, %v3877
    %v5264 = vpack.c.b16 %v3880, %v3878
    %v5265 = vpack.c.b16 %v3883, %v3881
    %v5266 = vpack.c.b16 %v3884, %v3882
    %v5267 = vpack.c.b16 %v3887, %v3885
    %v5268 = vpack.c.b16 %v3888, %v3886
    %v5269 = vpack.c.b16 %v3891, %v3889
    %v5270 = vpack.c.b16 %v3892, %v3890
    %v5271 = vpack.c.b16 %v3895, %v3893
    %v5272 = vpack.c.b16 %v3896, %v3894
    %v5273 = vpack.c.b16 %v3899, %v3897
    %v5274 = vpack.c.b16 %v3900, %v3898
    %v5275 = vpack.c.b16 %v3903, %v3901
    %v5276 = vpack.c.b16 %v3904, %v3902
    %v5277 = vpack.c.b16 %v3907, %v3905
    %v5278 = vpack.c.b16 %v3908, %v3906
    %v5279 = vpack.c.b16 %v3911, %v3909
    %v5280 = vpack.c.b16 %v3912, %v3910
    %v5281 = vpack.c.b16 %v3915, %v3913
    %v5282 = vpack.c.b16 %v3916, %v3914
    %v5283 = vpack.c.b16 %v3919, %v3917
    %v5284 = vpack.c.b16 %v3920, %v3918
    %v5285 = vpack.c.b16 %v3923, %v3921
    %v5286 = vpack.c.b16 %v3924, %v3922
    %v5287 = vpack.c.b16 %v3927, %v3925
    %v5288 = vpack.c.b16 %v3928, %v3926
    %v5289 = vpack.c.b16 %v3931, %v3929
    %v5290 = vpack.c.b16 %v3932, %v3930
    %v5291 = vpack.c.b16 %v3935, %v3933
    %v5292 = vpack.c.b16 %v3936, %v3934
    %v5293 = vpack.c.b16 %v3939, %v3937
    %v5294 = vpack.c.b16 %v3940, %v3938
    %v5295 = vpack.c.b16 %v3943, %v3941
    %v5296 = vpack.c.b16 %v3944, %v3942
    %v5297 = vpack.c.b16 %v3947, %v3945
    %v5298 = vpack.c.b16 %v3948, %v3946
    %v5299 = vpack.c.b16 %v3951, %v3949
    %v5300 = vpack.c.b16 %v3952, %v3950
    %v5301 = vpack.c.b16 %v3955, %v3953
    %v5302 = vpack.c.b16 %v3956, %v3954
    %v5303 = vpack.c.b16 %v3959, %v3957
    %v5304 = vpack.c.b16 %v3960, %v3958
    %v5305 = vpack.c.b16 %v3963, %v3961
    %v5306 = vpack.c.b16 %v3964, %v3962
    %v5307 = vpack.c.b16 %v3967, %v3965
    %v5308 = vpack.c.b16 %v3968, %v3966
    %v5309 = vpack.c.b16 %v3971, %v3969
    %v5310 = vpack.c.b16 %v3972, %v3970
    %v5311 = vpack.c.b16 %v3975, %v3973
    %v5312 = vpack.c.b16 %v3976, %v3974
    %v5313 = vpack.c.b16 %v3979, %v3977
    %v5314 = vpack.c.b16 %v3980, %v3978
    %v5315 = vpack.c.b16 %v3983, %v3981
    %v5316 = vpack.c.b16 %v3984, %v3982
    %v5317 = vpack.c.b16 %v3987, %v3985
    %v5318 = vpack.c.b16 %v3988, %v3986
    %v5319 = vpack.c.b16 %v3991, %v3989
    %v5320 = vpack.c.b16 %v3992, %v3990
    %v5321 = vpack.c.b16 %v3995, %v3993
    %v5322 = vpack.c.b16 %v3996, %v3994
    %v5323 = vpack.c.b16 %v3999, %v3997
    %v5324 = vpack.c.b16 %v4000, %v3998
    %v5325 = vpack.c.b16 %v4003, %v4001
    %v5326 = vpack.c.b16 %v4004, %v4002
    %v5327 = vpack.c.b16 %v4007, %v4005
    %v5328 = vpack.c.b16 %v4008, %v4006
    %v5329 = vpack.c.b16 %v4011, %v4009
    %v5330 = vpack.c.b16 %v4012, %v4010
    %v5331 = vpack.c.b16 %v4015, %v4013
    %v5332 = vpack.c.b16 %v4016, %v4014
    %v5333 = vpack.c.b16 %v4019, %v4017
    %v5334 = vpack.c.b16 %v4020, %v4018
    %v5335 = vpack.c.b16 %v4023, %v4021
    %v5336 = vpack.c.b16 %v4024, %v4022
    %v5337 = vpack.c.b16 %v4027, %v4025
    %v5338 = vpack.c.b16 %v4028, %v4026
    %v5339 = vpack.c.b16 %v4031, %v4029
    %v5340 = vpack.c.b16 %v4032, %v4030
    %v5341 = vpack.c.b16 %v4035, %v4033
    %v5342 = vpack.c.b16 %v4036, %v4034
    %v5343 = vpack.c.b16 %v4039, %v4037
    %v5344 = vpack.c.b16 %v4040, %v4038
    %v5345 = vpack.c.b16 %v4043, %v4041
    %v5346 = vpack.c.b16 %v4044, %v4042
    %v5347 = vpack.c.b16 %v4047, %v4045
    %v5348 = vpack.c.b16 %v4048, %v4046
    %v5349 = vpack.c.b16 %v4051, %v4049
    %v5350 = vpack.c.b16 %v4052, %v4050
    %v5351 = vpack.c.b16 %v4055, %v4053
    %v5352 = vpack.c.b16 %v4056, %v4054
    %v5353 = vpack.c.b16 %v4059, %v4057
    %v5354 = vpack.c.b16 %v4060, %v4058
    %v5355 = vpack.c.b16 %v4063, %v4061
    %v5356 = vpack.c.b16 %v4064, %v4062
    %v5357 = vpack.c.b16 %v4067, %v4065
    %v5358 = vpack.c.b16 %v4068, %v4066
    %v5359 = vpack.c.b16 %v4071, %v4069
    %v5360 = vpack.c.b16 %v4072, %v4070
    %v5361 = vpack.c.b16 %v4075, %v4073
    %v5362 = vpack.c.b16 %v4076, %v4074
    %v5363 = vpack.c.b16 %v4079, %v4077
    %v5364 = vpack.c.b16 %v4080, %v4078
    %v5365 = vpack.c.b16 %v4083, %v4081
    %v5366 = vpack.c.b16 %v4084, %v4082
    %v5367 = vpack.c.b16 %v4087, %v4085
    %v5368 = vpack.c.b16 %v4088, %v4086
    %v5369 = vpack.c.b16 %v4091, %v4089
    %v5370 = vpack.c.b16 %v4092, %v4090
    %v5371 = vpack.c.b16 %v4095, %v4093
    %v5372 = vpack.c.b16 %v4096, %v4094
    %v5373 = vpack.c.b16 %v4099, %v4097
    %v5374 = vpack.c.b16 %v4100, %v4098
    %v5375 = vpack.c.b16 %v4103, %v4101
    %v5376 = vpack.c.b16 %v4104, %v4102
    %v5377 = vpack.c.b16 %v4107, %v4105
    %v5378 = vpack.c.b16 %v4108, %v4106
    %v5379 = vpack.c.b16 %v4111, %v4109
    %v5380 = vpack.c.b16 %v4112, %v4110
    %v5381 = vpack.c.b16 %v4115, %v4113
    %v5382 = vpack.c.b16 %v4116, %v4114
    %v5383 = vpack.c.b16 %v4119, %v4117
    %v5384 = vpack.c.b16 %v4120, %v4118
    %v5385 = vpack.c.b16 %v4123, %v4121
    %v5386 = vpack.c.b16 %v4124, %v4122
    %v5387 = vpack.c.b16 %v4127, %v4125
    %v5388 = vpack.c.b16 %v4128, %v4126
    %v5389 = vpack.c.b16 %v4131, %v4129
    %v5390 = vpack.c.b16 %v4132, %v4130
    %v5391 = vpack.c.b16 %v4135, %v4133
    %v5392 = vpack.c.b16 %v4136, %v4134
    %v5393 = vpack.c.b16 %v4139, %v4137
    %v5394 = vpack.c.b16 %v4140, %v4138
    %v5395 = vpack.c.b16 %v4143, %v4141
    %v5396 = vpack.c.b16 %v4144, %v4142
    %v5397 = vpack.c.b16 %v4147, %v4145
    %v5398 = vpack.c.b16 %v4148, %v4146
    %v5399 = vpack.c.b16 %v4151, %v4149
    %v5400 = vpack.c.b16 %v4152, %v4150
    %v5401 = vpack.c.b16 %v4155, %v4153
    %v5402 = vpack.c.b16 %v4156, %v4154
    %v5403 = vpack.c.b16 %v4159, %v4157
    %v5404 = vpack.c.b16 %v4160, %v4158
    %v5405 = vpack.c.b16 %v4163, %v4161
    %v5406 = vpack.c.b16 %v4164, %v4162
    %v5407 = vpack.c.b16 %v4167, %v4165
    %v5408 = vpack.c.b16 %v4168, %v4166
    %v5409 = vpack.c.b16 %v4171, %v4169
    %v5410 = vpack.c.b16 %v4172, %v4170
    %v5411 = vpack.c.b16 %v4175, %v4173
    %v5412 = vpack.c.b16 %v4176, %v4174
    %v5413 = vpack.c.b16 %v4179, %v4177
    %v5414 = vpack.c.b16 %v4180, %v4178
    %v5415 = vpack.c.b16 %v4183, %v4181
    %v5416 = vpack.c.b16 %v4184, %v4182
    %v5417 = vpack.c.b16 %v4187, %v4185
    %v5418 = vpack.c.b16 %v4188, %v4186
    %v5419 = vpack.c.b16 %v4191, %v4189
    %v5420 = vpack.c.b16 %v4192, %v4190
    %v5421 = vpack.c.b16 %v4195, %v4193
    %v5422 = vpack.c.b16 %v4196, %v4194
    %v5423 = vpack.c.b16 %v4199, %v4197
    %v5424 = vpack.c.b16 %v4200, %v4198
    %v5425 = vpack.c.b16 %v4203, %v4201
    %v5426 = vpack.c.b16 %v4204, %v4202
    %v5427 = vpack.c.b16 %v4207, %v4205
    %v5428 = vpack.c.b16 %v4208, %v4206
    %v5429 = vpack.c.b16 %v4211, %v4209
    %v5430 = vpack.c.b16 %v4212, %v4210
    %v5431 = vpack.c.b16 %v4215, %v4213
    %v5432 = vpack.c.b16 %v4216, %v4214
    %v5433 = vpack.c.b16 %v4219, %v4217
    %v5434 = vpack.c.b16 %v4220, %v4218
    %v5435 = vpack.c.b16 %v4223, %v4221
    %v5436 = vpack.c.b16 %v4224, %v4222
    %v5437 = vpack.c.b16 %v4227, %v4225
    %v5438 = vpack.c.b16 %v4228, %v4226
    %v5439 = vpack.c.b16 %v4231, %v4229
    %v5440 = vpack.c.b16 %v4232, %v4230
    %v5441 = vpack.c.b16 %v4235, %v4233
    %v5442 = vpack.c.b16 %v4236, %v4234
    %v5443 = vpack.c.b16 %v4239, %v4237
    %v5444 = vpack.c.b16 %v4240, %v4238
    %v5445 = vpack.c.b16 %v4243, %v4241
    %v5446 = vpack.c.b16 %v4244, %v4242
    %v5447 = vpack.c.b16 %v4247, %v4245
    %v5448 = vpack.c.b16 %v4248, %v4246
    %v5449 = vpack.c.b16 %v4251, %v4249
    %v5450 = vpack.c.b16 %v4252, %v4250
    %v5451 = vpack.c.b16 %v4255, %v4253
    %v5452 = vpack.c.b16 %v4256, %v4254
    %v5453 = vpack.c.b16 %v4259, %v4257
    %v5454 = vpack.c.b16 %v4260, %v4258
    %v5455 = vpack.c.b16 %v4263, %v4261
    %v5456 = vpack.c.b16 %v4264, %v4262
    %v5457 = vpack.c.b16 %v4267, %v4265
    %v5458 = vpack.c.b16 %v4268, %v4266
    %v5459 = vpack.c.b16 %v4271, %v4269
    %v5460 = vpack.c.b16 %v4272, %v4270
    %v5461 = vpack.c.b16 %v4275, %v4273
    %v5462 = vpack.c.b16 %v4276, %v4274
    %v5463 = vpack.c.b16 %v4279, %v4277
    %v5464 = vpack.c.b16 %v4280, %v4278
    %v5465 = vpack.c.b16 %v4283, %v4281
    %v5466 = vpack.c.b16 %v4284, %v4282
    %v5467 = vpack.c.b16 %v4287, %v4285
    %v5468 = vpack.c.b16 %v4288, %v4286
    %v5469 = vpack.c.b16 %v4291, %v4289
    %v5470 = vpack.c.b16 %v4292, %v4290
    %v5471 = vpack.c.b16 %v4295, %v4293
    %v5472 = vpack.c.b16 %v4296, %v4294
    %v5473 = vpack.c.b16 %v4299, %v4297
    %v5474 = vpack.c.b16 %v4300, %v4298
    %v5475 = vpack.c.b16 %v4303, %v4301
    %v5476 = vpack.c.b16 %v4304, %v4302
    %v5477 = vpack.c.b16 %v4307, %v4305
    %v5478 = vpack.c.b16 %v4308, %v4306
    %v5479 = vpack.c.b16 %v4311, %v4309
    %v5480 = vpack.c.b16 %v4312, %v4310
    %v5481 = vpack.c.b16 %v4315, %v4313
    %v5482 = vpack.c.b16 %v4316, %v4314
    %v5483 = vpack.c.b16 %v4319, %v4317
    %v5484 = vpack.c.b16 %v4320, %v4318
    %v5485 = vpack.c.b16 %v4323, %v4321
    %v5486 = vpack.c.b16 %v4324, %v4322
    %v5487 = vpack.c.b16 %v4327, %v4325
    %v5488 = vpack.c.b16 %v4328, %v4326
    %v5489 = vpack.c.b16 %v4331, %v4329
    %v5490 = vpack.c.b16 %v4332, %v4330
    %v5491 = vpack.c.b16 %v4335, %v4333
    %v5492 = vpack.c.b16 %v4336, %v4334
    %v5493 = vpack.c.b16 %v4339, %v4337
    %v5494 = vpack.c.b16 %v4340, %v4338
    %v5495 = vpack.c.b16 %v4343, %v4341
    %v5496 = vpack.c.b16 %v4344, %v4342
    %v5497 = vpack.c.b16 %v4347, %v4345
    %v5498 = vpack.c.b16 %v4348, %v4346
    %v5499 = vpack.c.b16 %v4351, %v4349
    %v5500 = vpack.c.b16 %v4352, %v4350
    %v5501 = vpack.c.b16 %v4355, %v4353
    %v5502 = vpack.c.b16 %v4356, %v4354
    %v5503 = vpack.c.b16 %v4359, %v4357
    %v5504 = vpack.c.b16 %v4360, %v4358
    %v5505 = vpack.c.b16 %v4363, %v4361
    %v5506 = vpack.c.b16 %v4364, %v4362
    %v5507 = vpack.c.b16 %v4367, %v4365
    %v5508 = vpack.c.b16 %v4368, %v4366
    %v5509 = vpack.c.b16 %v4371, %v4369
    %v5510 = vpack.c.b16 %v4372, %v4370
    %v5511 = vpack.c.b16 %v4375, %v4373
    %v5512 = vpack.c.b16 %v4376, %v4374
    %v5513 = vpack.c.b16 %v4379, %v4377
    %v5514 = vpack.c.b16 %v4380, %v4378
    %v5515 = vpack.c.b16 %v4383, %v4381
    %v5516 = vpack.c.b16 %v4384, %v4382
    %v5517 = vpack.c.b16 %v4387, %v4385
    %v5518 = vpack.c.b16 %v4388, %v4386
    %v5519 = vpack.c.b16 %v4391, %v4389
    %v5520 = vpack.c.b16 %v4392, %v4390
    %v5521 = vpack.c.b16 %v4395, %v4393
    %v5522 = vpack.c.b16 %v4396, %v4394
    %v5523 = vpack.c.b16 %v4399, %v4397
    %v5524 = vpack.c.b16 %v4400, %v4398
    %v5525 = vpack.c.b16 %v4403, %v4401
    %v5526 = vpack.c.b16 %v4404, %v4402
    %v5527 = vpack.c.b16 %v4407, %v4405
    %v5528 = vpack.c.b16 %v4408, %v4406
    %v5529 = vpack.c.b16 %v4411, %v4409
    %v5530 = vpack.c.b16 %v4412, %v4410
    %v5531 = vpack.c.b16 %v4415, %v4413
    %v5532 = vpack.c.b16 %v4416, %v4414
    %v5533 = vpack.c.b16 %v4419, %v4417
    %v5534 = vpack.c.b16 %v4420, %v4418
    %v5535 = vpack.c.b16 %v4423, %v4421
    %v5536 = vpack.c.b16 %v4424, %v4422
    %v5537 = vpack.c.b16 %v4427, %v4425
    %v5538 = vpack.c.b16 %v4428, %v4426
    %v5539 = vpack.c.b16 %v4431, %v4429
    %v5540 = vpack.c.b16 %v4432, %v4430
    %v5541 = vpack.c.b16 %v4435, %v4433
    %v5542 = vpack.c.b16 %v4436, %v4434
    %v5543 = vpack.c.b16 %v4439, %v4437
    %v5544 = vpack.c.b16 %v4440, %v4438
    %v5545 = vpack.c.b16 %v4443, %v4441
    %v5546 = vpack.c.b16 %v4444, %v4442
    %v5547 = vpack.c.b16 %v4447, %v4445
    %v5548 = vpack.c.b16 %v4448, %v4446
    %v5549 = vpack.c.b16 %v4451, %v4449
    %v5550 = vpack.c.b16 %v4452, %v4450
    %v5551 = vpack.c.b16 %v4455, %v4453
    %v5552 = vpack.c.b16 %v4456, %v4454
    %v5553 = vpack.c.b16 %v4459, %v4457
    %v5554 = vpack.c.b16 %v4460, %v4458
    %v5555 = vpack.c.b16 %v4463, %v4461
    %v5556 = vpack.c.b16 %v4464, %v4462
    %v5557 = vpack.c.b16 %v4467, %v4465
    %v5558 = vpack.c.b16 %v4468, %v4466
    %v5559 = vpack.c.b16 %v4471, %v4469
    %v5560 = vpack.c.b16 %v4472, %v4470
    %v5561 = vpack.c.b16 %v4475, %v4473
    %v5562 = vpack.c.b16 %v4476, %v4474
    %v5563 = vpack.c.b16 %v4479, %v4477
    %v5564 = vpack.c.b16 %v4480, %v4478
    %v5565 = vpack.c.b16 %v4483, %v4481
    %v5566 = vpack.c.b16 %v4484, %v4482
    %v5567 = vpack.c.b16 %v4487, %v4485
    %v5568 = vpack.c.b16 %v4488, %v4486
    %v5569 = vpack.c.b16 %v4491, %v4489
    %v5570 = vpack.c.b16 %v4492, %v4490
    %v5571 = vpack.c.b16 %v4495, %v4493
    %v5572 = vpack.c.b16 %v4496, %v4494
    %v5573 = vpack.c.b16 %v4499, %v4497
    %v5574 = vpack.c.b16 %v4500, %v4498
    %v5575 = vpack.c.b16 %v4503, %v4501
    %v5576 = vpack.c.b16 %v4504, %v4502
    %v5577 = vpack.c.b16 %v4507, %v4505
    %v5578 = vpack.c.b16 %v4508, %v4506
    %v5579 = vpack.c.b16 %v4511, %v4509
    %v5580 = vpack.c.b16 %v4512, %v4510
    %v5581 = vpack.c.b16 %v4515, %v4513
    %v5582 = vpack.c.b16 %v4516, %v4514
    %v5583 = vpack.c.b16 %v4519, %v4517
    %v5584 = vpack.c.b16 %v4520, %v4518
    %v5585 = vpack.c.b16 %v4523, %v4521
    %v5586 = vpack.c.b16 %v4524, %v4522
    %v5587 = vpack.c.b16 %v4527, %v4525
    %v5588 = vpack.c.b16 %v4528, %v4526
    %v5589 = vpack.c.b16 %v4531, %v4529
    %v5590 = vpack.c.b16 %v4532, %v4530
    %v5591 = vpack.c.b16 %v4535, %v4533
    %v5592 = vpack.c.b16 %v4536, %v4534
    %v5593 = vpack.c.b16 %v4539, %v4537
    %v5594 = vpack.c.b16 %v4540, %v4538
    %v5595 = vpack.c.b16 %v4543, %v4541
    %v5596 = vpack.c.b16 %v4544, %v4542
    %v5597 = vpack.c.b16 %v4547, %v4545
    %v5598 = vpack.c.b16 %v4548, %v4546
    %v5599 = vpack.c.b16 %v4551, %v4549
    %v5600 = vpack.c.b16 %v4552, %v4550
    %v5601 = vpack.c.b16 %v4555, %v4553
    %v5602 = vpack.c.b16 %v4556, %v4554
    %v5603 = vpack.c.b16 %v4559, %v4557
    %v5604 = vpack.c.b16 %v4560, %v4558
    %v5605 = vpack.c.b16 %v4563, %v4561
    %v5606 = vpack.c.b16 %v4564, %v4562
    %v5607 = vpack.c.b16 %v4567, %v4565
    %v5608 = vpack.c.b16 %v4568, %v4566
    %v5609 = vpack.c.b16 %v4571, %v4569
    %v5610 = vpack.c.b16 %v4572, %v4570
    %v5611 = vpack.c.b16 %v4575, %v4573
    %v5612 = vpack.c.b16 %v4576, %v4574
    %v5613 = vpack.c.b16 %v4579, %v4577
    %v5614 = vpack.c.b16 %v4580, %v4578
    %v5615 = vpack.c.b16 %v4583, %v4581
    %v5616 = vpack.c.b16 %v4584, %v4582
    %v5617 = vpack.c.b16 %v4587, %v4585
    %v5618 = vpack.c.b16 %v4588, %v4586
    %v5619 = vpack.c.b16 %v4591, %v4589
    %v5620 = vpack.c.b16 %v4592, %v4590
    %v5621 = vpack.c.b16 %v4595, %v4593
    %v5622 = vpack.c.b16 %v4596, %v4594
    %v5623 = vpack.c.b16 %v4599, %v4597
    %v5624 = vpack.c.b16 %v4600, %v4598
    %6649 = vmatprep.subr.bf16.mxu0 %v4616
    %6650 = vmatpush1.bf16.msra.mxu0 %v4615
    %6651 = vmatprep.subr.bf16.mxu0 %v4614
    %6652 = vmatpush1.bf16.msra.mxu0 %v4613
    %6653 = vmatprep.subr.bf16.mxu0 %v4612
    %6654 = vmatpush1.bf16.msra.mxu0 %v4611
    %6655 = vmatprep.subr.bf16.mxu0 %v4610
    %6656 = vmatpush1.bf16.msra.mxu0 %v4609
    %6657 = vmatprep.subr.bf16.mxu0 %v4608
    %6658 = vmatpush1.bf16.msra.mxu0 %v4607
    %6659 = vmatprep.subr.bf16.mxu0 %v4606
    %6660 = vmatpush1.bf16.msra.mxu0 %v4605
    %6661 = vmatprep.subr.bf16.mxu0 %v4604
    %6662 = vmatpush1.bf16.msra.mxu0 %v4603
    %6663 = vmatprep.subr.bf16.mxu0 %v4602
    %6664 = vmatpush1.bf16.msra.mxu0 %v4601
    %6665 = vmatprep.subr.bf16.mxu0 %v4632
    %6666 = vmatpush2.bf16.msra.mxu0 %v4631
    %6667 = vmatprep.subr.bf16.mxu0 %v4630
    %6668 = vmatpush2.bf16.msra.mxu0 %v4629
    %6669 = vmatprep.subr.bf16.mxu0 %v4628
    %6670 = vmatpush2.bf16.msra.mxu0 %v4627
    %6671 = vmatprep.subr.bf16.mxu0 %v4626
    %6672 = vmatpush2.bf16.msra.mxu0 %v4625
    %6673 = vmatprep.subr.bf16.mxu0 %v4624
    %6674 = vmatpush2.bf16.msra.mxu0 %v4623
    %6675 = vmatprep.subr.bf16.mxu0 %v4622
    %6676 = vmatpush2.bf16.msra.mxu0 %v4621
    %6677 = vmatprep.subr.bf16.mxu0 %v4620
    %6678 = vmatpush2.bf16.msra.mxu0 %v4619
    %6679 = vmatprep.subr.bf16.mxu0 %v4618
    %6680 = vmatpush2.bf16.msra.mxu0 %v4617
    %6681 = vmatprep.mubr.bf16.mxu0 %v1110
    %6682 = vmatmul.mubr.bf16.gmra.mxu0 %v1096
    %v6683 = vpop.f32.mrf.mxu0
    %v6684 = vadd.f32 %v1058, %v6683
    %v6685 = vpop.f32.mrf.mxu0
    %v6686 = vadd.f32 %v1062, %v6685
    %v6687 = vpop.f32.mrf.mxu0
    %v6688 = vpop.f32.mrf.mxu0
    %6689 = vdwg.mxu0
    %6690 = vmatprep.subr.bf16.mxu0 %v4648
    %6691 = vmatpush1.bf16.msra.mxu0 %v4647
    %6692 = vmatprep.subr.bf16.mxu0 %v4646
    %6693 = vmatpush1.bf16.msra.mxu0 %v4645
    %6694 = vmatprep.subr.bf16.mxu0 %v4644
    %6695 = vmatpush1.bf16.msra.mxu0 %v4643
    %6696 = vmatprep.subr.bf16.mxu0 %v4642
    %6697 = vmatpush1.bf16.msra.mxu0 %v4641
    %6698 = vmatprep.subr.bf16.mxu0 %v4640
    %6699 = vmatpush1.bf16.msra.mxu0 %v4639
    %6700 = vmatprep.subr.bf16.mxu0 %v4638
    %6701 = vmatpush1.bf16.msra.mxu0 %v4637
    %6702 = vmatprep.subr.bf16.mxu0 %v4636
    %6703 = vmatpush1.bf16.msra.mxu0 %v4635
    %6704 = vmatprep.subr.bf16.mxu0 %v4634
    %6705 = vmatpush1.bf16.msra.mxu0 %v4633
    %6706 = vmatprep.subr.bf16.mxu0 %v4664
    %6707 = vmatpush2.bf16.msra.mxu0 %v4663
    %6708 = vmatprep.subr.bf16.mxu0 %v4662
    %6709 = vmatpush2.bf16.msra.mxu0 %v4661
    %6710 = vmatprep.subr.bf16.mxu0 %v4660
    %6711 = vmatpush2.bf16.msra.mxu0 %v4659
    %6712 = vmatprep.subr.bf16.mxu0 %v4658
    %6713 = vmatpush2.bf16.msra.mxu0 %v4657
    %6714 = vmatprep.subr.bf16.mxu0 %v4656
    %6715 = vmatpush2.bf16.msra.mxu0 %v4655
    %6716 = vmatprep.subr.bf16.mxu0 %v4654
    %6717 = vmatpush2.bf16.msra.mxu0 %v4653
    %6718 = vmatprep.subr.bf16.mxu0 %v4652
    %6719 = vmatpush2.bf16.msra.mxu0 %v4651
    %6720 = vmatprep.subr.bf16.mxu0 %v4650
    %6721 = vmatpush2.bf16.msra.mxu0 %v4649
    %6722 = vmatprep.mubr.bf16.mxu0 %v1120
    %6723 = vmatmul.mubr.bf16.gmra.mxu0 %v1118
    %v6724 = vpop.f32.mrf.mxu0
    %v6725 = vadd.f32 %v6684, %v6724
    %v6726 = vpop.f32.mrf.mxu0
    %v6727 = vadd.f32 %v6686, %v6726
    %v6728 = vpop.f32.mrf.mxu0
    %v6729 = vpop.f32.mrf.mxu0
    %6730 = vdwg.mxu0
    %6731 = vmatprep.subr.bf16.mxu0 %v4680
    %6732 = vmatpush1.bf16.msra.mxu0 %v4679
    %6733 = vmatprep.subr.bf16.mxu0 %v4678
    %6734 = vmatpush1.bf16.msra.mxu0 %v4677
    %6735 = vmatprep.subr.bf16.mxu0 %v4676
    %6736 = vmatpush1.bf16.msra.mxu0 %v4675
    %6737 = vmatprep.subr.bf16.mxu0 %v4674
    %6738 = vmatpush1.bf16.msra.mxu0 %v4673
    %6739 = vmatprep.subr.bf16.mxu0 %v4672
    %6740 = vmatpush1.bf16.msra.mxu0 %v4671
    %6741 = vmatprep.subr.bf16.mxu0 %v4670
    %6742 = vmatpush1.bf16.msra.mxu0 %v4669
    %6743 = vmatprep.subr.bf16.mxu0 %v4668
    %6744 = vmatpush1.bf16.msra.mxu0 %v4667
    %6745 = vmatprep.subr.bf16.mxu0 %v4666
    %6746 = vmatpush1.bf16.msra.mxu0 %v4665
    %6747 = vmatprep.subr.bf16.mxu0 %v4696
    %6748 = vmatpush2.bf16.msra.mxu0 %v4695
    %6749 = vmatprep.subr.bf16.mxu0 %v4694
    %6750 = vmatpush2.bf16.msra.mxu0 %v4693
    %6751 = vmatprep.subr.bf16.mxu0 %v4692
    %6752 = vmatpush2.bf16.msra.mxu0 %v4691
    %6753 = vmatprep.subr.bf16.mxu0 %v4690
    %6754 = vmatpush2.bf16.msra.mxu0 %v4689
    %6755 = vmatprep.subr.bf16.mxu0 %v4688
    %6756 = vmatpush2.bf16.msra.mxu0 %v4687
    %6757 = vmatprep.subr.bf16.mxu0 %v4686
    %6758 = vmatpush2.bf16.msra.mxu0 %v4685
    %6759 = vmatprep.subr.bf16.mxu0 %v4684
    %6760 = vmatpush2.bf16.msra.mxu0 %v4683
    %6761 = vmatprep.subr.bf16.mxu0 %v4682
    %6762 = vmatpush2.bf16.msra.mxu0 %v4681
    %6763 = vmatprep.mubr.bf16.mxu0 %v1117
    %6764 = vmatmul.mubr.bf16.gmra.mxu0 %v1103
    %v6765 = vpop.f32.mrf.mxu0
    %v6766 = vadd.f32 %v6725, %v6765
    %v6767 = vpop.f32.mrf.mxu0
    %v6768 = vadd.f32 %v6727, %v6767
    %v6769 = vpop.f32.mrf.mxu0
    %v6770 = vpop.f32.mrf.mxu0
    %6771 = vdwg.mxu0
    %6772 = vmatprep.subr.bf16.mxu0 %v4712
    %6773 = vmatpush1.bf16.msra.mxu0 %v4711
    %6774 = vmatprep.subr.bf16.mxu0 %v4710
    %6775 = vmatpush1.bf16.msra.mxu0 %v4709
    %6776 = vmatprep.subr.bf16.mxu0 %v4708
    %6777 = vmatpush1.bf16.msra.mxu0 %v4707
    %6778 = vmatprep.subr.bf16.mxu0 %v4706
    %6779 = vmatpush1.bf16.msra.mxu0 %v4705
    %6780 = vmatprep.subr.bf16.mxu0 %v4704
    %6781 = vmatpush1.bf16.msra.mxu0 %v4703
    %6782 = vmatprep.subr.bf16.mxu0 %v4702
    %6783 = vmatpush1.bf16.msra.mxu0 %v4701
    %6784 = vmatprep.subr.bf16.mxu0 %v4700
    %6785 = vmatpush1.bf16.msra.mxu0 %v4699
    %6786 = vmatprep.subr.bf16.mxu0 %v4698
    %6787 = vmatpush1.bf16.msra.mxu0 %v4697
    %6788 = vmatprep.subr.bf16.mxu0 %v4728
    %6789 = vmatpush2.bf16.msra.mxu0 %v4727
    %6790 = vmatprep.subr.bf16.mxu0 %v4726
    %6791 = vmatpush2.bf16.msra.mxu0 %v4725
    %6792 = vmatprep.subr.bf16.mxu0 %v4724
    %6793 = vmatpush2.bf16.msra.mxu0 %v4723
    %6794 = vmatprep.subr.bf16.mxu0 %v4722
    %6795 = vmatpush2.bf16.msra.mxu0 %v4721
    %6796 = vmatprep.subr.bf16.mxu0 %v4720
    %6797 = vmatpush2.bf16.msra.mxu0 %v4719
    %6798 = vmatprep.subr.bf16.mxu0 %v4718
    %6799 = vmatpush2.bf16.msra.mxu0 %v4717
    %6800 = vmatprep.subr.bf16.mxu0 %v4716
    %6801 = vmatpush2.bf16.msra.mxu0 %v4715
    %6802 = vmatprep.subr.bf16.mxu0 %v4714
    %6803 = vmatpush2.bf16.msra.mxu0 %v4713
    %6804 = vmatprep.mubr.bf16.mxu0 %v1121
    %6805 = vmatmul.mubr.bf16.gmra.mxu0 %v1119
    %v6806 = vpop.f32.mrf.mxu0
    %v6807 = vadd.f32 %v6766, %v6806
    %v6808 = vpop.f32.mrf.mxu0
    %v6809 = vadd.f32 %v6768, %v6808
    %v6810 = vpop.f32.mrf.mxu0
    %v6811 = vpop.f32.mrf.mxu0
    %6812 = vdwg.mxu0
    %6813 = vmatprep.subr.bf16.mxu0 %v4744
    %6814 = vmatpush1.bf16.msra.mxu0 %v4743
    %6815 = vmatprep.subr.bf16.mxu0 %v4742
    %6816 = vmatpush1.bf16.msra.mxu0 %v4741
    %6817 = vmatprep.subr.bf16.mxu0 %v4740
    %6818 = vmatpush1.bf16.msra.mxu0 %v4739
    %6819 = vmatprep.subr.bf16.mxu0 %v4738
    %6820 = vmatpush1.bf16.msra.mxu0 %v4737
    %6821 = vmatprep.subr.bf16.mxu0 %v4736
    %6822 = vmatpush1.bf16.msra.mxu0 %v4735
    %6823 = vmatprep.subr.bf16.mxu0 %v4734
    %6824 = vmatpush1.bf16.msra.mxu0 %v4733
    %6825 = vmatprep.subr.bf16.mxu0 %v4732
    %6826 = vmatpush1.bf16.msra.mxu0 %v4731
    %6827 = vmatprep.subr.bf16.mxu0 %v4730
    %6828 = vmatpush1.bf16.msra.mxu0 %v4729
    %6829 = vmatprep.subr.bf16.mxu0 %v4760
    %6830 = vmatpush2.bf16.msra.mxu0 %v4759
    %6831 = vmatprep.subr.bf16.mxu0 %v4758
    %6832 = vmatpush2.bf16.msra.mxu0 %v4757
    %6833 = vmatprep.subr.bf16.mxu0 %v4756
    %6834 = vmatpush2.bf16.msra.mxu0 %v4755
    %6835 = vmatprep.subr.bf16.mxu0 %v4754
    %6836 = vmatpush2.bf16.msra.mxu0 %v4753
    %6837 = vmatprep.subr.bf16.mxu0 %v4752
    %6838 = vmatpush2.bf16.msra.mxu0 %v4751
    %6839 = vmatprep.subr.bf16.mxu0 %v4750
    %6840 = vmatpush2.bf16.msra.mxu0 %v4749
    %6841 = vmatprep.subr.bf16.mxu0 %v4748
    %6842 = vmatpush2.bf16.msra.mxu0 %v4747
    %6843 = vmatprep.subr.bf16.mxu0 %v4746
    %6844 = vmatpush2.bf16.msra.mxu0 %v4745
    %6845 = vmatprep.mubr.bf16.mxu0 %v1159
    %6846 = vmatmul.mubr.bf16.gmra.mxu0 %v1145
    %v6847 = vpop.f32.mrf.mxu0
    %v6848 = vadd.f32 %v6807, %v6847
    %v6849 = vpop.f32.mrf.mxu0
    %v6850 = vadd.f32 %v6809, %v6849
    %v6851 = vpop.f32.mrf.mxu0
    %v6852 = vpop.f32.mrf.mxu0
    %6853 = vdwg.mxu0
    %6854 = vmatprep.subr.bf16.mxu0 %v4776
    %6855 = vmatpush1.bf16.msra.mxu0 %v4775
    %6856 = vmatprep.subr.bf16.mxu0 %v4774
    %6857 = vmatpush1.bf16.msra.mxu0 %v4773
    %6858 = vmatprep.subr.bf16.mxu0 %v4772
    %6859 = vmatpush1.bf16.msra.mxu0 %v4771
    %6860 = vmatprep.subr.bf16.mxu0 %v4770
    %6861 = vmatpush1.bf16.msra.mxu0 %v4769
    %6862 = vmatprep.subr.bf16.mxu0 %v4768
    %6863 = vmatpush1.bf16.msra.mxu0 %v4767
    %6864 = vmatprep.subr.bf16.mxu0 %v4766
    %6865 = vmatpush1.bf16.msra.mxu0 %v4765
    %6866 = vmatprep.subr.bf16.mxu0 %v4764
    %6867 = vmatpush1.bf16.msra.mxu0 %v4763
    %6868 = vmatprep.subr.bf16.mxu0 %v4762
    %6869 = vmatpush1.bf16.msra.mxu0 %v4761
    %6870 = vmatprep.subr.bf16.mxu0 %v4792
    %6871 = vmatpush2.bf16.msra.mxu0 %v4791
    %6872 = vmatprep.subr.bf16.mxu0 %v4790
    %6873 = vmatpush2.bf16.msra.mxu0 %v4789
    %6874 = vmatprep.subr.bf16.mxu0 %v4788
    %6875 = vmatpush2.bf16.msra.mxu0 %v4787
    %6876 = vmatprep.subr.bf16.mxu0 %v4786
    %6877 = vmatpush2.bf16.msra.mxu0 %v4785
    %6878 = vmatprep.subr.bf16.mxu0 %v4784
    %6879 = vmatpush2.bf16.msra.mxu0 %v4783
    %6880 = vmatprep.subr.bf16.mxu0 %v4782
    %6881 = vmatpush2.bf16.msra.mxu0 %v4781
    %6882 = vmatprep.subr.bf16.mxu0 %v4780
    %6883 = vmatpush2.bf16.msra.mxu0 %v4779
    %6884 = vmatprep.subr.bf16.mxu0 %v4778
    %6885 = vmatpush2.bf16.msra.mxu0 %v4777
    %6886 = vmatprep.mubr.bf16.mxu0 %v1169
    %6887 = vmatmul.mubr.bf16.gmra.mxu0 %v1167
    %v6888 = vpop.f32.mrf.mxu0
    %v6889 = vadd.f32 %v6848, %v6888
    %v6890 = vpop.f32.mrf.mxu0
    %v6891 = vadd.f32 %v6850, %v6890
    %v6892 = vpop.f32.mrf.mxu0
    %v6893 = vpop.f32.mrf.mxu0
    %6894 = vdwg.mxu0
    %6895 = vmatprep.subr.bf16.mxu0 %v4808
    %6896 = vmatpush1.bf16.msra.mxu0 %v4807
    %6897 = vmatprep.subr.bf16.mxu0 %v4806
    %6898 = vmatpush1.bf16.msra.mxu0 %v4805
    %6899 = vmatprep.subr.bf16.mxu0 %v4804
    %6900 = vmatpush1.bf16.msra.mxu0 %v4803
    %6901 = vmatprep.subr.bf16.mxu0 %v4802
    %6902 = vmatpush1.bf16.msra.mxu0 %v4801
    %6903 = vmatprep.subr.bf16.mxu0 %v4800
    %6904 = vmatpush1.bf16.msra.mxu0 %v4799
    %6905 = vmatprep.subr.bf16.mxu0 %v4798
    %6906 = vmatpush1.bf16.msra.mxu0 %v4797
    %6907 = vmatprep.subr.bf16.mxu0 %v4796
    %6908 = vmatpush1.bf16.msra.mxu0 %v4795
    %6909 = vmatprep.subr.bf16.mxu0 %v4794
    %6910 = vmatpush1.bf16.msra.mxu0 %v4793
    %6911 = vmatprep.subr.bf16.mxu0 %v4824
    %6912 = vmatpush2.bf16.msra.mxu0 %v4823
    %6913 = vmatprep.subr.bf16.mxu0 %v4822
    %6914 = vmatpush2.bf16.msra.mxu0 %v4821
    %6915 = vmatprep.subr.bf16.mxu0 %v4820
    %6916 = vmatpush2.bf16.msra.mxu0 %v4819
    %6917 = vmatprep.subr.bf16.mxu0 %v4818
    %6918 = vmatpush2.bf16.msra.mxu0 %v4817
    %6919 = vmatprep.subr.bf16.mxu0 %v4816
    %6920 = vmatpush2.bf16.msra.mxu0 %v4815
    %6921 = vmatprep.subr.bf16.mxu0 %v4814
    %6922 = vmatpush2.bf16.msra.mxu0 %v4813
    %6923 = vmatprep.subr.bf16.mxu0 %v4812
    %6924 = vmatpush2.bf16.msra.mxu0 %v4811
    %6925 = vmatprep.subr.bf16.mxu0 %v4810
    %6926 = vmatpush2.bf16.msra.mxu0 %v4809
    %6927 = vmatprep.mubr.bf16.mxu0 %v1166
    %6928 = vmatmul.mubr.bf16.gmra.mxu0 %v1152
    %v6929 = vpop.f32.mrf.mxu0
    %v6930 = vadd.f32 %v6889, %v6929
    %v6931 = vpop.f32.mrf.mxu0
    %v6932 = vadd.f32 %v6891, %v6931
    %v6933 = vpop.f32.mrf.mxu0
    %v6934 = vpop.f32.mrf.mxu0
    %6935 = vdwg.mxu0
    %6936 = vmatprep.subr.bf16.mxu0 %v4840
    %6937 = vmatpush1.bf16.msra.mxu0 %v4839
    %6938 = vmatprep.subr.bf16.mxu0 %v4838
    %6939 = vmatpush1.bf16.msra.mxu0 %v4837
    %6940 = vmatprep.subr.bf16.mxu0 %v4836
    %6941 = vmatpush1.bf16.msra.mxu0 %v4835
    %6942 = vmatprep.subr.bf16.mxu0 %v4834
    %6943 = vmatpush1.bf16.msra.mxu0 %v4833
    %6944 = vmatprep.subr.bf16.mxu0 %v4832
    %6945 = vmatpush1.bf16.msra.mxu0 %v4831
    %6946 = vmatprep.subr.bf16.mxu0 %v4830
    %6947 = vmatpush1.bf16.msra.mxu0 %v4829
    %6948 = vmatprep.subr.bf16.mxu0 %v4828
    %6949 = vmatpush1.bf16.msra.mxu0 %v4827
    %6950 = vmatprep.subr.bf16.mxu0 %v4826
    %6951 = vmatpush1.bf16.msra.mxu0 %v4825
    %6952 = vmatprep.subr.bf16.mxu0 %v4856
    %6953 = vmatpush2.bf16.msra.mxu0 %v4855
    %6954 = vmatprep.subr.bf16.mxu0 %v4854
    %6955 = vmatpush2.bf16.msra.mxu0 %v4853
    %6956 = vmatprep.subr.bf16.mxu0 %v4852
    %6957 = vmatpush2.bf16.msra.mxu0 %v4851
    %6958 = vmatprep.subr.bf16.mxu0 %v4850
    %6959 = vmatpush2.bf16.msra.mxu0 %v4849
    %6960 = vmatprep.subr.bf16.mxu0 %v4848
    %6961 = vmatpush2.bf16.msra.mxu0 %v4847
    %6962 = vmatprep.subr.bf16.mxu0 %v4846
    %6963 = vmatpush2.bf16.msra.mxu0 %v4845
    %6964 = vmatprep.subr.bf16.mxu0 %v4844
    %6965 = vmatpush2.bf16.msra.mxu0 %v4843
    %6966 = vmatprep.subr.bf16.mxu0 %v4842
    %6967 = vmatpush2.bf16.msra.mxu0 %v4841
    %6968 = vmatprep.mubr.bf16.mxu0 %v1170
    %6969 = vmatmul.mubr.bf16.gmra.mxu0 %v1168
    %v6970 = vpop.f32.mrf.mxu0
    %v6971 = vadd.f32 %v6930, %v6970
    %v6972 = vpop.f32.mrf.mxu0
    %v6973 = vadd.f32 %v6932, %v6972
    %v6974 = vpop.f32.mrf.mxu0
    %v6975 = vpop.f32.mrf.mxu0
    %6976 = vdwg.mxu0
    %6977 = vmatprep.subr.bf16.mxu0 %v4872
    %6978 = vmatpush1.bf16.msra.mxu0 %v4871
    %6979 = vmatprep.subr.bf16.mxu0 %v4870
    %6980 = vmatpush1.bf16.msra.mxu0 %v4869
    %6981 = vmatprep.subr.bf16.mxu0 %v4868
    %6982 = vmatpush1.bf16.msra.mxu0 %v4867
    %6983 = vmatprep.subr.bf16.mxu0 %v4866
    %6984 = vmatpush1.bf16.msra.mxu0 %v4865
    %6985 = vmatprep.subr.bf16.mxu0 %v4864
    %6986 = vmatpush1.bf16.msra.mxu0 %v4863
    %6987 = vmatprep.subr.bf16.mxu0 %v4862
    %6988 = vmatpush1.bf16.msra.mxu0 %v4861
    %6989 = vmatprep.subr.bf16.mxu0 %v4860
    %6990 = vmatpush1.bf16.msra.mxu0 %v4859
    %6991 = vmatprep.subr.bf16.mxu0 %v4858
    %6992 = vmatpush1.bf16.msra.mxu0 %v4857
    %6993 = vmatprep.subr.bf16.mxu0 %v4888
    %6994 = vmatpush2.bf16.msra.mxu0 %v4887
    %6995 = vmatprep.subr.bf16.mxu0 %v4886
    %6996 = vmatpush2.bf16.msra.mxu0 %v4885
    %6997 = vmatprep.subr.bf16.mxu0 %v4884
    %6998 = vmatpush2.bf16.msra.mxu0 %v4883
    %6999 = vmatprep.subr.bf16.mxu0 %v4882
    %7000 = vmatpush2.bf16.msra.mxu0 %v4881
    %7001 = vmatprep.subr.bf16.mxu0 %v4880
    %7002 = vmatpush2.bf16.msra.mxu0 %v4879
    %7003 = vmatprep.subr.bf16.mxu0 %v4878
    %7004 = vmatpush2.bf16.msra.mxu0 %v4877
    %7005 = vmatprep.subr.bf16.mxu0 %v4876
    %7006 = vmatpush2.bf16.msra.mxu0 %v4875
    %7007 = vmatprep.subr.bf16.mxu0 %v4874
    %7008 = vmatpush2.bf16.msra.mxu0 %v4873
    %7009 = vmatprep.mubr.bf16.mxu0 %v1208
    %7010 = vmatmul.mubr.bf16.gmra.mxu0 %v1194
    %v7011 = vpop.f32.mrf.mxu0
    %v7012 = vadd.f32 %v6971, %v7011
    %v7013 = vpop.f32.mrf.mxu0
    %v7014 = vadd.f32 %v6973, %v7013
    %v7015 = vpop.f32.mrf.mxu0
    %v7016 = vpop.f32.mrf.mxu0
    %7017 = vdwg.mxu0
    %7018 = vmatprep.subr.bf16.mxu0 %v4904
    %7019 = vmatpush1.bf16.msra.mxu0 %v4903
    %7020 = vmatprep.subr.bf16.mxu0 %v4902
    %7021 = vmatpush1.bf16.msra.mxu0 %v4901
    %7022 = vmatprep.subr.bf16.mxu0 %v4900
    %7023 = vmatpush1.bf16.msra.mxu0 %v4899
    %7024 = vmatprep.subr.bf16.mxu0 %v4898
    %7025 = vmatpush1.bf16.msra.mxu0 %v4897
    %7026 = vmatprep.subr.bf16.mxu0 %v4896
    %7027 = vmatpush1.bf16.msra.mxu0 %v4895
    %7028 = vmatprep.subr.bf16.mxu0 %v4894
    %7029 = vmatpush1.bf16.msra.mxu0 %v4893
    %7030 = vmatprep.subr.bf16.mxu0 %v4892
    %7031 = vmatpush1.bf16.msra.mxu0 %v4891
    %7032 = vmatprep.subr.bf16.mxu0 %v4890
    %7033 = vmatpush1.bf16.msra.mxu0 %v4889
    %7034 = vmatprep.subr.bf16.mxu0 %v4920
    %7035 = vmatpush2.bf16.msra.mxu0 %v4919
    %7036 = vmatprep.subr.bf16.mxu0 %v4918
    %7037 = vmatpush2.bf16.msra.mxu0 %v4917
    %7038 = vmatprep.subr.bf16.mxu0 %v4916
    %7039 = vmatpush2.bf16.msra.mxu0 %v4915
    %7040 = vmatprep.subr.bf16.mxu0 %v4914
    %7041 = vmatpush2.bf16.msra.mxu0 %v4913
    %7042 = vmatprep.subr.bf16.mxu0 %v4912
    %7043 = vmatpush2.bf16.msra.mxu0 %v4911
    %7044 = vmatprep.subr.bf16.mxu0 %v4910
    %7045 = vmatpush2.bf16.msra.mxu0 %v4909
    %7046 = vmatprep.subr.bf16.mxu0 %v4908
    %7047 = vmatpush2.bf16.msra.mxu0 %v4907
    %7048 = vmatprep.subr.bf16.mxu0 %v4906
    %7049 = vmatpush2.bf16.msra.mxu0 %v4905
    %7050 = vmatprep.mubr.bf16.mxu0 %v1218
    %7051 = vmatmul.mubr.bf16.gmra.mxu0 %v1216
    %v7052 = vpop.f32.mrf.mxu0
    %v7053 = vadd.f32 %v7012, %v7052
    %v7054 = vpop.f32.mrf.mxu0
    %v7055 = vadd.f32 %v7014, %v7054
    %v7056 = vpop.f32.mrf.mxu0
    %v7057 = vpop.f32.mrf.mxu0
    %7058 = vdwg.mxu0
    %7059 = vmatprep.subr.bf16.mxu0 %v4936
    %7060 = vmatpush1.bf16.msra.mxu0 %v4935
    %7061 = vmatprep.subr.bf16.mxu0 %v4934
    %7062 = vmatpush1.bf16.msra.mxu0 %v4933
    %7063 = vmatprep.subr.bf16.mxu0 %v4932
    %7064 = vmatpush1.bf16.msra.mxu0 %v4931
    %7065 = vmatprep.subr.bf16.mxu0 %v4930
    %7066 = vmatpush1.bf16.msra.mxu0 %v4929
    %7067 = vmatprep.subr.bf16.mxu0 %v4928
    %7068 = vmatpush1.bf16.msra.mxu0 %v4927
    %7069 = vmatprep.subr.bf16.mxu0 %v4926
    %7070 = vmatpush1.bf16.msra.mxu0 %v4925
    %7071 = vmatprep.subr.bf16.mxu0 %v4924
    %7072 = vmatpush1.bf16.msra.mxu0 %v4923
    %7073 = vmatprep.subr.bf16.mxu0 %v4922
    %7074 = vmatpush1.bf16.msra.mxu0 %v4921
    %7075 = vmatprep.subr.bf16.mxu0 %v4952
    %7076 = vmatpush2.bf16.msra.mxu0 %v4951
    %7077 = vmatprep.subr.bf16.mxu0 %v4950
    %7078 = vmatpush2.bf16.msra.mxu0 %v4949
    %7079 = vmatprep.subr.bf16.mxu0 %v4948
    %7080 = vmatpush2.bf16.msra.mxu0 %v4947
    %7081 = vmatprep.subr.bf16.mxu0 %v4946
    %7082 = vmatpush2.bf16.msra.mxu0 %v4945
    %7083 = vmatprep.subr.bf16.mxu0 %v4944
    %7084 = vmatpush2.bf16.msra.mxu0 %v4943
    %7085 = vmatprep.subr.bf16.mxu0 %v4942
    %7086 = vmatpush2.bf16.msra.mxu0 %v4941
    %7087 = vmatprep.subr.bf16.mxu0 %v4940
    %7088 = vmatpush2.bf16.msra.mxu0 %v4939
    %7089 = vmatprep.subr.bf16.mxu0 %v4938
    %7090 = vmatpush2.bf16.msra.mxu0 %v4937
    %7091 = vmatprep.mubr.bf16.mxu0 %v1215
    %7092 = vmatmul.mubr.bf16.gmra.mxu0 %v1201
    %v7093 = vpop.f32.mrf.mxu0
    %v7094 = vadd.f32 %v7053, %v7093
    %v7095 = vpop.f32.mrf.mxu0
    %v7096 = vadd.f32 %v7055, %v7095
    %v7097 = vpop.f32.mrf.mxu0
    %v7098 = vpop.f32.mrf.mxu0
    %7099 = vdwg.mxu0
    %7100 = vmatprep.subr.bf16.mxu0 %v4968
    %7101 = vmatpush1.bf16.msra.mxu0 %v4967
    %7102 = vmatprep.subr.bf16.mxu0 %v4966
    %7103 = vmatpush1.bf16.msra.mxu0 %v4965
    %7104 = vmatprep.subr.bf16.mxu0 %v4964
    %7105 = vmatpush1.bf16.msra.mxu0 %v4963
    %7106 = vmatprep.subr.bf16.mxu0 %v4962
    %7107 = vmatpush1.bf16.msra.mxu0 %v4961
    %7108 = vmatprep.subr.bf16.mxu0 %v4960
    %7109 = vmatpush1.bf16.msra.mxu0 %v4959
    %7110 = vmatprep.subr.bf16.mxu0 %v4958
    %7111 = vmatpush1.bf16.msra.mxu0 %v4957
    %7112 = vmatprep.subr.bf16.mxu0 %v4956
    %7113 = vmatpush1.bf16.msra.mxu0 %v4955
    %7114 = vmatprep.subr.bf16.mxu0 %v4954
    %7115 = vmatpush1.bf16.msra.mxu0 %v4953
    %7116 = vmatprep.subr.bf16.mxu0 %v4984
    %7117 = vmatpush2.bf16.msra.mxu0 %v4983
    %7118 = vmatprep.subr.bf16.mxu0 %v4982
    %7119 = vmatpush2.bf16.msra.mxu0 %v4981
    %7120 = vmatprep.subr.bf16.mxu0 %v4980
    %7121 = vmatpush2.bf16.msra.mxu0 %v4979
    %7122 = vmatprep.subr.bf16.mxu0 %v4978
    %7123 = vmatpush2.bf16.msra.mxu0 %v4977
    %7124 = vmatprep.subr.bf16.mxu0 %v4976
    %7125 = vmatpush2.bf16.msra.mxu0 %v4975
    %7126 = vmatprep.subr.bf16.mxu0 %v4974
    %7127 = vmatpush2.bf16.msra.mxu0 %v4973
    %7128 = vmatprep.subr.bf16.mxu0 %v4972
    %7129 = vmatpush2.bf16.msra.mxu0 %v4971
    %7130 = vmatprep.subr.bf16.mxu0 %v4970
    %7131 = vmatpush2.bf16.msra.mxu0 %v4969
    %7132 = vmatprep.mubr.bf16.mxu0 %v1219
    %7133 = vmatmul.mubr.bf16.gmra.mxu0 %v1217
    %v7134 = vpop.f32.mrf.mxu0
    %v7135 = vadd.f32 %v7094, %v7134
    %v7136 = vpop.f32.mrf.mxu0
    %v7137 = vadd.f32 %v7096, %v7136
    %v7138 = vpop.f32.mrf.mxu0
    %v7139 = vpop.f32.mrf.mxu0
    %7140 = vdwg.mxu0
    %7141 = vmatprep.subr.bf16.mxu0 %v5000
    %7142 = vmatpush1.bf16.msra.mxu0 %v4999
    %7143 = vmatprep.subr.bf16.mxu0 %v4998
    %7144 = vmatpush1.bf16.msra.mxu0 %v4997
    %7145 = vmatprep.subr.bf16.mxu0 %v4996
    %7146 = vmatpush1.bf16.msra.mxu0 %v4995
    %7147 = vmatprep.subr.bf16.mxu0 %v4994
    %7148 = vmatpush1.bf16.msra.mxu0 %v4993
    %7149 = vmatprep.subr.bf16.mxu0 %v4992
    %7150 = vmatpush1.bf16.msra.mxu0 %v4991
    %7151 = vmatprep.subr.bf16.mxu0 %v4990
    %7152 = vmatpush1.bf16.msra.mxu0 %v4989
    %7153 = vmatprep.subr.bf16.mxu0 %v4988
    %7154 = vmatpush1.bf16.msra.mxu0 %v4987
    %7155 = vmatprep.subr.bf16.mxu0 %v4986
    %7156 = vmatpush1.bf16.msra.mxu0 %v4985
    %7157 = vmatprep.subr.bf16.mxu0 %v5016
    %7158 = vmatpush2.bf16.msra.mxu0 %v5015
    %7159 = vmatprep.subr.bf16.mxu0 %v5014
    %7160 = vmatpush2.bf16.msra.mxu0 %v5013
    %7161 = vmatprep.subr.bf16.mxu0 %v5012
    %7162 = vmatpush2.bf16.msra.mxu0 %v5011
    %7163 = vmatprep.subr.bf16.mxu0 %v5010
    %7164 = vmatpush2.bf16.msra.mxu0 %v5009
    %7165 = vmatprep.subr.bf16.mxu0 %v5008
    %7166 = vmatpush2.bf16.msra.mxu0 %v5007
    %7167 = vmatprep.subr.bf16.mxu0 %v5006
    %7168 = vmatpush2.bf16.msra.mxu0 %v5005
    %7169 = vmatprep.subr.bf16.mxu0 %v5004
    %7170 = vmatpush2.bf16.msra.mxu0 %v5003
    %7171 = vmatprep.subr.bf16.mxu0 %v5002
    %7172 = vmatpush2.bf16.msra.mxu0 %v5001
    %7173 = vmatprep.mubr.bf16.mxu0 %v1257
    %7174 = vmatmul.mubr.bf16.gmra.mxu0 %v1243
    %v7175 = vpop.f32.mrf.mxu0
    %v7176 = vadd.f32 %v7135, %v7175
    %v7177 = vpop.f32.mrf.mxu0
    %v7178 = vadd.f32 %v7137, %v7177
    %v7179 = vpop.f32.mrf.mxu0
    %v7180 = vpop.f32.mrf.mxu0
    %7181 = vdwg.mxu0
    %7182 = vmatprep.subr.bf16.mxu0 %v5032
    %7183 = vmatpush1.bf16.msra.mxu0 %v5031
    %7184 = vmatprep.subr.bf16.mxu0 %v5030
    %7185 = vmatpush1.bf16.msra.mxu0 %v5029
    %7186 = vmatprep.subr.bf16.mxu0 %v5028
    %7187 = vmatpush1.bf16.msra.mxu0 %v5027
    %7188 = vmatprep.subr.bf16.mxu0 %v5026
    %7189 = vmatpush1.bf16.msra.mxu0 %v5025
    %7190 = vmatprep.subr.bf16.mxu0 %v5024
    %7191 = vmatpush1.bf16.msra.mxu0 %v5023
    %7192 = vmatprep.subr.bf16.mxu0 %v5022
    %7193 = vmatpush1.bf16.msra.mxu0 %v5021
    %7194 = vmatprep.subr.bf16.mxu0 %v5020
    %7195 = vmatpush1.bf16.msra.mxu0 %v5019
    %7196 = vmatprep.subr.bf16.mxu0 %v5018
    %7197 = vmatpush1.bf16.msra.mxu0 %v5017
    %7198 = vmatprep.subr.bf16.mxu0 %v5048
    %7199 = vmatpush2.bf16.msra.mxu0 %v5047
    %7200 = vmatprep.subr.bf16.mxu0 %v5046
    %7201 = vmatpush2.bf16.msra.mxu0 %v5045
    %7202 = vmatprep.subr.bf16.mxu0 %v5044
    %7203 = vmatpush2.bf16.msra.mxu0 %v5043
    %7204 = vmatprep.subr.bf16.mxu0 %v5042
    %7205 = vmatpush2.bf16.msra.mxu0 %v5041
    %7206 = vmatprep.subr.bf16.mxu0 %v5040
    %7207 = vmatpush2.bf16.msra.mxu0 %v5039
    %7208 = vmatprep.subr.bf16.mxu0 %v5038
    %7209 = vmatpush2.bf16.msra.mxu0 %v5037
    %7210 = vmatprep.subr.bf16.mxu0 %v5036
    %7211 = vmatpush2.bf16.msra.mxu0 %v5035
    %7212 = vmatprep.subr.bf16.mxu0 %v5034
    %7213 = vmatpush2.bf16.msra.mxu0 %v5033
    %7214 = vmatprep.mubr.bf16.mxu0 %v1267
    %7215 = vmatmul.mubr.bf16.gmra.mxu0 %v1265
    %v7216 = vpop.f32.mrf.mxu0
    %v7217 = vadd.f32 %v7176, %v7216
    %v7218 = vpop.f32.mrf.mxu0
    %v7219 = vadd.f32 %v7178, %v7218
    %v7220 = vpop.f32.mrf.mxu0
    %v7221 = vpop.f32.mrf.mxu0
    %7222 = vdwg.mxu0
    %7223 = vmatprep.subr.bf16.mxu0 %v5064
    %7224 = vmatpush1.bf16.msra.mxu0 %v5063
    %7225 = vmatprep.subr.bf16.mxu0 %v5062
    %7226 = vmatpush1.bf16.msra.mxu0 %v5061
    %7227 = vmatprep.subr.bf16.mxu0 %v5060
    %7228 = vmatpush1.bf16.msra.mxu0 %v5059
    %7229 = vmatprep.subr.bf16.mxu0 %v5058
    %7230 = vmatpush1.bf16.msra.mxu0 %v5057
    %7231 = vmatprep.subr.bf16.mxu0 %v5056
    %7232 = vmatpush1.bf16.msra.mxu0 %v5055
    %7233 = vmatprep.subr.bf16.mxu0 %v5054
    %7234 = vmatpush1.bf16.msra.mxu0 %v5053
    %7235 = vmatprep.subr.bf16.mxu0 %v5052
    %7236 = vmatpush1.bf16.msra.mxu0 %v5051
    %7237 = vmatprep.subr.bf16.mxu0 %v5050
    %7238 = vmatpush1.bf16.msra.mxu0 %v5049
    %7239 = vmatprep.subr.bf16.mxu0 %v5080
    %7240 = vmatpush2.bf16.msra.mxu0 %v5079
    %7241 = vmatprep.subr.bf16.mxu0 %v5078
    %7242 = vmatpush2.bf16.msra.mxu0 %v5077
    %7243 = vmatprep.subr.bf16.mxu0 %v5076
    %7244 = vmatpush2.bf16.msra.mxu0 %v5075
    %7245 = vmatprep.subr.bf16.mxu0 %v5074
    %7246 = vmatpush2.bf16.msra.mxu0 %v5073
    %7247 = vmatprep.subr.bf16.mxu0 %v5072
    %7248 = vmatpush2.bf16.msra.mxu0 %v5071
    %7249 = vmatprep.subr.bf16.mxu0 %v5070
    %7250 = vmatpush2.bf16.msra.mxu0 %v5069
    %7251 = vmatprep.subr.bf16.mxu0 %v5068
    %7252 = vmatpush2.bf16.msra.mxu0 %v5067
    %7253 = vmatprep.subr.bf16.mxu0 %v5066
    %7254 = vmatpush2.bf16.msra.mxu0 %v5065
    %7255 = vmatprep.mubr.bf16.mxu0 %v1264
    %7256 = vmatmul.mubr.bf16.gmra.mxu0 %v1250
    %v7257 = vpop.f32.mrf.mxu0
    %v7258 = vadd.f32 %v7217, %v7257
    %v7259 = vpop.f32.mrf.mxu0
    %v7260 = vadd.f32 %v7219, %v7259
    %v7261 = vpop.f32.mrf.mxu0
    %v7262 = vpop.f32.mrf.mxu0
    %7263 = vdwg.mxu0
    %7264 = vmatprep.subr.bf16.mxu0 %v5096
    %7265 = vmatpush1.bf16.msra.mxu0 %v5095
    %7266 = vmatprep.subr.bf16.mxu0 %v5094
    %7267 = vmatpush1.bf16.msra.mxu0 %v5093
    %7268 = vmatprep.subr.bf16.mxu0 %v5092
    %7269 = vmatpush1.bf16.msra.mxu0 %v5091
    %7270 = vmatprep.subr.bf16.mxu0 %v5090
    %7271 = vmatpush1.bf16.msra.mxu0 %v5089
    %7272 = vmatprep.subr.bf16.mxu0 %v5088
    %7273 = vmatpush1.bf16.msra.mxu0 %v5087
    %7274 = vmatprep.subr.bf16.mxu0 %v5086
    %7275 = vmatpush1.bf16.msra.mxu0 %v5085
    %7276 = vmatprep.subr.bf16.mxu0 %v5084
    %7277 = vmatpush1.bf16.msra.mxu0 %v5083
    %7278 = vmatprep.subr.bf16.mxu0 %v5082
    %7279 = vmatpush1.bf16.msra.mxu0 %v5081
    %7280 = vmatprep.subr.bf16.mxu0 %v5112
    %7281 = vmatpush2.bf16.msra.mxu0 %v5111
    %7282 = vmatprep.subr.bf16.mxu0 %v5110
    %7283 = vmatpush2.bf16.msra.mxu0 %v5109
    %7284 = vmatprep.subr.bf16.mxu0 %v5108
    %7285 = vmatpush2.bf16.msra.mxu0 %v5107
    %7286 = vmatprep.subr.bf16.mxu0 %v5106
    %7287 = vmatpush2.bf16.msra.mxu0 %v5105
    %7288 = vmatprep.subr.bf16.mxu0 %v5104
    %7289 = vmatpush2.bf16.msra.mxu0 %v5103
    %7290 = vmatprep.subr.bf16.mxu0 %v5102
    %7291 = vmatpush2.bf16.msra.mxu0 %v5101
    %7292 = vmatprep.subr.bf16.mxu0 %v5100
    %7293 = vmatpush2.bf16.msra.mxu0 %v5099
    %7294 = vmatprep.subr.bf16.mxu0 %v5098
    %7295 = vmatpush2.bf16.msra.mxu0 %v5097
    %7296 = vmatprep.mubr.bf16.mxu0 %v1268
    %7297 = vmatmul.mubr.bf16.gmra.mxu0 %v1266
    %v7298 = vpop.f32.mrf.mxu0
    %v7299 = vadd.f32 %v7258, %v7298
    %v7300 = vpop.f32.mrf.mxu0
    %v7301 = vadd.f32 %v7260, %v7300
    %v7302 = vpop.f32.mrf.mxu0
    %v7303 = vpop.f32.mrf.mxu0
    %7304 = vdwg.mxu0
    %7305 = vmatprep.subr.bf16.mxu0 %v5128
    %7306 = vmatpush1.bf16.msra.mxu0 %v5127
    %7307 = vmatprep.subr.bf16.mxu0 %v5126
    %7308 = vmatpush1.bf16.msra.mxu0 %v5125
    %7309 = vmatprep.subr.bf16.mxu0 %v5124
    %7310 = vmatpush1.bf16.msra.mxu0 %v5123
    %7311 = vmatprep.subr.bf16.mxu0 %v5122
    %7312 = vmatpush1.bf16.msra.mxu0 %v5121
    %7313 = vmatprep.subr.bf16.mxu0 %v5120
    %7314 = vmatpush1.bf16.msra.mxu0 %v5119
    %7315 = vmatprep.subr.bf16.mxu0 %v5118
    %7316 = vmatpush1.bf16.msra.mxu0 %v5117
    %7317 = vmatprep.subr.bf16.mxu0 %v5116
    %7318 = vmatpush1.bf16.msra.mxu0 %v5115
    %7319 = vmatprep.subr.bf16.mxu0 %v5114
    %7320 = vmatpush1.bf16.msra.mxu0 %v5113
    %7321 = vmatprep.subr.bf16.mxu0 %v5144
    %7322 = vmatpush2.bf16.msra.mxu0 %v5143
    %7323 = vmatprep.subr.bf16.mxu0 %v5142
    %7324 = vmatpush2.bf16.msra.mxu0 %v5141
    %7325 = vmatprep.subr.bf16.mxu0 %v5140
    %7326 = vmatpush2.bf16.msra.mxu0 %v5139
    %7327 = vmatprep.subr.bf16.mxu0 %v5138
    %7328 = vmatpush2.bf16.msra.mxu0 %v5137
    %7329 = vmatprep.subr.bf16.mxu0 %v5136
    %7330 = vmatpush2.bf16.msra.mxu0 %v5135
    %7331 = vmatprep.subr.bf16.mxu0 %v5134
    %7332 = vmatpush2.bf16.msra.mxu0 %v5133
    %7333 = vmatprep.subr.bf16.mxu0 %v5132
    %7334 = vmatpush2.bf16.msra.mxu0 %v5131
    %7335 = vmatprep.subr.bf16.mxu0 %v5130
    %7336 = vmatpush2.bf16.msra.mxu0 %v5129
    %7337 = vmatprep.mubr.bf16.mxu0 %v1306
    %7338 = vmatmul.mubr.bf16.gmra.mxu0 %v1292
    %v7339 = vpop.f32.mrf.mxu0
    %v7340 = vadd.f32 %v7299, %v7339
    %v7341 = vpop.f32.mrf.mxu0
    %v7342 = vadd.f32 %v7301, %v7341
    %v7343 = vpop.f32.mrf.mxu0
    %v7344 = vpop.f32.mrf.mxu0
    %7345 = vdwg.mxu0
    %7346 = vmatprep.subr.bf16.mxu0 %v5160
    %7347 = vmatpush1.bf16.msra.mxu0 %v5159
    %7348 = vmatprep.subr.bf16.mxu0 %v5158
    %7349 = vmatpush1.bf16.msra.mxu0 %v5157
    %7350 = vmatprep.subr.bf16.mxu0 %v5156
    %7351 = vmatpush1.bf16.msra.mxu0 %v5155
    %7352 = vmatprep.subr.bf16.mxu0 %v5154
    %7353 = vmatpush1.bf16.msra.mxu0 %v5153
    %7354 = vmatprep.subr.bf16.mxu0 %v5152
    %7355 = vmatpush1.bf16.msra.mxu0 %v5151
    %7356 = vmatprep.subr.bf16.mxu0 %v5150
    %7357 = vmatpush1.bf16.msra.mxu0 %v5149
    %7358 = vmatprep.subr.bf16.mxu0 %v5148
    %7359 = vmatpush1.bf16.msra.mxu0 %v5147
    %7360 = vmatprep.subr.bf16.mxu0 %v5146
    %7361 = vmatpush1.bf16.msra.mxu0 %v5145
    %7362 = vmatprep.subr.bf16.mxu0 %v5176
    %7363 = vmatpush2.bf16.msra.mxu0 %v5175
    %7364 = vmatprep.subr.bf16.mxu0 %v5174
    %7365 = vmatpush2.bf16.msra.mxu0 %v5173
    %7366 = vmatprep.subr.bf16.mxu0 %v5172
    %7367 = vmatpush2.bf16.msra.mxu0 %v5171
    %7368 = vmatprep.subr.bf16.mxu0 %v5170
    %7369 = vmatpush2.bf16.msra.mxu0 %v5169
    %7370 = vmatprep.subr.bf16.mxu0 %v5168
    %7371 = vmatpush2.bf16.msra.mxu0 %v5167
    %7372 = vmatprep.subr.bf16.mxu0 %v5166
    %7373 = vmatpush2.bf16.msra.mxu0 %v5165
    %7374 = vmatprep.subr.bf16.mxu0 %v5164
    %7375 = vmatpush2.bf16.msra.mxu0 %v5163
    %7376 = vmatprep.subr.bf16.mxu0 %v5162
    %7377 = vmatpush2.bf16.msra.mxu0 %v5161
    %7378 = vmatprep.mubr.bf16.mxu0 %v1316
    %7379 = vmatmul.mubr.bf16.gmra.mxu0 %v1314
    %v7380 = vpop.f32.mrf.mxu0
    %v7381 = vadd.f32 %v7340, %v7380
    %v7382 = vpop.f32.mrf.mxu0
    %v7383 = vadd.f32 %v7342, %v7382
    %v7384 = vpop.f32.mrf.mxu0
    %v7385 = vpop.f32.mrf.mxu0
    %7386 = vdwg.mxu0
    %7387 = vmatprep.subr.bf16.mxu0 %v5192
    %7388 = vmatpush1.bf16.msra.mxu0 %v5191
    %7389 = vmatprep.subr.bf16.mxu0 %v5190
    %7390 = vmatpush1.bf16.msra.mxu0 %v5189
    %7391 = vmatprep.subr.bf16.mxu0 %v5188
    %7392 = vmatpush1.bf16.msra.mxu0 %v5187
    %7393 = vmatprep.subr.bf16.mxu0 %v5186
    %7394 = vmatpush1.bf16.msra.mxu0 %v5185
    %7395 = vmatprep.subr.bf16.mxu0 %v5184
    %7396 = vmatpush1.bf16.msra.mxu0 %v5183
    %7397 = vmatprep.subr.bf16.mxu0 %v5182
    %7398 = vmatpush1.bf16.msra.mxu0 %v5181
    %7399 = vmatprep.subr.bf16.mxu0 %v5180
    %7400 = vmatpush1.bf16.msra.mxu0 %v5179
    %7401 = vmatprep.subr.bf16.mxu0 %v5178
    %7402 = vmatpush1.bf16.msra.mxu0 %v5177
    %7403 = vmatprep.subr.bf16.mxu0 %v5208
    %7404 = vmatpush2.bf16.msra.mxu0 %v5207
    %7405 = vmatprep.subr.bf16.mxu0 %v5206
    %7406 = vmatpush2.bf16.msra.mxu0 %v5205
    %7407 = vmatprep.subr.bf16.mxu0 %v5204
    %7408 = vmatpush2.bf16.msra.mxu0 %v5203
    %7409 = vmatprep.subr.bf16.mxu0 %v5202
    %7410 = vmatpush2.bf16.msra.mxu0 %v5201
    %7411 = vmatprep.subr.bf16.mxu0 %v5200
    %7412 = vmatpush2.bf16.msra.mxu0 %v5199
    %7413 = vmatprep.subr.bf16.mxu0 %v5198
    %7414 = vmatpush2.bf16.msra.mxu0 %v5197
    %7415 = vmatprep.subr.bf16.mxu0 %v5196
    %7416 = vmatpush2.bf16.msra.mxu0 %v5195
    %7417 = vmatprep.subr.bf16.mxu0 %v5194
    %7418 = vmatpush2.bf16.msra.mxu0 %v5193
    %7419 = vmatprep.mubr.bf16.mxu0 %v1313
    %7420 = vmatmul.mubr.bf16.gmra.mxu0 %v1299
    %v7421 = vpop.f32.mrf.mxu0
    %v7422 = vadd.f32 %v7381, %v7421
    %v7423 = vpop.f32.mrf.mxu0
    %v7424 = vadd.f32 %v7383, %v7423
    %v7425 = vpop.f32.mrf.mxu0
    %v7426 = vpop.f32.mrf.mxu0
    %7427 = vdwg.mxu0
    %7428 = vmatprep.subr.bf16.mxu0 %v5224
    %7429 = vmatpush1.bf16.msra.mxu0 %v5223
    %7430 = vmatprep.subr.bf16.mxu0 %v5222
    %7431 = vmatpush1.bf16.msra.mxu0 %v5221
    %7432 = vmatprep.subr.bf16.mxu0 %v5220
    %7433 = vmatpush1.bf16.msra.mxu0 %v5219
    %7434 = vmatprep.subr.bf16.mxu0 %v5218
    %7435 = vmatpush1.bf16.msra.mxu0 %v5217
    %7436 = vmatprep.subr.bf16.mxu0 %v5216
    %7437 = vmatpush1.bf16.msra.mxu0 %v5215
    %7438 = vmatprep.subr.bf16.mxu0 %v5214
    %7439 = vmatpush1.bf16.msra.mxu0 %v5213
    %7440 = vmatprep.subr.bf16.mxu0 %v5212
    %7441 = vmatpush1.bf16.msra.mxu0 %v5211
    %7442 = vmatprep.subr.bf16.mxu0 %v5210
    %7443 = vmatpush1.bf16.msra.mxu0 %v5209
    %7444 = vmatprep.subr.bf16.mxu0 %v5240
    %7445 = vmatpush2.bf16.msra.mxu0 %v5239
    %7446 = vmatprep.subr.bf16.mxu0 %v5238
    %7447 = vmatpush2.bf16.msra.mxu0 %v5237
    %7448 = vmatprep.subr.bf16.mxu0 %v5236
    %7449 = vmatpush2.bf16.msra.mxu0 %v5235
    %7450 = vmatprep.subr.bf16.mxu0 %v5234
    %7451 = vmatpush2.bf16.msra.mxu0 %v5233
    %7452 = vmatprep.subr.bf16.mxu0 %v5232
    %7453 = vmatpush2.bf16.msra.mxu0 %v5231
    %7454 = vmatprep.subr.bf16.mxu0 %v5230
    %7455 = vmatpush2.bf16.msra.mxu0 %v5229
    %7456 = vmatprep.subr.bf16.mxu0 %v5228
    %7457 = vmatpush2.bf16.msra.mxu0 %v5227
    %7458 = vmatprep.subr.bf16.mxu0 %v5226
    %7459 = vmatpush2.bf16.msra.mxu0 %v5225
    %7460 = vmatprep.mubr.bf16.mxu0 %v1317
    %7461 = vmatmul.mubr.bf16.gmra.mxu0 %v1315
    %v7462 = vpop.f32.mrf.mxu0
    %v7463 = vadd.f32 %v7422, %v7462
    %v7464 = vpop.f32.mrf.mxu0
    %v7465 = vadd.f32 %v7424, %v7464
    %v7466 = vpop.f32.mrf.mxu0
    %v7467 = vpop.f32.mrf.mxu0
    %7468 = vdwg.mxu0
    %7469 = vmatprep.subr.bf16.mxu0 %v5256
    %7470 = vmatpush1.bf16.msra.mxu0 %v5255
    %7471 = vmatprep.subr.bf16.mxu0 %v5254
    %7472 = vmatpush1.bf16.msra.mxu0 %v5253
    %7473 = vmatprep.subr.bf16.mxu0 %v5252
    %7474 = vmatpush1.bf16.msra.mxu0 %v5251
    %7475 = vmatprep.subr.bf16.mxu0 %v5250
    %7476 = vmatpush1.bf16.msra.mxu0 %v5249
    %7477 = vmatprep.subr.bf16.mxu0 %v5248
    %7478 = vmatpush1.bf16.msra.mxu0 %v5247
    %7479 = vmatprep.subr.bf16.mxu0 %v5246
    %7480 = vmatpush1.bf16.msra.mxu0 %v5245
    %7481 = vmatprep.subr.bf16.mxu0 %v5244
    %7482 = vmatpush1.bf16.msra.mxu0 %v5243
    %7483 = vmatprep.subr.bf16.mxu0 %v5242
    %7484 = vmatpush1.bf16.msra.mxu0 %v5241
    %7485 = vmatprep.subr.bf16.mxu0 %v5272
    %7486 = vmatpush2.bf16.msra.mxu0 %v5271
    %7487 = vmatprep.subr.bf16.mxu0 %v5270
    %7488 = vmatpush2.bf16.msra.mxu0 %v5269
    %7489 = vmatprep.subr.bf16.mxu0 %v5268
    %7490 = vmatpush2.bf16.msra.mxu0 %v5267
    %7491 = vmatprep.subr.bf16.mxu0 %v5266
    %7492 = vmatpush2.bf16.msra.mxu0 %v5265
    %7493 = vmatprep.subr.bf16.mxu0 %v5264
    %7494 = vmatpush2.bf16.msra.mxu0 %v5263
    %7495 = vmatprep.subr.bf16.mxu0 %v5262
    %7496 = vmatpush2.bf16.msra.mxu0 %v5261
    %7497 = vmatprep.subr.bf16.mxu0 %v5260
    %7498 = vmatpush2.bf16.msra.mxu0 %v5259
    %7499 = vmatprep.subr.bf16.mxu0 %v5258
    %7500 = vmatpush2.bf16.msra.mxu0 %v5257
    %7501 = vmatprep.mubr.bf16.mxu0 %v1355
    %7502 = vmatmul.mubr.bf16.gmra.mxu0 %v1341
    %v7503 = vpop.f32.mrf.mxu0
    %v7504 = vadd.f32 %v7463, %v7503
    %v7505 = vpop.f32.mrf.mxu0
    %v7506 = vadd.f32 %v7465, %v7505
    %v7507 = vpop.f32.mrf.mxu0
    %v7508 = vpop.f32.mrf.mxu0
    %7509 = vdwg.mxu0
    %7510 = vmatprep.subr.bf16.mxu0 %v5288
    %7511 = vmatpush1.bf16.msra.mxu0 %v5287
    %7512 = vmatprep.subr.bf16.mxu0 %v5286
    %7513 = vmatpush1.bf16.msra.mxu0 %v5285
    %7514 = vmatprep.subr.bf16.mxu0 %v5284
    %7515 = vmatpush1.bf16.msra.mxu0 %v5283
    %7516 = vmatprep.subr.bf16.mxu0 %v5282
    %7517 = vmatpush1.bf16.msra.mxu0 %v5281
    %7518 = vmatprep.subr.bf16.mxu0 %v5280
    %7519 = vmatpush1.bf16.msra.mxu0 %v5279
    %7520 = vmatprep.subr.bf16.mxu0 %v5278
    %7521 = vmatpush1.bf16.msra.mxu0 %v5277
    %7522 = vmatprep.subr.bf16.mxu0 %v5276
    %7523 = vmatpush1.bf16.msra.mxu0 %v5275
    %7524 = vmatprep.subr.bf16.mxu0 %v5274
    %7525 = vmatpush1.bf16.msra.mxu0 %v5273
    %7526 = vmatprep.subr.bf16.mxu0 %v5304
    %7527 = vmatpush2.bf16.msra.mxu0 %v5303
    %7528 = vmatprep.subr.bf16.mxu0 %v5302
    %7529 = vmatpush2.bf16.msra.mxu0 %v5301
    %7530 = vmatprep.subr.bf16.mxu0 %v5300
    %7531 = vmatpush2.bf16.msra.mxu0 %v5299
    %7532 = vmatprep.subr.bf16.mxu0 %v5298
    %7533 = vmatpush2.bf16.msra.mxu0 %v5297
    %7534 = vmatprep.subr.bf16.mxu0 %v5296
    %7535 = vmatpush2.bf16.msra.mxu0 %v5295
    %7536 = vmatprep.subr.bf16.mxu0 %v5294
    %7537 = vmatpush2.bf16.msra.mxu0 %v5293
    %7538 = vmatprep.subr.bf16.mxu0 %v5292
    %7539 = vmatpush2.bf16.msra.mxu0 %v5291
    %7540 = vmatprep.subr.bf16.mxu0 %v5290
    %7541 = vmatpush2.bf16.msra.mxu0 %v5289
    %7542 = vmatprep.mubr.bf16.mxu0 %v1365
    %7543 = vmatmul.mubr.bf16.gmra.mxu0 %v1363
    %v7544 = vpop.f32.mrf.mxu0
    %v7545 = vadd.f32 %v7504, %v7544
    %v7546 = vpop.f32.mrf.mxu0
    %v7547 = vadd.f32 %v7506, %v7546
    %v7548 = vpop.f32.mrf.mxu0
    %v7549 = vpop.f32.mrf.mxu0
    %7550 = vdwg.mxu0
    %7551 = vmatprep.subr.bf16.mxu0 %v5320
    %7552 = vmatpush1.bf16.msra.mxu0 %v5319
    %7553 = vmatprep.subr.bf16.mxu0 %v5318
    %7554 = vmatpush1.bf16.msra.mxu0 %v5317
    %7555 = vmatprep.subr.bf16.mxu0 %v5316
    %7556 = vmatpush1.bf16.msra.mxu0 %v5315
    %7557 = vmatprep.subr.bf16.mxu0 %v5314
    %7558 = vmatpush1.bf16.msra.mxu0 %v5313
    %7559 = vmatprep.subr.bf16.mxu0 %v5312
    %7560 = vmatpush1.bf16.msra.mxu0 %v5311
    %7561 = vmatprep.subr.bf16.mxu0 %v5310
    %7562 = vmatpush1.bf16.msra.mxu0 %v5309
    %7563 = vmatprep.subr.bf16.mxu0 %v5308
    %7564 = vmatpush1.bf16.msra.mxu0 %v5307
    %7565 = vmatprep.subr.bf16.mxu0 %v5306
    %7566 = vmatpush1.bf16.msra.mxu0 %v5305
    %7567 = vmatprep.subr.bf16.mxu0 %v5336
    %7568 = vmatpush2.bf16.msra.mxu0 %v5335
    %7569 = vmatprep.subr.bf16.mxu0 %v5334
    %7570 = vmatpush2.bf16.msra.mxu0 %v5333
    %7571 = vmatprep.subr.bf16.mxu0 %v5332
    %7572 = vmatpush2.bf16.msra.mxu0 %v5331
    %7573 = vmatprep.subr.bf16.mxu0 %v5330
    %7574 = vmatpush2.bf16.msra.mxu0 %v5329
    %7575 = vmatprep.subr.bf16.mxu0 %v5328
    %7576 = vmatpush2.bf16.msra.mxu0 %v5327
    %7577 = vmatprep.subr.bf16.mxu0 %v5326
    %7578 = vmatpush2.bf16.msra.mxu0 %v5325
    %7579 = vmatprep.subr.bf16.mxu0 %v5324
    %7580 = vmatpush2.bf16.msra.mxu0 %v5323
    %7581 = vmatprep.subr.bf16.mxu0 %v5322
    %7582 = vmatpush2.bf16.msra.mxu0 %v5321
    %7583 = vmatprep.mubr.bf16.mxu0 %v1362
    %7584 = vmatmul.mubr.bf16.gmra.mxu0 %v1348
    %v7585 = vpop.f32.mrf.mxu0
    %v7586 = vadd.f32 %v7545, %v7585
    %v7587 = vpop.f32.mrf.mxu0
    %v7588 = vadd.f32 %v7547, %v7587
    %v7589 = vpop.f32.mrf.mxu0
    %v7590 = vpop.f32.mrf.mxu0
    %7591 = vdwg.mxu0
    %7592 = vmatprep.subr.bf16.mxu0 %v5352
    %7593 = vmatpush1.bf16.msra.mxu0 %v5351
    %7594 = vmatprep.subr.bf16.mxu0 %v5350
    %7595 = vmatpush1.bf16.msra.mxu0 %v5349
    %7596 = vmatprep.subr.bf16.mxu0 %v5348
    %7597 = vmatpush1.bf16.msra.mxu0 %v5347
    %7598 = vmatprep.subr.bf16.mxu0 %v5346
    %7599 = vmatpush1.bf16.msra.mxu0 %v5345
    %7600 = vmatprep.subr.bf16.mxu0 %v5344
    %7601 = vmatpush1.bf16.msra.mxu0 %v5343
    %7602 = vmatprep.subr.bf16.mxu0 %v5342
    %7603 = vmatpush1.bf16.msra.mxu0 %v5341
    %7604 = vmatprep.subr.bf16.mxu0 %v5340
    %7605 = vmatpush1.bf16.msra.mxu0 %v5339
    %7606 = vmatprep.subr.bf16.mxu0 %v5338
    %7607 = vmatpush1.bf16.msra.mxu0 %v5337
    %7608 = vmatprep.subr.bf16.mxu0 %v5368
    %7609 = vmatpush2.bf16.msra.mxu0 %v5367
    %7610 = vmatprep.subr.bf16.mxu0 %v5366
    %7611 = vmatpush2.bf16.msra.mxu0 %v5365
    %7612 = vmatprep.subr.bf16.mxu0 %v5364
    %7613 = vmatpush2.bf16.msra.mxu0 %v5363
    %7614 = vmatprep.subr.bf16.mxu0 %v5362
    %7615 = vmatpush2.bf16.msra.mxu0 %v5361
    %7616 = vmatprep.subr.bf16.mxu0 %v5360
    %7617 = vmatpush2.bf16.msra.mxu0 %v5359
    %7618 = vmatprep.subr.bf16.mxu0 %v5358
    %7619 = vmatpush2.bf16.msra.mxu0 %v5357
    %7620 = vmatprep.subr.bf16.mxu0 %v5356
    %7621 = vmatpush2.bf16.msra.mxu0 %v5355
    %7622 = vmatprep.subr.bf16.mxu0 %v5354
    %7623 = vmatpush2.bf16.msra.mxu0 %v5353
    %7624 = vmatprep.mubr.bf16.mxu0 %v1366
    %7625 = vmatmul.mubr.bf16.gmra.mxu0 %v1364
    %v7626 = vpop.f32.mrf.mxu0
    %v7627 = vadd.f32 %v7586, %v7626
    %v7628 = vpop.f32.mrf.mxu0
    %v7629 = vadd.f32 %v7588, %v7628
    %v7630 = vpop.f32.mrf.mxu0
    %v7631 = vpop.f32.mrf.mxu0
    %7632 = vdwg.mxu0
    %7633 = vmatprep.subr.bf16.mxu0 %v5384
    %7634 = vmatpush1.bf16.msra.mxu0 %v5383
    %7635 = vmatprep.subr.bf16.mxu0 %v5382
    %7636 = vmatpush1.bf16.msra.mxu0 %v5381
    %7637 = vmatprep.subr.bf16.mxu0 %v5380
    %7638 = vmatpush1.bf16.msra.mxu0 %v5379
    %7639 = vmatprep.subr.bf16.mxu0 %v5378
    %7640 = vmatpush1.bf16.msra.mxu0 %v5377
    %7641 = vmatprep.subr.bf16.mxu0 %v5376
    %7642 = vmatpush1.bf16.msra.mxu0 %v5375
    %7643 = vmatprep.subr.bf16.mxu0 %v5374
    %7644 = vmatpush1.bf16.msra.mxu0 %v5373
    %7645 = vmatprep.subr.bf16.mxu0 %v5372
    %7646 = vmatpush1.bf16.msra.mxu0 %v5371
    %7647 = vmatprep.subr.bf16.mxu0 %v5370
    %7648 = vmatpush1.bf16.msra.mxu0 %v5369
    %7649 = vmatprep.subr.bf16.mxu0 %v5400
    %7650 = vmatpush2.bf16.msra.mxu0 %v5399
    %7651 = vmatprep.subr.bf16.mxu0 %v5398
    %7652 = vmatpush2.bf16.msra.mxu0 %v5397
    %7653 = vmatprep.subr.bf16.mxu0 %v5396
    %7654 = vmatpush2.bf16.msra.mxu0 %v5395
    %7655 = vmatprep.subr.bf16.mxu0 %v5394
    %7656 = vmatpush2.bf16.msra.mxu0 %v5393
    %7657 = vmatprep.subr.bf16.mxu0 %v5392
    %7658 = vmatpush2.bf16.msra.mxu0 %v5391
    %7659 = vmatprep.subr.bf16.mxu0 %v5390
    %7660 = vmatpush2.bf16.msra.mxu0 %v5389
    %7661 = vmatprep.subr.bf16.mxu0 %v5388
    %7662 = vmatpush2.bf16.msra.mxu0 %v5387
    %7663 = vmatprep.subr.bf16.mxu0 %v5386
    %7664 = vmatpush2.bf16.msra.mxu0 %v5385
    %7665 = vmatprep.mubr.bf16.mxu0 %v1404
    %7666 = vmatmul.mubr.bf16.gmra.mxu0 %v1390
    %v7667 = vpop.f32.mrf.mxu0
    %v7668 = vadd.f32 %v7627, %v7667
    %v7669 = vpop.f32.mrf.mxu0
    %v7670 = vadd.f32 %v7629, %v7669
    %v7671 = vpop.f32.mrf.mxu0
    %v7672 = vpop.f32.mrf.mxu0
    %7673 = vdwg.mxu0
    %7674 = vmatprep.subr.bf16.mxu0 %v5416
    %7675 = vmatpush1.bf16.msra.mxu0 %v5415
    %7676 = vmatprep.subr.bf16.mxu0 %v5414
    %7677 = vmatpush1.bf16.msra.mxu0 %v5413
    %7678 = vmatprep.subr.bf16.mxu0 %v5412
    %7679 = vmatpush1.bf16.msra.mxu0 %v5411
    %7680 = vmatprep.subr.bf16.mxu0 %v5410
    %7681 = vmatpush1.bf16.msra.mxu0 %v5409
    %7682 = vmatprep.subr.bf16.mxu0 %v5408
    %7683 = vmatpush1.bf16.msra.mxu0 %v5407
    %7684 = vmatprep.subr.bf16.mxu0 %v5406
    %7685 = vmatpush1.bf16.msra.mxu0 %v5405
    %7686 = vmatprep.subr.bf16.mxu0 %v5404
    %7687 = vmatpush1.bf16.msra.mxu0 %v5403
    %7688 = vmatprep.subr.bf16.mxu0 %v5402
    %7689 = vmatpush1.bf16.msra.mxu0 %v5401
    %7690 = vmatprep.subr.bf16.mxu0 %v5432
    %7691 = vmatpush2.bf16.msra.mxu0 %v5431
    %7692 = vmatprep.subr.bf16.mxu0 %v5430
    %7693 = vmatpush2.bf16.msra.mxu0 %v5429
    %7694 = vmatprep.subr.bf16.mxu0 %v5428
    %7695 = vmatpush2.bf16.msra.mxu0 %v5427
    %7696 = vmatprep.subr.bf16.mxu0 %v5426
    %7697 = vmatpush2.bf16.msra.mxu0 %v5425
    %7698 = vmatprep.subr.bf16.mxu0 %v5424
    %7699 = vmatpush2.bf16.msra.mxu0 %v5423
    %7700 = vmatprep.subr.bf16.mxu0 %v5422
    %7701 = vmatpush2.bf16.msra.mxu0 %v5421
    %7702 = vmatprep.subr.bf16.mxu0 %v5420
    %7703 = vmatpush2.bf16.msra.mxu0 %v5419
    %7704 = vmatprep.subr.bf16.mxu0 %v5418
    %7705 = vmatpush2.bf16.msra.mxu0 %v5417
    %7706 = vmatprep.mubr.bf16.mxu0 %v1414
    %7707 = vmatmul.mubr.bf16.gmra.mxu0 %v1412
    %v7708 = vpop.f32.mrf.mxu0
    %v7709 = vadd.f32 %v7668, %v7708
    %v7710 = vpop.f32.mrf.mxu0
    %v7711 = vadd.f32 %v7670, %v7710
    %v7712 = vpop.f32.mrf.mxu0
    %v7713 = vpop.f32.mrf.mxu0
    %7714 = vdwg.mxu0
    %7715 = vmatprep.subr.bf16.mxu0 %v5448
    %7716 = vmatpush1.bf16.msra.mxu0 %v5447
    %7717 = vmatprep.subr.bf16.mxu0 %v5446
    %7718 = vmatpush1.bf16.msra.mxu0 %v5445
    %7719 = vmatprep.subr.bf16.mxu0 %v5444
    %7720 = vmatpush1.bf16.msra.mxu0 %v5443
    %7721 = vmatprep.subr.bf16.mxu0 %v5442
    %7722 = vmatpush1.bf16.msra.mxu0 %v5441
    %7723 = vmatprep.subr.bf16.mxu0 %v5440
    %7724 = vmatpush1.bf16.msra.mxu0 %v5439
    %7725 = vmatprep.subr.bf16.mxu0 %v5438
    %7726 = vmatpush1.bf16.msra.mxu0 %v5437
    %7727 = vmatprep.subr.bf16.mxu0 %v5436
    %7728 = vmatpush1.bf16.msra.mxu0 %v5435
    %7729 = vmatprep.subr.bf16.mxu0 %v5434
    %7730 = vmatpush1.bf16.msra.mxu0 %v5433
    %7731 = vmatprep.subr.bf16.mxu0 %v5464
    %7732 = vmatpush2.bf16.msra.mxu0 %v5463
    %7733 = vmatprep.subr.bf16.mxu0 %v5462
    %7734 = vmatpush2.bf16.msra.mxu0 %v5461
    %7735 = vmatprep.subr.bf16.mxu0 %v5460
    %7736 = vmatpush2.bf16.msra.mxu0 %v5459
    %7737 = vmatprep.subr.bf16.mxu0 %v5458
    %7738 = vmatpush2.bf16.msra.mxu0 %v5457
    %7739 = vmatprep.subr.bf16.mxu0 %v5456
    %7740 = vmatpush2.bf16.msra.mxu0 %v5455
    %7741 = vmatprep.subr.bf16.mxu0 %v5454
    %7742 = vmatpush2.bf16.msra.mxu0 %v5453
    %7743 = vmatprep.subr.bf16.mxu0 %v5452
    %7744 = vmatpush2.bf16.msra.mxu0 %v5451
    %7745 = vmatprep.subr.bf16.mxu0 %v5450
    %7746 = vmatpush2.bf16.msra.mxu0 %v5449
    %7747 = vmatprep.mubr.bf16.mxu0 %v1411
    %7748 = vmatmul.mubr.bf16.gmra.mxu0 %v1397
    %v7749 = vpop.f32.mrf.mxu0
    %v7750 = vadd.f32 %v7709, %v7749
    %v7751 = vpop.f32.mrf.mxu0
    %v7752 = vadd.f32 %v7711, %v7751
    %v7753 = vpop.f32.mrf.mxu0
    %v7754 = vpop.f32.mrf.mxu0
    %7755 = vdwg.mxu0
    %7756 = vmatprep.subr.bf16.mxu0 %v5480
    %7757 = vmatpush1.bf16.msra.mxu0 %v5479
    %7758 = vmatprep.subr.bf16.mxu0 %v5478
    %7759 = vmatpush1.bf16.msra.mxu0 %v5477
    %7760 = vmatprep.subr.bf16.mxu0 %v5476
    %7761 = vmatpush1.bf16.msra.mxu0 %v5475
    %7762 = vmatprep.subr.bf16.mxu0 %v5474
    %7763 = vmatpush1.bf16.msra.mxu0 %v5473
    %7764 = vmatprep.subr.bf16.mxu0 %v5472
    %7765 = vmatpush1.bf16.msra.mxu0 %v5471
    %7766 = vmatprep.subr.bf16.mxu0 %v5470
    %7767 = vmatpush1.bf16.msra.mxu0 %v5469
    %7768 = vmatprep.subr.bf16.mxu0 %v5468
    %7769 = vmatpush1.bf16.msra.mxu0 %v5467
    %7770 = vmatprep.subr.bf16.mxu0 %v5466
    %7771 = vmatpush1.bf16.msra.mxu0 %v5465
    %7772 = vmatprep.subr.bf16.mxu0 %v5496
    %7773 = vmatpush2.bf16.msra.mxu0 %v5495
    %7774 = vmatprep.subr.bf16.mxu0 %v5494
    %7775 = vmatpush2.bf16.msra.mxu0 %v5493
    %7776 = vmatprep.subr.bf16.mxu0 %v5492
    %7777 = vmatpush2.bf16.msra.mxu0 %v5491
    %7778 = vmatprep.subr.bf16.mxu0 %v5490
    %7779 = vmatpush2.bf16.msra.mxu0 %v5489
    %7780 = vmatprep.subr.bf16.mxu0 %v5488
    %7781 = vmatpush2.bf16.msra.mxu0 %v5487
    %7782 = vmatprep.subr.bf16.mxu0 %v5486
    %7783 = vmatpush2.bf16.msra.mxu0 %v5485
    %7784 = vmatprep.subr.bf16.mxu0 %v5484
    %7785 = vmatpush2.bf16.msra.mxu0 %v5483
    %7786 = vmatprep.subr.bf16.mxu0 %v5482
    %7787 = vmatpush2.bf16.msra.mxu0 %v5481
    %7788 = vmatprep.mubr.bf16.mxu0 %v1415
    %7789 = vmatmul.mubr.bf16.gmra.mxu0 %v1413
    %v7790 = vpop.f32.mrf.mxu0
    %v7791 = vadd.f32 %v7750, %v7790
    %v7792 = vpop.f32.mrf.mxu0
    %v7793 = vadd.f32 %v7752, %v7792
    %v7794 = vpop.f32.mrf.mxu0
    %v7795 = vpop.f32.mrf.mxu0
    %7796 = vdwg.mxu0
    %7797 = vmatprep.subr.bf16.mxu0 %v5512
    %7798 = vmatpush1.bf16.msra.mxu0 %v5511
    %7799 = vmatprep.subr.bf16.mxu0 %v5510
    %7800 = vmatpush1.bf16.msra.mxu0 %v5509
    %7801 = vmatprep.subr.bf16.mxu0 %v5508
    %7802 = vmatpush1.bf16.msra.mxu0 %v5507
    %7803 = vmatprep.subr.bf16.mxu0 %v5506
    %7804 = vmatpush1.bf16.msra.mxu0 %v5505
    %7805 = vmatprep.subr.bf16.mxu0 %v5504
    %7806 = vmatpush1.bf16.msra.mxu0 %v5503
    %7807 = vmatprep.subr.bf16.mxu0 %v5502
    %7808 = vmatpush1.bf16.msra.mxu0 %v5501
    %7809 = vmatprep.subr.bf16.mxu0 %v5500
    %7810 = vmatpush1.bf16.msra.mxu0 %v5499
    %7811 = vmatprep.subr.bf16.mxu0 %v5498
    %7812 = vmatpush1.bf16.msra.mxu0 %v5497
    %7813 = vmatprep.subr.bf16.mxu0 %v5528
    %7814 = vmatpush2.bf16.msra.mxu0 %v5527
    %7815 = vmatprep.subr.bf16.mxu0 %v5526
    %7816 = vmatpush2.bf16.msra.mxu0 %v5525
    %7817 = vmatprep.subr.bf16.mxu0 %v5524
    %7818 = vmatpush2.bf16.msra.mxu0 %v5523
    %7819 = vmatprep.subr.bf16.mxu0 %v5522
    %7820 = vmatpush2.bf16.msra.mxu0 %v5521
    %7821 = vmatprep.subr.bf16.mxu0 %v5520
    %7822 = vmatpush2.bf16.msra.mxu0 %v5519
    %7823 = vmatprep.subr.bf16.mxu0 %v5518
    %7824 = vmatpush2.bf16.msra.mxu0 %v5517
    %7825 = vmatprep.subr.bf16.mxu0 %v5516
    %7826 = vmatpush2.bf16.msra.mxu0 %v5515
    %7827 = vmatprep.subr.bf16.mxu0 %v5514
    %7828 = vmatpush2.bf16.msra.mxu0 %v5513
    %7829 = vmatprep.mubr.bf16.mxu0 %v1453
    %7830 = vmatmul.mubr.bf16.gmra.mxu0 %v1439
    %v7831 = vpop.f32.mrf.mxu0
    %v7832 = vadd.f32 %v7791, %v7831
    %v7833 = vpop.f32.mrf.mxu0
    %v7834 = vadd.f32 %v7793, %v7833
    %v7835 = vpop.f32.mrf.mxu0
    %v7836 = vpop.f32.mrf.mxu0
    %7837 = vdwg.mxu0
    %7838 = vmatprep.subr.bf16.mxu0 %v5544
    %7839 = vmatpush1.bf16.msra.mxu0 %v5543
    %7840 = vmatprep.subr.bf16.mxu0 %v5542
    %7841 = vmatpush1.bf16.msra.mxu0 %v5541
    %7842 = vmatprep.subr.bf16.mxu0 %v5540
    %7843 = vmatpush1.bf16.msra.mxu0 %v5539
    %7844 = vmatprep.subr.bf16.mxu0 %v5538
    %7845 = vmatpush1.bf16.msra.mxu0 %v5537
    %7846 = vmatprep.subr.bf16.mxu0 %v5536
    %7847 = vmatpush1.bf16.msra.mxu0 %v5535
    %7848 = vmatprep.subr.bf16.mxu0 %v5534
    %7849 = vmatpush1.bf16.msra.mxu0 %v5533
    %7850 = vmatprep.subr.bf16.mxu0 %v5532
    %7851 = vmatpush1.bf16.msra.mxu0 %v5531
    %7852 = vmatprep.subr.bf16.mxu0 %v5530
    %7853 = vmatpush1.bf16.msra.mxu0 %v5529
    %7854 = vmatprep.subr.bf16.mxu0 %v5560
    %7855 = vmatpush2.bf16.msra.mxu0 %v5559
    %7856 = vmatprep.subr.bf16.mxu0 %v5558
    %7857 = vmatpush2.bf16.msra.mxu0 %v5557
    %7858 = vmatprep.subr.bf16.mxu0 %v5556
    %7859 = vmatpush2.bf16.msra.mxu0 %v5555
    %7860 = vmatprep.subr.bf16.mxu0 %v5554
    %7861 = vmatpush2.bf16.msra.mxu0 %v5553
    %7862 = vmatprep.subr.bf16.mxu0 %v5552
    %7863 = vmatpush2.bf16.msra.mxu0 %v5551
    %7864 = vmatprep.subr.bf16.mxu0 %v5550
    %7865 = vmatpush2.bf16.msra.mxu0 %v5549
    %7866 = vmatprep.subr.bf16.mxu0 %v5548
    %7867 = vmatpush2.bf16.msra.mxu0 %v5547
    %7868 = vmatprep.subr.bf16.mxu0 %v5546
    %7869 = vmatpush2.bf16.msra.mxu0 %v5545
    %7870 = vmatprep.mubr.bf16.mxu0 %v1463
    %7871 = vmatmul.mubr.bf16.gmra.mxu0 %v1461
    %v7872 = vpop.f32.mrf.mxu0
    %v7873 = vadd.f32 %v7832, %v7872
    %v7874 = vpop.f32.mrf.mxu0
    %v7875 = vadd.f32 %v7834, %v7874
    %v7876 = vpop.f32.mrf.mxu0
    %v7877 = vpop.f32.mrf.mxu0
    %7878 = vdwg.mxu0
    %7879 = vmatprep.subr.bf16.mxu0 %v5576
    %7880 = vmatpush1.bf16.msra.mxu0 %v5575
    %7881 = vmatprep.subr.bf16.mxu0 %v5574
    %7882 = vmatpush1.bf16.msra.mxu0 %v5573
    %7883 = vmatprep.subr.bf16.mxu0 %v5572
    %7884 = vmatpush1.bf16.msra.mxu0 %v5571
    %7885 = vmatprep.subr.bf16.mxu0 %v5570
    %7886 = vmatpush1.bf16.msra.mxu0 %v5569
    %7887 = vmatprep.subr.bf16.mxu0 %v5568
    %7888 = vmatpush1.bf16.msra.mxu0 %v5567
    %7889 = vmatprep.subr.bf16.mxu0 %v5566
    %7890 = vmatpush1.bf16.msra.mxu0 %v5565
    %7891 = vmatprep.subr.bf16.mxu0 %v5564
    %7892 = vmatpush1.bf16.msra.mxu0 %v5563
    %7893 = vmatprep.subr.bf16.mxu0 %v5562
    %7894 = vmatpush1.bf16.msra.mxu0 %v5561
    %7895 = vmatprep.subr.bf16.mxu0 %v5592
    %7896 = vmatpush2.bf16.msra.mxu0 %v5591
    %7897 = vmatprep.subr.bf16.mxu0 %v5590
    %7898 = vmatpush2.bf16.msra.mxu0 %v5589
    %7899 = vmatprep.subr.bf16.mxu0 %v5588
    %7900 = vmatpush2.bf16.msra.mxu0 %v5587
    %7901 = vmatprep.subr.bf16.mxu0 %v5586
    %7902 = vmatpush2.bf16.msra.mxu0 %v5585
    %7903 = vmatprep.subr.bf16.mxu0 %v5584
    %7904 = vmatpush2.bf16.msra.mxu0 %v5583
    %7905 = vmatprep.subr.bf16.mxu0 %v5582
    %7906 = vmatpush2.bf16.msra.mxu0 %v5581
    %7907 = vmatprep.subr.bf16.mxu0 %v5580
    %7908 = vmatpush2.bf16.msra.mxu0 %v5579
    %7909 = vmatprep.subr.bf16.mxu0 %v5578
    %7910 = vmatpush2.bf16.msra.mxu0 %v5577
    %7911 = vmatprep.mubr.bf16.mxu0 %v1460
    %7912 = vmatmul.mubr.bf16.gmra.mxu0 %v1446
    %v7913 = vpop.f32.mrf.mxu0
    %v7914 = vadd.f32 %v7873, %v7913
    %v7915 = vpop.f32.mrf.mxu0
    %v7916 = vadd.f32 %v7875, %v7915
    %v7917 = vpop.f32.mrf.mxu0
    %v7918 = vpop.f32.mrf.mxu0
    %7919 = vdwg.mxu0
    %7920 = vmatprep.subr.bf16.mxu0 %v5608
    %7921 = vmatpush1.bf16.msra.mxu0 %v5607
    %7922 = vmatprep.subr.bf16.mxu0 %v5606
    %7923 = vmatpush1.bf16.msra.mxu0 %v5605
    %7924 = vmatprep.subr.bf16.mxu0 %v5604
    %7925 = vmatpush1.bf16.msra.mxu0 %v5603
    %7926 = vmatprep.subr.bf16.mxu0 %v5602
    %7927 = vmatpush1.bf16.msra.mxu0 %v5601
    %7928 = vmatprep.subr.bf16.mxu0 %v5600
    %7929 = vmatpush1.bf16.msra.mxu0 %v5599
    %7930 = vmatprep.subr.bf16.mxu0 %v5598
    %7931 = vmatpush1.bf16.msra.mxu0 %v5597
    %7932 = vmatprep.subr.bf16.mxu0 %v5596
    %7933 = vmatpush1.bf16.msra.mxu0 %v5595
    %7934 = vmatprep.subr.bf16.mxu0 %v5594
    %7935 = vmatpush1.bf16.msra.mxu0 %v5593
    %7936 = vmatprep.subr.bf16.mxu0 %v5624
    %7937 = vmatpush2.bf16.msra.mxu0 %v5623
    %7938 = vmatprep.subr.bf16.mxu0 %v5622
    %7939 = vmatpush2.bf16.msra.mxu0 %v5621
    %7940 = vmatprep.subr.bf16.mxu0 %v5620
    %7941 = vmatpush2.bf16.msra.mxu0 %v5619
    %7942 = vmatprep.subr.bf16.mxu0 %v5618
    %7943 = vmatpush2.bf16.msra.mxu0 %v5617
    %7944 = vmatprep.subr.bf16.mxu0 %v5616
    %7945 = vmatpush2.bf16.msra.mxu0 %v5615
    %7946 = vmatprep.subr.bf16.mxu0 %v5614
    %7947 = vmatpush2.bf16.msra.mxu0 %v5613
    %7948 = vmatprep.subr.bf16.mxu0 %v5612
    %7949 = vmatpush2.bf16.msra.mxu0 %v5611
    %7950 = vmatprep.subr.bf16.mxu0 %v5610
    %7951 = vmatpush2.bf16.msra.mxu0 %v5609
    %7952 = vmatprep.mubr.bf16.mxu0 %v1464
    %7953 = vmatmul.mubr.bf16.gmra.mxu0 %v1462
    %v7954 = vpop.f32.mrf.mxu0
    %v7955 = vadd.f32 %v7914, %v7954
    %v7956 = vpop.f32.mrf.mxu0
    %v7957 = vadd.f32 %v7916, %v7956
    %v7958 = vpop.f32.mrf.mxu0
    %v7959 = vpop.f32.mrf.mxu0
    %7960 = vdwg.mxu0
    %vm7961 = vcmask 1041408
    %v7962 = vsel %vm7961, %v7955, 0.0
    %v7963 = vrot.slane %v7962, 4
    %v7964 = vadd.f32 %v7962, %v7963
    %v7965 = vrot.slane %v7964, 2
    %v7966 = vadd.f32 %v7964, %v7965
    %v7967 = vrot.slane %v7966, 1
    %v7968 = vadd.f32 %v7966, %v7967
    %v7969 = vsel %vm7961, %v7957, 0.0
    %v7970 = vrot.slane %v7969, 4
    %v7971 = vadd.f32 %v7969, %v7970
    %v7972 = vrot.slane %v7971, 2
    %v7973 = vadd.f32 %v7971, %v7972
    %v7974 = vrot.slane %v7973, 1
    %v7975 = vadd.f32 %v7973, %v7974
    %v7976 = vrcp.pop 2.0
    %v7977 = vmul.f32 %v7968, %v7976
    %v7978 = vmul.f32 %v7975, %v7976
    %v7979 = vsub.f32 %v7955, %v7977
    %v7980 = vsub.f32 %v7957, %v7978
    %v7981 = vmul.f32 %v7979, %v7979
    %v7982 = vmul.f32 %v7980, %v7980
    %v7983 = vsel %vm7961, %v7981, 0.0
    %v7984 = vrot.slane %v7983, 4
    %v7985 = vadd.f32 %v7983, %v7984
    %v7986 = vrot.slane %v7985, 2
    %v7987 = vadd.f32 %v7985, %v7986
    %v7988 = vrot.slane %v7987, 1
    %v7989 = vadd.f32 %v7987, %v7988
    %v7990 = vsel %vm7961, %v7982, 0.0
    %v7991 = vrot.slane %v7990, 4
    %v7992 = vadd.f32 %v7990, %v7991
    %v7993 = vrot.slane %v7992, 2
    %v7994 = vadd.f32 %v7992, %v7993
    %v7995 = vrot.slane %v7994, 1
    %v7996 = vadd.f32 %v7994, %v7995
    %v7997 = vmul.f32 %v7989, %v7976
    %v7998 = vmul.f32 %v7996, %v7976
    %v7999 = vadd.f32 %v7997, 1e-05
    %v8000 = vadd.f32 %v7998, 1e-05
    %v8001 = vrsqrt.pop %v7999
    %v8002 = vrsqrt.pop %v8000
    %v8003 = vmul.f32 %v7979, %v8001
    %v8004 = vmul.f32 %v7980, %v8002
    %v8005 = vld [vmem:[%s3] sm:$0x3]
    %v8007 = vlaneseq
    %v8008 = vshrl.u32 %v8007, 7
    %v8009 = vsub.s32 0, %v8008
    %v8010 = vrot.slane %v8005, %v8009
    %v8011 = vlaneseq
    %v8012 = vshrl.u32 %v8011, 7
    %v8013 = vsub.s32 1, %v8012
    %v8014 = vrot.slane %v8005, %v8013
    %v8017 = vmul.f32 %v8003, %v8010
    %v8018 = vmul.f32 %v8004, %v8014
    %v8019 = vld [vmem:[%s4] sm:$0x3]
    %v8021 = vlaneseq
    %v8022 = vshrl.u32 %v8021, 7
    %v8023 = vsub.s32 0, %v8022
    %v8024 = vrot.slane %v8019, %v8023
    %v8025 = vlaneseq
    %v8026 = vshrl.u32 %v8025, 7
    %v8027 = vsub.s32 1, %v8026
    %v8028 = vrot.slane %v8019, %v8027
    %v8031 = vadd.f32 %v8017, %v8024
    %v8032 = vadd.f32 %v8018, %v8028
    %v8033 = vmax.f32 %v8031, 0.0
    %v8034 = vmax.f32 %v8032, 0.0
    %v8037 = vcombine.low %v8033, %v8034
    %v8039 = vunpack.c.l.s4 1983009808
    %v8040 = vunpack.c.0.s8 %v8039
    %v8041 = vlaneseq
    %v8042 = vshrl.u32 %v8041, 7
    %v8043 = vsub.s32 %v8040, %v8042
    %v8044 = vrot.slane %v8037, %v8043
    %8046 = vst [vmem:[#allocation2] sm:$0xf] %v8044
    // Predicated region
    $region22: #{_clsa_forward_impl.1} parent=1 // pred_check
      _
    $region23: #{_clsa_forward_impl.1} parent=1 // pred_check_branch
      %8048 = sbr.rel (0) target = $region25
    $region24: #{_clsa_forward_impl.1} parent=1 // pred_region
      %s8050 = ssub.s32 64, 64
      %8051 = vsyncadd [#allocation3], %s8050
      %s8053 = sshll.u32 [#allocation2], 4
      %s8054 = int_to_ptr.vmem [resolvable:$true] %s8053
      %8056 = dma.vmem_to_hbm [thread:$0]  %s8054, 64, %s5, [#allocation3]
    $region25: #{_clsa_forward_impl.1} parent=1 // pred_fallthru
      _
    // Predicated region
    $region26: #{_clsa_forward_impl.1} parent=1 // pred_check
      _
    $region27: #{_clsa_forward_impl.1} parent=1 // pred_check_branch
      %8058 = sbr.rel (0) target = $region29
    $region28: #{_clsa_forward_impl.1} parent=1 // pred_region
      %8059 = dma.done [#allocation3], 64
    $region29: #{_clsa_forward_impl.1} parent=1 // pred_fallthru
      _
    %8060 = vsyncpa [#allocation3], 1

</llo_original>
